<compile_context>
chip_gen: v7x
topology: tpu7x:2x2x1
jax: 0.10.0
libtpu: 0.0.40
codegen_flags: <defaults>
</compile_context>

<pallas_src>
import functools

import jax
import jax.numpy as jnp
from jax.experimental import pallas as pl
from jax.experimental.pallas import tpu as pltpu

IN_FEATURES = 256 * 3 * 3   # 2304
HIDDEN = 512
NUM_CLASSES = 43
PADDED_CLASSES = 128        # lane-dense output block
NEG_BIG = -1e30             # acts like -inf for padded logits (exp -> 0)


def classifier_kernel(x_ref, w1_ref, b1_ref, w2_ref, b2_ref, o_ref, h_ref):
    """Fused fc1(bf16 MXU) + ReLU + fc2 + log_softmax for one batch tile."""
    # fc1 + bias + ReLU  (bf16 inputs, f32 accumulation on the MXU)
    x = x_ref[...].astype(jnp.bfloat16)                       # (TM, 2304)
    h = jnp.dot(x, w1_ref[...], preferred_element_type=jnp.float32)
    h = jnp.maximum(h + b1_ref[...], 0.0)                     # (TM, 512)
    h_ref[...] = h                                            # keep in VMEM scratch

    # fc2 (padded to 128 classes; padded weight cols are 0, padded bias is -1e30)
    logits = jnp.dot(h_ref[...], w2_ref[...],
                     preferred_element_type=jnp.float32)      # (TM, 128)
    logits = logits + b2_ref[...]

    # log_softmax over the class axis (numerically stable). Padded columns hold
    # ~-1e30 -> exp underflows to 0, so they do not perturb the normalizer.
    m = jnp.max(logits, axis=-1, keepdims=True)               # (TM, 1)
    shifted = logits - m
    lse = jnp.log(jnp.sum(jnp.exp(shifted), axis=-1, keepdims=True))
    o_ref[...] = (shifted - lse).astype(o_ref.dtype)


def _round_up(n, m):
    return ((n + m - 1) // m) * m


def classifier_forward(x, w1, b1, w2, b2, *, tm=256):
    """Run the fused classifier.

    x: (B, 2304) f32.  w1: (2304, 512), b1: (1, 512), w2: (512, 43), b2: (1, 43)
    (i.e. nn.Linear weights stored transposed as (in, out)).
    Returns (B, 43) f32 log-probabilities.
    """
    B = x.shape[0]

    # --- parameter prep: bf16 fc1 weights, lane-dense padded fc2 ---------------
    w1_bf16 = w1.astype(jnp.bfloat16)
    b1_f32 = b1.astype(jnp.float32)
    pad_c = PADDED_CLASSES - NUM_CLASSES
    w2_pad = jnp.concatenate(
        [w2.astype(jnp.float32), jnp.zeros((HIDDEN, pad_c), jnp.float32)], axis=1)
    b2_pad = jnp.concatenate(
        [b2.astype(jnp.float32), jnp.full((1, pad_c), NEG_BIG, jnp.float32)], axis=1)

    # --- batch tiling (multiple of 16 for bf16 sublane packing, capped at 256) --
    TM = min(tm, max(16, _round_up(B, 16)))
    TM = _round_up(TM, 16)
    Bp = _round_up(B, TM)
    if Bp != B:
        x = jnp.pad(x, ((0, Bp - B), (0, 0)))
    grid = (Bp // TM,)

    cost = pl.CostEstimate(
        flops=2 * Bp * (IN_FEATURES * HIDDEN + HIDDEN * PADDED_CLASSES),
        transcendentals=Bp * (PADDED_CLASSES + 1),
        bytes_accessed=(Bp * IN_FEATURES * 4            # x (f32)
                        + IN_FEATURES * HIDDEN * 2      # w1 (bf16)
                        + HIDDEN * PADDED_CLASSES * 4   # w2 (f32)
                        + (HIDDEN + PADDED_CLASSES) * 4  # biases
                        + Bp * PADDED_CLASSES * 4))     # out

    out = pl.pallas_call(
        classifier_kernel,
        out_shape=jax.ShapeDtypeStruct((Bp, PADDED_CLASSES), jnp.float32),
        grid=grid,
        in_specs=[
            pl.BlockSpec((TM, IN_FEATURES), lambda i: (i, 0)),        # x tile
            pl.BlockSpec((IN_FEATURES, HIDDEN), lambda i: (0, 0)),    # w1 resident
            pl.BlockSpec((1, HIDDEN), lambda i: (0, 0)),              # b1 resident
            pl.BlockSpec((HIDDEN, PADDED_CLASSES), lambda i: (0, 0)),  # w2 resident
            pl.BlockSpec((1, PADDED_CLASSES), lambda i: (0, 0)),      # b2 resident
        ],
        out_specs=pl.BlockSpec((TM, PADDED_CLASSES), lambda i: (i, 0)),
        scratch_shapes=[pltpu.VMEM((TM, HIDDEN), jnp.float32)],
        compiler_params=pltpu.CompilerParams(
            dimension_semantics=("parallel",),   # batch tiles shard across TCs (v7x)
        ),
        cost_estimate=cost,
    )(x, w1_bf16, b1_f32, w2_pad, b2_pad)

    return out[:B, :NUM_CLASSES]


def init_params(key):
    """Deterministic synthetic parameters matching nn.Linear shapes.

    PyTorch stores Linear weights as (out, in); we keep them as (in, out) so the
    kernel multiplies without a transpose (same math: x @ W^T). Init mimics
    PyTorch's uniform(-1/sqrt(fan_in), 1/sqrt(fan_in)).
    """
    k1, k2, k3, k4 = jax.random.split(key, 4)
    lim1 = 1.0 / jnp.sqrt(jnp.float32(IN_FEATURES))
    lim2 = 1.0 / jnp.sqrt(jnp.float32(HIDDEN))
    w1 = jax.random.uniform(k1, (IN_FEATURES, HIDDEN), jnp.float32, -lim1, lim1)
    b1 = jax.random.uniform(k2, (1, HIDDEN), jnp.float32, -lim1, lim1)
    w2 = jax.random.uniform(k3, (HIDDEN, NUM_CLASSES), jnp.float32, -lim2, lim2)
    b2 = jax.random.uniform(k4, (1, NUM_CLASSES), jnp.float32, -lim2, lim2)
    return w1, b1, w2, b2


def reference_forward(x, w1, b1, w2, b2, *, bf16_fc1=False):
    """Pure-JAX reference. bf16_fc1=True mirrors the kernel's fc1 precision."""
    if bf16_fc1:
        h = jnp.dot(x.astype(jnp.bfloat16), w1.astype(jnp.bfloat16),
                    preferred_element_type=jnp.float32)
    else:
        h = x @ w1
    h = jnp.maximum(h + b1, 0.0)
    logits = h @ w2 + b2
    return jax.nn.log_softmax(logits, axis=1)


if __name__ == "__main__":
    key = jax.random.PRNGKey(0)
    kx, kp = jax.random.split(key)

    B = 32
    x = jax.random.normal(kx, (B, IN_FEATURES), jnp.float32)
    w1, b1, w2, b2 = init_params(kp)

    # Small tile so the demo exercises a multi-step (pipelined / parallel) grid.
    out = classifier_forward(x, w1, b1, w2, b2, tm=16)
    out = jax.block_until_ready(out)
    assert out.shape == (B, NUM_CLASSES)

    # Correctness: match a reference that mirrors the bf16 fc1 matmul tightly,
    # and the pure-f32 reference loosely (bf16 weight quantization error only).
    ref_bf16 = reference_forward(x, w1, b1, w2, b2, bf16_fc1=True)
    ref_f32 = reference_forward(x, w1, b1, w2, b2, bf16_fc1=False)
    assert jnp.allclose(out, ref_bf16, atol=2e-3, rtol=2e-3), "mismatch vs bf16 reference"
    assert jnp.allclose(out, ref_f32, atol=5e-2, rtol=5e-2), "mismatch vs f32 reference"
    # log-softmax rows must normalize: logsumexp == 0
    assert jnp.allclose(jax.scipy.special.logsumexp(out, axis=1),
                        jnp.zeros((B,)), atol=1e-3)

    print("KERNEL_OK")
</pallas_src>

<mosaic_0001>
module attributes {stable_mosaic.version = 11 : i64} {
  func.func @classifier_kernel(%arg0: i32, %arg1: memref<16x2304xf32, #tpu.memory_space<vmem>>, %arg2: memref<2304x512xbf16, #tpu.memory_space<vmem>>, %arg3: memref<1x512xf32, #tpu.memory_space<vmem>>, %arg4: memref<512x128xf32, #tpu.memory_space<vmem>>, %arg5: memref<1x128xf32, #tpu.memory_space<vmem>>, %arg6: memref<16x128xf32, #tpu.memory_space<vmem>>, %arg7: memref<16x512xf32, #tpu.memory_space<vmem>>) attributes {dimension_semantics = [#tpu.dimension_semantics<parallel>], iteration_bounds = array<i64: 2>, scalar_prefetch = 0 : i64, scratch_operands = 1 : i64, tpu.core_type = #tpu.core_type<tc>, window_params = [{transform_indices = @transform_0, window_bounds = array<i64: 16, 2304>}, {pipeline_mode = #tpu.pipeline_mode<synchronous>, transform_indices = @transform_1, window_bounds = array<i64: 2304, 512>}, {pipeline_mode = #tpu.pipeline_mode<synchronous>, transform_indices = @transform_2, window_bounds = array<i64: 1, 512>}, {pipeline_mode = #tpu.pipeline_mode<synchronous>, transform_indices = @transform_3, window_bounds = array<i64: 512, 128>}, {pipeline_mode = #tpu.pipeline_mode<synchronous>, transform_indices = @transform_4, window_bounds = array<i64: 1, 128>}, {transform_indices = @transform_5, window_bounds = array<i64: 16, 128>}]} {
    %c0 = arith.constant 0 : index
    %c0_0 = arith.constant 0 : index
    %0 = vector.load %arg1[%c0, %c0_0] : memref<16x2304xf32, #tpu.memory_space<vmem>>, vector<16x2304xf32>
    %1 = arith.truncf %0 : vector<16x2304xf32> to vector<16x2304xbf16>
    %c0_1 = arith.constant 0 : index
    %c0_2 = arith.constant 0 : index
    %2 = vector.load %arg2[%c0_1, %c0_2] : memref<2304x512xbf16, #tpu.memory_space<vmem>>, vector<2304x512xbf16>
    %cst = arith.constant dense<0.000000e+00> : vector<16x512xf32>
    %3 = tpu.matmul %1, %2, %cst {dimension_numbers = #tpu.dot_dimension_numbers<[1], [0], [0], [1], [0, 0, 1, 1], [], []>} : vector<16x2304xbf16>, vector<2304x512xbf16>, vector<16x512xf32> -> vector<16x512xf32>
    %c0_3 = arith.constant 0 : index
    %c0_4 = arith.constant 0 : index
    %4 = vector.load %arg3[%c0_3, %c0_4] : memref<1x512xf32, #tpu.memory_space<vmem>>, vector<1x512xf32>
    %5 = vector.broadcast %4 : vector<1x512xf32> to vector<16x512xf32>
    %6 = arith.addf %3, %5 : vector<16x512xf32>
    %cst_5 = arith.constant 0.000000e+00 : f32
    %7 = vector.broadcast %cst_5 : f32 to vector<16x512xf32>
    %8 = arith.maximumf %6, %7 : vector<16x512xf32>
    %c0_6 = arith.constant 0 : index
    %c0_7 = arith.constant 0 : index
    %9 = vector.load %arg7[%c0_6, %c0_7] : memref<16x512xf32, #tpu.memory_space<vmem>>, vector<16x512xf32>
    tpu.vector_store %arg7[%c0_6, %c0_7], %8 {strides = array<i32>} : memref<16x512xf32, #tpu.memory_space<vmem>>, vector<16x512xf32>,
    %c0_8 = arith.constant 0 : index
    %c0_9 = arith.constant 0 : index
    %10 = vector.load %arg7[%c0_8, %c0_9] : memref<16x512xf32, #tpu.memory_space<vmem>>, vector<16x512xf32>
    %c0_10 = arith.constant 0 : index
    %c0_11 = arith.constant 0 : index
    %11 = vector.load %arg4[%c0_10, %c0_11] : memref<512x128xf32, #tpu.memory_space<vmem>>, vector<512x128xf32>
    %cst_12 = arith.constant dense<0.000000e+00> : vector<16x128xf32>
    %12 = tpu.matmul %10, %11, %cst_12 {dimension_numbers = #tpu.dot_dimension_numbers<[1], [0], [0], [1], [0, 0, 1, 1], [], []>} : vector<16x512xf32>, vector<512x128xf32>, vector<16x128xf32> -> vector<16x128xf32>
    %c0_13 = arith.constant 0 : index
    %c0_14 = arith.constant 0 : index
    %13 = vector.load %arg5[%c0_13, %c0_14] : memref<1x128xf32, #tpu.memory_space<vmem>>, vector<1x128xf32>
    %14 = vector.broadcast %13 : vector<1x128xf32> to vector<16x128xf32>
    %15 = arith.addf %12, %14 : vector<16x128xf32>
    %cst_15 = arith.constant dense<0xFF800000> : vector<16xf32>
    %16 = vector.multi_reduction <maximumf>, %15, %cst_15 [1] : vector<16x128xf32> to vector<16xf32>
    %17 = vector.shape_cast %16 : vector<16xf32> to vector<16x1xf32>
    %18 = vector.broadcast %17 : vector<16x1xf32> to vector<16x128xf32>
    %19 = arith.subf %15, %18 : vector<16x128xf32>
    %20 = math.exp %19 : vector<16x128xf32>
    %cst_16 = arith.constant dense<0.000000e+00> : vector<16xf32>
    %21 = vector.multi_reduction <add>, %20, %cst_16 [1] : vector<16x128xf32> to vector<16xf32>
    %22 = vector.shape_cast %21 : vector<16xf32> to vector<16x1xf32>
    %23 = math.log %22 : vector<16x1xf32>
    %24 = vector.broadcast %23 : vector<16x1xf32> to vector<16x128xf32>
    %25 = arith.subf %19, %24 : vector<16x128xf32>
    %c0_17 = arith.constant 0 : index
    %c0_18 = arith.constant 0 : index
    %26 = vector.load %arg6[%c0_17, %c0_18] : memref<16x128xf32, #tpu.memory_space<vmem>>, vector<16x128xf32>
    tpu.vector_store %arg6[%c0_17, %c0_18], %25 {strides = array<i32>} : memref<16x128xf32, #tpu.memory_space<vmem>>, vector<16x128xf32>,
    return
  }
  func.func @transform_0(%arg0: i32) -> (i32, i32) {
    %c0_i32 = arith.constant 0 : i32
    %c0_i32_0 = arith.constant 0 : i32
    return %arg0, %c0_i32 : i32, i32
  }
  func.func @transform_1(%arg0: i32) -> (i32, i32) {
    %c0_i32 = arith.constant 0 : i32
    %c0_i32_0 = arith.constant 0 : i32
    %c0_i32_1 = arith.constant 0 : i32
    return %c0_i32, %c0_i32_0 : i32, i32
  }
  func.func @transform_2(%arg0: i32) -> (i32, i32) {
    %c0_i32 = arith.constant 0 : i32
    %c0_i32_0 = arith.constant 0 : i32
    %c0_i32_1 = arith.constant 0 : i32
    return %c0_i32, %c0_i32_0 : i32, i32
  }
  func.func @transform_3(%arg0: i32) -> (i32, i32) {
    %c0_i32 = arith.constant 0 : i32
    %c0_i32_0 = arith.constant 0 : i32
    %c0_i32_1 = arith.constant 0 : i32
    return %c0_i32, %c0_i32_0 : i32, i32
  }
  func.func @transform_4(%arg0: i32) -> (i32, i32) {
    %c0_i32 = arith.constant 0 : i32
    %c0_i32_0 = arith.constant 0 : i32
    %c0_i32_1 = arith.constant 0 : i32
    return %c0_i32, %c0_i32_0 : i32, i32
  }
  func.func @transform_5(%arg0: i32) -> (i32, i32) {
    %c0_i32 = arith.constant 0 : i32
    %c0_i32_0 = arith.constant 0 : i32
    return %arg0, %c0_i32 : i32, i32
  }
}

</mosaic_0001>

<llo_original>
// kernel: tpu_custom_call.1
$region0: #{tpu_custom_call.1}
  #allocation0 [shape = 'u32[]', space=smem, size = 0x4, offset = 0x4, fixed_abs, tag = 'smem constant byte address 0x4 - core index']
  #allocation1 [shape = 'u32[144,128]{1,0:T(1,128)}', space=vmem, size = 0x12000, scoped, tag = 'internal scratch']
  #allocation2 [shape = 'f32[16,512]{1,0:T(8,128)}', space=vmem, size = 0x8000, scoped, tag = 'scratch operand']
  %s0 = inlined_call_operand.hbm [shape: f32[32,2304], index: 0, kind: input, shape index: {}]
  %s1 = inlined_call_operand.hbm [shape: bf16[2304,512], index: 1, kind: input, shape index: {}]
  %s2 = inlined_call_operand.hbm [shape: f32[1,512], index: 2, kind: input, shape index: {}]
  %s3 = inlined_call_operand.hbm [shape: f32[512,128], index: 3, kind: input, shape index: {}]
  %s4 = inlined_call_operand.hbm [shape: f32[1,128], index: 4, kind: input, shape index: {}]
  %s5 = inlined_call_operand.hbm [shape: f32[32,128], index: 5, kind: output, shape index: {}]
  %s6 = sld [smem:[#allocation0]]
  $region73: #{tpu_custom_call.1} parent=0
    _
  %s8 = ssub.s32 1, %s6
  %s9 = scalar_select 0, %s8, %s6
  $region1: #{tpu_custom_call.1} parent=0
    #allocation3 [shape = 'u8[294912]{0}', space=vmem, size = 0x48000, scoped, tag = 'input window, operand 0']
    #allocation4 [shape = 's32[2]{0}', space=sflag, size = 0x8, scoped, tag = 'scoped memory for tpu_custom_call.1']
    #allocation5 [shape = 's32[2]{0}', space=sflag, size = 0x8, scoped, tag = 'scoped memory for tpu_custom_call.1']
    #allocation6 [shape = 'u8[2359296]{0}', space=vmem, size = 0x240000, scoped, tag = 'input window, operand 1, single buffered']
    #allocation7 [shape = 's32[1]{0}', space=sflag, size = 0x4, scoped, tag = 'scoped memory for tpu_custom_call.1']
    #allocation8 [shape = 'u8[2048]{0}', space=vmem, size = 0x800, scoped, tag = 'input window, operand 2, single buffered']
    #allocation9 [shape = 'u8[262144]{0}', space=vmem, size = 0x40000, scoped, tag = 'input window, operand 3, single buffered']
    #allocation10 [shape = 's32[1]{0}', space=sflag, size = 0x4, scoped, tag = 'scoped memory for tpu_custom_call.1']
    #allocation11 [shape = 'u8[512]{0}', space=vmem, size = 0x400, scoped, tag = 'input window, operand 4, single buffered']
    #allocation12 [shape = 'u8[16384]{0}', space=vmem, size = 0x4000, scoped, tag = 'output window, operand 0']
    %10 = vsyncpa [#allocation4], 0
    %s11 = scalar_lea.sflag [#allocation4], 1
    %12 = vsyncpa %s11, 0
    %13 = vsyncpa [#allocation7], 0
    %14 = vsyncpa [#allocation10], 0
    %15 = vsyncpa [#allocation5], 0
    %s16 = scalar_lea.sflag [#allocation5], 1
    %17 = vsyncpa %s16, 0
    loop: start=0, step=1, limit=4
    $region2: #{tpu_custom_call.1} parent=1 // loop_pre_header
      _
    $region3: #{tpu_custom_call.1} parent=1 // loop_header
      %s19 = sphi 0, %s23
      %p20 = scmp.ge.s32.totalorder %s19, 4
      %s29 = sphi 0, %s31
      %s32 = sphi 0, %s29
      %s33 = sphi 0, %s32
      %s49 = sphi 0, %s33
      %s53 = sphi 0, %s53
      %s55 = sphi 0, %s53
      %s56 = sphi 0, %s55
      %s70 = sphi 0, %s56
      %s74 = sphi 0, %s74
      %s76 = sphi 0, %s74
      %s77 = sphi 0, %s76
      %s91 = sphi 0, %s77
      %s95 = sphi 0, %s95
      %s97 = sphi 0, %s95
      %s98 = sphi 0, %s97
      %s112 = sphi 0, %s98
      %s116 = sphi 0, %s116
      %s118 = sphi 0, %s116
      %s119 = sphi 0, %s118
      %s133 = sphi 0, %s119
      %s139 = sphi 0, %s141
      %s142 = sphi 0, %s139
      %s143 = sphi 0, %s142
      %s159 = sphi 0, %s143
    $region4: #{tpu_custom_call.1} parent=1 // loop_header_branch
      %22 = sbr.rel (%p20) target = $region8
    $region5: #{tpu_custom_call.1} parent=1 // loop_body
      %s24 = ssub.s32 %s19, 1
      %s25 = ssub.s32 %s19, 2
      %s26 = sadd.s32 %s19, 1
      %s27 = ssub.s32 %s19, %s26
      %p28 = scmp.eq.s32.totalorder %s27, 0
      %s30 = sadd.s32 %s29, 1
      %s31 = scalar_select %p28, %s29, %s30
      %p34 = pneg %p28
      %p35 = scmp.eq.s32.totalorder %s19, 1
      %p36 = por %p34, %p35
      %p37 = scmp.ne.s32.totalorder %s29, %s32
      %p38 = scmp.eq.s32.totalorder %s19, 0
      %p39 = por %p37, %p38
      %p40 = scmp.ne.s32.totalorder %s29, %s32
      %p41 = scmp.eq.s32.totalorder %s24, 1
      %p42 = por %p40, %p41
      %p43 = scmp.ne.s32.totalorder %s32, %s33
      %p44 = scmp.eq.s32.totalorder %s24, 0
      %p45 = por %p43, %p44
      %p46 = scmp.ne.s32.totalorder %s32, %s33
      %p47 = scmp.eq.s32.totalorder %s25, 1
      %p48 = por %p46, %p47
      %p50 = scmp.ne.s32.totalorder %s33, %s49
      %p51 = scmp.eq.s32.totalorder %s25, 0
      %p52 = por %p50, %p51
      %s54 = sadd.s32 %s53, 1
      %p57 = scmp.eq.s32.totalorder %s19, 1
      %p58 = scmp.ne.s32.totalorder %s53, %s55
      %p59 = scmp.eq.s32.totalorder %s19, 0
      %p60 = por %p58, %p59
      %p61 = scmp.ne.s32.totalorder %s53, %s55
      %p62 = scmp.eq.s32.totalorder %s24, 1
      %p63 = por %p61, %p62
      %p64 = scmp.ne.s32.totalorder %s55, %s56
      %p65 = scmp.eq.s32.totalorder %s24, 0
      %p66 = por %p64, %p65
      %p67 = scmp.ne.s32.totalorder %s55, %s56
      %p68 = scmp.eq.s32.totalorder %s25, 1
      %p69 = por %p67, %p68
      %p71 = scmp.ne.s32.totalorder %s56, %s70
      %p72 = scmp.eq.s32.totalorder %s25, 0
      %p73 = por %p71, %p72
      %s75 = sadd.s32 %s74, 1
      %p78 = scmp.eq.s32.totalorder %s19, 1
      %p79 = scmp.ne.s32.totalorder %s74, %s76
      %p80 = scmp.eq.s32.totalorder %s19, 0
      %p81 = por %p79, %p80
      %p82 = scmp.ne.s32.totalorder %s74, %s76
      %p83 = scmp.eq.s32.totalorder %s24, 1
      %p84 = por %p82, %p83
      %p85 = scmp.ne.s32.totalorder %s76, %s77
      %p86 = scmp.eq.s32.totalorder %s24, 0
      %p87 = por %p85, %p86
      %p88 = scmp.ne.s32.totalorder %s76, %s77
      %p89 = scmp.eq.s32.totalorder %s25, 1
      %p90 = por %p88, %p89
      %p92 = scmp.ne.s32.totalorder %s77, %s91
      %p93 = scmp.eq.s32.totalorder %s25, 0
      %p94 = por %p92, %p93
      %s96 = sadd.s32 %s95, 1
      %p99 = scmp.eq.s32.totalorder %s19, 1
      %p100 = scmp.ne.s32.totalorder %s95, %s97
      %p101 = scmp.eq.s32.totalorder %s19, 0
      %p102 = por %p100, %p101
      %p103 = scmp.ne.s32.totalorder %s95, %s97
      %p104 = scmp.eq.s32.totalorder %s24, 1
      %p105 = por %p103, %p104
      %p106 = scmp.ne.s32.totalorder %s97, %s98
      %p107 = scmp.eq.s32.totalorder %s24, 0
      %p108 = por %p106, %p107
      %p109 = scmp.ne.s32.totalorder %s97, %s98
      %p110 = scmp.eq.s32.totalorder %s25, 1
      %p111 = por %p109, %p110
      %p113 = scmp.ne.s32.totalorder %s98, %s112
      %p114 = scmp.eq.s32.totalorder %s25, 0
      %p115 = por %p113, %p114
      %s117 = sadd.s32 %s116, 1
      %p120 = scmp.eq.s32.totalorder %s19, 1
      %p121 = scmp.ne.s32.totalorder %s116, %s118
      %p122 = scmp.eq.s32.totalorder %s19, 0
      %p123 = por %p121, %p122
      %p124 = scmp.ne.s32.totalorder %s116, %s118
      %p125 = scmp.eq.s32.totalorder %s24, 1
      %p126 = por %p124, %p125
      %p127 = scmp.ne.s32.totalorder %s118, %s119
      %p128 = scmp.eq.s32.totalorder %s24, 0
      %p129 = por %p127, %p128
      %p130 = scmp.ne.s32.totalorder %s118, %s119
      %p131 = scmp.eq.s32.totalorder %s25, 1
      %p132 = por %p130, %p131
      %p134 = scmp.ne.s32.totalorder %s119, %s133
      %p135 = scmp.eq.s32.totalorder %s25, 0
      %p136 = por %p134, %p135
      %s137 = ssub.s32 %s19, %s26
      %p138 = scmp.eq.s32.totalorder %s137, 0
      %s140 = sadd.s32 %s139, 1
      %s141 = scalar_select %p138, %s139, %s140
      %p144 = pneg %p138
      %p145 = scmp.eq.s32.totalorder %s19, 1
      %p146 = por %p144, %p145
      %p147 = scmp.ne.s32.totalorder %s139, %s142
      %p148 = scmp.eq.s32.totalorder %s19, 0
      %p149 = por %p147, %p148
      %p150 = scmp.ne.s32.totalorder %s139, %s142
      %p151 = scmp.eq.s32.totalorder %s24, 1
      %p152 = por %p150, %p151
      %p153 = scmp.ne.s32.totalorder %s142, %s143
      %p154 = scmp.eq.s32.totalorder %s24, 0
      %p155 = por %p153, %p154
      %p156 = scmp.ne.s32.totalorder %s142, %s143
      %p157 = scmp.eq.s32.totalorder %s25, 1
      %p158 = por %p156, %p157
      %p160 = scmp.ne.s32.totalorder %s143, %s159
      %p161 = scmp.eq.s32.totalorder %s25, 0
      %p162 = por %p160, %p161
      %p163 = scmp.le.s32.totalorder 1, %s19
      %p164 = scmp.lt.s32.totalorder %s19, 3
      %p165 = pnand %p163, %p164
      %p166 = pneg %p165
      // Predicated region
      $region9: #{tpu_custom_call.1} parent=5 // pred_check
        _
      $region10: #{tpu_custom_call.1} parent=5 // pred_check_branch
        %168 = sbr.rel (%p165) target = $region12
      $region11: #{tpu_custom_call.1} parent=5 // pred_region
        %s169 = ssub.s32 %s19, 1
        // Predicated region
        $region13: #{tpu_custom_call.1} parent=11 // pred_check
          %p170 = pneg %p66
        $region14: #{tpu_custom_call.1} parent=11 // pred_check_branch
          %172 = sbr.rel (%p170) target = $region16
        $region15: #{tpu_custom_call.1} parent=11 // pred_region
          %s174 = ssub.s32 73728, 73728
          %175 = vsyncadd [#allocation7], %s174
          %s176 = sshll.u32 [#allocation6], 4
          %s177 = int_to_ptr.vmem [resolvable:$true] %s176
          %182 = dma.hbm_to_vmem [thread:$0]  %s1, 73728, %s177, [#allocation7], 256, 256, 16
        $region16: #{tpu_custom_call.1} parent=11 // pred_fallthru
          _
        // Predicated region
        $region17: #{tpu_custom_call.1} parent=11 // pred_check
          %p183 = pneg %p87
        $region18: #{tpu_custom_call.1} parent=11 // pred_check_branch
          %185 = sbr.rel (%p183) target = $region20
        $region19: #{tpu_custom_call.1} parent=11 // pred_region
          %s187 = ssub.s32 64, 64
          %188 = vsyncadd [#allocation7], %s187
          %s190 = sshll.u32 [#allocation8], 4
          %s191 = int_to_ptr.vmem [resolvable:$true] %s190
          %193 = dma.hbm_to_vmem [thread:$0]  %s2, 64, %s191, [#allocation7]
        $region20: #{tpu_custom_call.1} parent=11 // pred_fallthru
          _
        // Predicated region
        $region21: #{tpu_custom_call.1} parent=11 // pred_check
          %p194 = pneg %p108
        $region22: #{tpu_custom_call.1} parent=11 // pred_check_branch
          %196 = sbr.rel (%p194) target = $region24
        $region23: #{tpu_custom_call.1} parent=11 // pred_region
          %s198 = ssub.s32 8192, 8192
          %199 = vsyncadd [#allocation10], %s198
          %s200 = sshll.u32 [#allocation9], 4
          %s201 = int_to_ptr.vmem [resolvable:$true] %s200
          %206 = dma.hbm_to_vmem [thread:$0]  %s3, 8192, %s201, [#allocation10], 128, 128, 8
        $region24: #{tpu_custom_call.1} parent=11 // pred_fallthru
          _
        // Predicated region
        $region25: #{tpu_custom_call.1} parent=11 // pred_check
          %p207 = pneg %p129
        $region26: #{tpu_custom_call.1} parent=11 // pred_check_branch
          %209 = sbr.rel (%p207) target = $region28
        $region27: #{tpu_custom_call.1} parent=11 // pred_region
          %s211 = ssub.s32 16, 16
          %212 = vsyncadd [#allocation10], %s211
          %s214 = sshll.u32 [#allocation11], 4
          %s215 = int_to_ptr.vmem [resolvable:$true] %s214
          %217 = dma.hbm_to_vmem [thread:$0]  %s4, 16, %s215, [#allocation10]
        $region28: #{tpu_custom_call.1} parent=11 // pred_fallthru
          _
      $region12: #{tpu_custom_call.1} parent=5 // pred_fallthru
        _
      %p218 = scmp.lt.s32.totalorder %s19, 2
      // Predicated region
      $region29: #{tpu_custom_call.1} parent=5 // pred_check
        %p219 = pneg %p218
      $region30: #{tpu_custom_call.1} parent=5 // pred_check_branch
        %221 = sbr.rel (%p219) target = $region32
      $region31: #{tpu_custom_call.1} parent=5 // pred_region
        // Predicated region
        $region33: #{tpu_custom_call.1} parent=31 // pred_check
          %p222 = pneg %p39
        $region34: #{tpu_custom_call.1} parent=31 // pred_check_branch
          %224 = sbr.rel (%p222) target = $region36
        $region35: #{tpu_custom_call.1} parent=31 // pred_region
          %s225 = sand.u32 %s29, 1
          %s226 = scalar_lea.sflag [#allocation4], %s225
          %s227 = sand.u32 %s29, 1
          %s228 = smul.addr %s227, 288
          %s229 = scalar_lea.vmem [#allocation3], %s228
          %s230 = smul.u32 2, %s19
          %s232 = ssub.s32 4608, 4608
          %233 = vsyncadd %s226, %s232
          %s234 = smul.addr %s230, 18
          %s235 = smul.addr %s234, 128
          %s236 = scalar_lea.hbm %s0, %s235
          %s237 = sshll.u32 %s229, 4
          %s238 = int_to_ptr.vmem [resolvable:$true] %s237
          %243 = dma.hbm_to_vmem [thread:$0]  %s236, 4608, %s238, %s226, 2304, 2304, 144
        $region36: #{tpu_custom_call.1} parent=31 // pred_fallthru
          _
      $region32: #{tpu_custom_call.1} parent=5 // pred_fallthru
        _
      %p244 = scmp.le.s32.totalorder 1, %s19
      %p245 = scmp.lt.s32.totalorder %s19, 3
      %p246 = pnand %p244, %p245
      %p247 = pneg %p246
      // Predicated region
      $region37: #{tpu_custom_call.1} parent=5 // pred_check
        _
      $region38: #{tpu_custom_call.1} parent=5 // pred_check_branch
        %249 = sbr.rel (%p246) target = $region40
      $region39: #{tpu_custom_call.1} parent=5 // pred_region
        %s250 = ssub.s32 %s19, 1
        %s251 = sand.u32 %s32, 1
        %s252 = scalar_lea.sflag [#allocation4], %s251
        %s253 = sand.u32 %s32, 1
        %s254 = smul.addr %s253, 288
        %s255 = scalar_lea.vmem [#allocation3], %s254
        // Predicated region
        $region41: #{tpu_custom_call.1} parent=39 // pred_check
          %p256 = pneg %p45
        $region42: #{tpu_custom_call.1} parent=39 // pred_check_branch
          %258 = sbr.rel (%p256) target = $region44
        $region43: #{tpu_custom_call.1} parent=39 // pred_region
          %259 = dma.done %s252, 4608
        $region44: #{tpu_custom_call.1} parent=39 // pred_fallthru
          _
        // Predicated region
        $region45: #{tpu_custom_call.1} parent=39 // pred_check
          %p260 = pneg %p66
        $region46: #{tpu_custom_call.1} parent=39 // pred_check_branch
          %262 = sbr.rel (%p260) target = $region48
        $region47: #{tpu_custom_call.1} parent=39 // pred_region
          %263 = dma.done [#allocation7], 73728
        $region48: #{tpu_custom_call.1} parent=39 // pred_fallthru
          _
        // Predicated region
        $region49: #{tpu_custom_call.1} parent=39 // pred_check
          %p264 = pneg %p87
        $region50: #{tpu_custom_call.1} parent=39 // pred_check_branch
          %266 = sbr.rel (%p264) target = $region52
        $region51: #{tpu_custom_call.1} parent=39 // pred_region
          %267 = dma.done [#allocation7], 64
        $region52: #{tpu_custom_call.1} parent=39 // pred_fallthru
          _
        // Predicated region
        $region53: #{tpu_custom_call.1} parent=39 // pred_check
          %p268 = pneg %p108
        $region54: #{tpu_custom_call.1} parent=39 // pred_check_branch
          %270 = sbr.rel (%p268) target = $region56
        $region55: #{tpu_custom_call.1} parent=39 // pred_region
          %271 = dma.done [#allocation10], 8192
        $region56: #{tpu_custom_call.1} parent=39 // pred_fallthru
          _
        // Predicated region
        $region57: #{tpu_custom_call.1} parent=39 // pred_check
          %p272 = pneg %p129
        $region58: #{tpu_custom_call.1} parent=39 // pred_check_branch
          %274 = sbr.rel (%p272) target = $region60
        $region59: #{tpu_custom_call.1} parent=39 // pred_region
          %275 = dma.done [#allocation10], 16
        $region60: #{tpu_custom_call.1} parent=39 // pred_fallthru
          _
        %s276 = sand.u32 %s32, 1
        %s277 = scalar_lea.sflag [#allocation4], %s276
        %s278 = sand.u32 %s32, 1
        %s279 = smul.addr %s278, 288
        %s280 = scalar_lea.vmem [#allocation3], %s279
        %p281 = pneg %p45
        %p282 = pneg %p42
        %p283 = pneg %p66
        %p284 = pneg %p63
        %p285 = pneg %p87
        %p286 = pneg %p84
        %p287 = pneg %p108
        %p288 = pneg %p105
        %p289 = pneg %p129
        %p290 = pneg %p126
        %p291 = pneg %p155
        %p292 = pneg %p152
        %s293 = sand.u32 %s142, 1
        %s294 = scalar_lea.sflag [#allocation5], %s293
        %s295 = sand.u32 %s142, 1
        %s296 = smul.addr %s295, 16
        %s297 = scalar_lea.vmem [#allocation12], %s296
        %s298 = smul.u32 2, %s24
        %s299 = smul.u32 2, %s24
        %v300 = vld [vmem:[%s255] sm:$0xff]
        %v301 = vld [vmem:[%s255 + $0x8] sm:$0xff]
        %v302 = vld [vmem:[%s255 + $0x10] sm:$0xff]
        %v303 = vld [vmem:[%s255 + $0x18] sm:$0xff]
        %v304 = vld [vmem:[%s255 + $0x20] sm:$0xff]
        %v305 = vld [vmem:[%s255 + $0x28] sm:$0xff]
        %v306 = vld [vmem:[%s255 + $0x30] sm:$0xff]
        %v307 = vld [vmem:[%s255 + $0x38] sm:$0xff]
        %v308 = vld [vmem:[%s255 + $0x40] sm:$0xff]
        %v309 = vld [vmem:[%s255 + $0x48] sm:$0xff]
        %v310 = vld [vmem:[%s255 + $0x50] sm:$0xff]
        %v311 = vld [vmem:[%s255 + $0x58] sm:$0xff]
        %v312 = vld [vmem:[%s255 + $0x60] sm:$0xff]
        %v313 = vld [vmem:[%s255 + $0x68] sm:$0xff]
        %v314 = vld [vmem:[%s255 + $0x70] sm:$0xff]
        %v315 = vld [vmem:[%s255 + $0x78] sm:$0xff]
        %v316 = vld [vmem:[%s255 + $0x80] sm:$0xff]
        %v317 = vld [vmem:[%s255 + $0x88] sm:$0xff]
        %v318 = vld [vmem:[%s255 + $0x90] sm:$0xff]
        %v319 = vld [vmem:[%s255 + $0x98] sm:$0xff]
        %v320 = vld [vmem:[%s255 + $0xa0] sm:$0xff]
        %v321 = vld [vmem:[%s255 + $0xa8] sm:$0xff]
        %v322 = vld [vmem:[%s255 + $0xb0] sm:$0xff]
        %v323 = vld [vmem:[%s255 + $0xb8] sm:$0xff]
        %v324 = vld [vmem:[%s255 + $0xc0] sm:$0xff]
        %v325 = vld [vmem:[%s255 + $0xc8] sm:$0xff]
        %v326 = vld [vmem:[%s255 + $0xd0] sm:$0xff]
        %v327 = vld [vmem:[%s255 + $0xd8] sm:$0xff]
        %v328 = vld [vmem:[%s255 + $0xe0] sm:$0xff]
        %v329 = vld [vmem:[%s255 + $0xe8] sm:$0xff]
        %v330 = vld [vmem:[%s255 + $0xf0] sm:$0xff]
        %v331 = vld [vmem:[%s255 + $0xf8] sm:$0xff]
        %v332 = vld [vmem:[%s255 + $0x100] sm:$0xff]
        %v333 = vld [vmem:[%s255 + $0x108] sm:$0xff]
        %v334 = vld [vmem:[%s255 + $0x110] sm:$0xff]
        %v335 = vld [vmem:[%s255 + $0x118] sm:$0xff]
        %v336 = vpack.c.bf16 %v318, %v300
        %v337 = vpack.c.bf16 %v319, %v301
        %v338 = vpack.c.bf16 %v320, %v302
        %v339 = vpack.c.bf16 %v321, %v303
        %v340 = vpack.c.bf16 %v322, %v304
        %v341 = vpack.c.bf16 %v323, %v305
        %v342 = vpack.c.bf16 %v324, %v306
        %v343 = vpack.c.bf16 %v325, %v307
        %v344 = vpack.c.bf16 %v326, %v308
        %v345 = vpack.c.bf16 %v327, %v309
        %v346 = vpack.c.bf16 %v328, %v310
        %v347 = vpack.c.bf16 %v329, %v311
        %v348 = vpack.c.bf16 %v330, %v312
        %v349 = vpack.c.bf16 %v331, %v313
        %v350 = vpack.c.bf16 %v332, %v314
        %v351 = vpack.c.bf16 %v333, %v315
        %v352 = vpack.c.bf16 %v334, %v316
        %v353 = vpack.c.bf16 %v335, %v317
        %v354 = vld [vmem:[#allocation6] sm:$0xff]
        %v355 = vld [vmem:[#allocation6 + $0x8] sm:$0xff]
        %v356 = vld [vmem:[#allocation6 + $0x10] sm:$0xff]
        %v357 = vld [vmem:[#allocation6 + $0x18] sm:$0xff]
        %v358 = vld [vmem:[#allocation6 + $0x20] sm:$0xff]
        %v359 = vld [vmem:[#allocation6 + $0x28] sm:$0xff]
        %v360 = vld [vmem:[#allocation6 + $0x30] sm:$0xff]
        %v361 = vld [vmem:[#allocation6 + $0x38] sm:$0xff]
        %v362 = vld [vmem:[#allocation6 + $0x40] sm:$0xff]
        %v363 = vld [vmem:[#allocation6 + $0x48] sm:$0xff]
        %v364 = vld [vmem:[#allocation6 + $0x50] sm:$0xff]
        %v365 = vld [vmem:[#allocation6 + $0x58] sm:$0xff]
        %v366 = vld [vmem:[#allocation6 + $0x60] sm:$0xff]
        %v367 = vld [vmem:[#allocation6 + $0x68] sm:$0xff]
        %v368 = vld [vmem:[#allocation6 + $0x70] sm:$0xff]
        %v369 = vld [vmem:[#allocation6 + $0x78] sm:$0xff]
        %v370 = vld [vmem:[#allocation6 + $0x80] sm:$0xff]
        %v371 = vld [vmem:[#allocation6 + $0x88] sm:$0xff]
        %v372 = vld [vmem:[#allocation6 + $0x90] sm:$0xff]
        %v373 = vld [vmem:[#allocation6 + $0x98] sm:$0xff]
        %v374 = vld [vmem:[#allocation6 + $0xa0] sm:$0xff]
        %v375 = vld [vmem:[#allocation6 + $0xa8] sm:$0xff]
        %v376 = vld [vmem:[#allocation6 + $0xb0] sm:$0xff]
        %v377 = vld [vmem:[#allocation6 + $0xb8] sm:$0xff]
        %v378 = vld [vmem:[#allocation6 + $0xc0] sm:$0xff]
        %v379 = vld [vmem:[#allocation6 + $0xc8] sm:$0xff]
        %v380 = vld [vmem:[#allocation6 + $0xd0] sm:$0xff]
        %v381 = vld [vmem:[#allocation6 + $0xd8] sm:$0xff]
        %v382 = vld [vmem:[#allocation6 + $0xe0] sm:$0xff]
        %v383 = vld [vmem:[#allocation6 + $0xe8] sm:$0xff]
        %v384 = vld [vmem:[#allocation6 + $0xf0] sm:$0xff]
        %v385 = vld [vmem:[#allocation6 + $0xf8] sm:$0xff]
        %v386 = vld [vmem:[#allocation6 + $0x100] sm:$0xff]
        %v387 = vld [vmem:[#allocation6 + $0x108] sm:$0xff]
        %v388 = vld [vmem:[#allocation6 + $0x110] sm:$0xff]
        %v389 = vld [vmem:[#allocation6 + $0x118] sm:$0xff]
        %v390 = vld [vmem:[#allocation6 + $0x120] sm:$0xff]
        %v391 = vld [vmem:[#allocation6 + $0x128] sm:$0xff]
        %v392 = vld [vmem:[#allocation6 + $0x130] sm:$0xff]
        %v393 = vld [vmem:[#allocation6 + $0x138] sm:$0xff]
        %v394 = vld [vmem:[#allocation6 + $0x140] sm:$0xff]
        %v395 = vld [vmem:[#allocation6 + $0x148] sm:$0xff]
        %v396 = vld [vmem:[#allocation6 + $0x150] sm:$0xff]
        %v397 = vld [vmem:[#allocation6 + $0x158] sm:$0xff]
        %v398 = vld [vmem:[#allocation6 + $0x160] sm:$0xff]
        %v399 = vld [vmem:[#allocation6 + $0x168] sm:$0xff]
        %v400 = vld [vmem:[#allocation6 + $0x170] sm:$0xff]
        %v401 = vld [vmem:[#allocation6 + $0x178] sm:$0xff]
        %v402 = vld [vmem:[#allocation6 + $0x180] sm:$0xff]
        %v403 = vld [vmem:[#allocation6 + $0x188] sm:$0xff]
        %v404 = vld [vmem:[#allocation6 + $0x190] sm:$0xff]
        %v405 = vld [vmem:[#allocation6 + $0x198] sm:$0xff]
        %v406 = vld [vmem:[#allocation6 + $0x1a0] sm:$0xff]
        %v407 = vld [vmem:[#allocation6 + $0x1a8] sm:$0xff]
        %v408 = vld [vmem:[#allocation6 + $0x1b0] sm:$0xff]
        %v409 = vld [vmem:[#allocation6 + $0x1b8] sm:$0xff]
        %v410 = vld [vmem:[#allocation6 + $0x1c0] sm:$0xff]
        %v411 = vld [vmem:[#allocation6 + $0x1c8] sm:$0xff]
        %v412 = vld [vmem:[#allocation6 + $0x1d0] sm:$0xff]
        %v413 = vld [vmem:[#allocation6 + $0x1d8] sm:$0xff]
        %v414 = vld [vmem:[#allocation6 + $0x1e0] sm:$0xff]
        %v415 = vld [vmem:[#allocation6 + $0x1e8] sm:$0xff]
        %v416 = vld [vmem:[#allocation6 + $0x1f0] sm:$0xff]
        %v417 = vld [vmem:[#allocation6 + $0x1f8] sm:$0xff]
        %v418 = vld [vmem:[#allocation6 + $0x200] sm:$0xff]
        %v419 = vld [vmem:[#allocation6 + $0x208] sm:$0xff]
        %v420 = vld [vmem:[#allocation6 + $0x210] sm:$0xff]
        %v421 = vld [vmem:[#allocation6 + $0x218] sm:$0xff]
        %v422 = vld [vmem:[#allocation6 + $0x220] sm:$0xff]
        %v423 = vld [vmem:[#allocation6 + $0x228] sm:$0xff]
        %v424 = vld [vmem:[#allocation6 + $0x230] sm:$0xff]
        %v425 = vld [vmem:[#allocation6 + $0x238] sm:$0xff]
        %v426 = vld [vmem:[#allocation6 + $0x240] sm:$0xff]
        %v427 = vld [vmem:[#allocation6 + $0x248] sm:$0xff]
        %v428 = vld [vmem:[#allocation6 + $0x250] sm:$0xff]
        %v429 = vld [vmem:[#allocation6 + $0x258] sm:$0xff]
        %v430 = vld [vmem:[#allocation6 + $0x260] sm:$0xff]
        %v431 = vld [vmem:[#allocation6 + $0x268] sm:$0xff]
        %v432 = vld [vmem:[#allocation6 + $0x270] sm:$0xff]
        %v433 = vld [vmem:[#allocation6 + $0x278] sm:$0xff]
        %v434 = vld [vmem:[#allocation6 + $0x280] sm:$0xff]
        %v435 = vld [vmem:[#allocation6 + $0x288] sm:$0xff]
        %v436 = vld [vmem:[#allocation6 + $0x290] sm:$0xff]
        %v437 = vld [vmem:[#allocation6 + $0x298] sm:$0xff]
        %v438 = vld [vmem:[#allocation6 + $0x2a0] sm:$0xff]
        %v439 = vld [vmem:[#allocation6 + $0x2a8] sm:$0xff]
        %v440 = vld [vmem:[#allocation6 + $0x2b0] sm:$0xff]
        %v441 = vld [vmem:[#allocation6 + $0x2b8] sm:$0xff]
        %v442 = vld [vmem:[#allocation6 + $0x2c0] sm:$0xff]
        %v443 = vld [vmem:[#allocation6 + $0x2c8] sm:$0xff]
        %v444 = vld [vmem:[#allocation6 + $0x2d0] sm:$0xff]
        %v445 = vld [vmem:[#allocation6 + $0x2d8] sm:$0xff]
        %v446 = vld [vmem:[#allocation6 + $0x2e0] sm:$0xff]
        %v447 = vld [vmem:[#allocation6 + $0x2e8] sm:$0xff]
        %v448 = vld [vmem:[#allocation6 + $0x2f0] sm:$0xff]
        %v449 = vld [vmem:[#allocation6 + $0x2f8] sm:$0xff]
        %v450 = vld [vmem:[#allocation6 + $0x300] sm:$0xff]
        %v451 = vld [vmem:[#allocation6 + $0x308] sm:$0xff]
        %v452 = vld [vmem:[#allocation6 + $0x310] sm:$0xff]
        %v453 = vld [vmem:[#allocation6 + $0x318] sm:$0xff]
        %v454 = vld [vmem:[#allocation6 + $0x320] sm:$0xff]
        %v455 = vld [vmem:[#allocation6 + $0x328] sm:$0xff]
        %v456 = vld [vmem:[#allocation6 + $0x330] sm:$0xff]
        %v457 = vld [vmem:[#allocation6 + $0x338] sm:$0xff]
        %v458 = vld [vmem:[#allocation6 + $0x340] sm:$0xff]
        %v459 = vld [vmem:[#allocation6 + $0x348] sm:$0xff]
        %v460 = vld [vmem:[#allocation6 + $0x350] sm:$0xff]
        %v461 = vld [vmem:[#allocation6 + $0x358] sm:$0xff]
        %v462 = vld [vmem:[#allocation6 + $0x360] sm:$0xff]
        %v463 = vld [vmem:[#allocation6 + $0x368] sm:$0xff]
        %v464 = vld [vmem:[#allocation6 + $0x370] sm:$0xff]
        %v465 = vld [vmem:[#allocation6 + $0x378] sm:$0xff]
        %v466 = vld [vmem:[#allocation6 + $0x380] sm:$0xff]
        %v467 = vld [vmem:[#allocation6 + $0x388] sm:$0xff]
        %v468 = vld [vmem:[#allocation6 + $0x390] sm:$0xff]
        %v469 = vld [vmem:[#allocation6 + $0x398] sm:$0xff]
        %v470 = vld [vmem:[#allocation6 + $0x3a0] sm:$0xff]
        %v471 = vld [vmem:[#allocation6 + $0x3a8] sm:$0xff]
        %v472 = vld [vmem:[#allocation6 + $0x3b0] sm:$0xff]
        %v473 = vld [vmem:[#allocation6 + $0x3b8] sm:$0xff]
        %v474 = vld [vmem:[#allocation6 + $0x3c0] sm:$0xff]
        %v475 = vld [vmem:[#allocation6 + $0x3c8] sm:$0xff]
        %v476 = vld [vmem:[#allocation6 + $0x3d0] sm:$0xff]
        %v477 = vld [vmem:[#allocation6 + $0x3d8] sm:$0xff]
        %v478 = vld [vmem:[#allocation6 + $0x3e0] sm:$0xff]
        %v479 = vld [vmem:[#allocation6 + $0x3e8] sm:$0xff]
        %v480 = vld [vmem:[#allocation6 + $0x3f0] sm:$0xff]
        %v481 = vld [vmem:[#allocation6 + $0x3f8] sm:$0xff]
        %v482 = vld [vmem:[#allocation6 + $0x400] sm:$0xff]
        %v483 = vld [vmem:[#allocation6 + $0x408] sm:$0xff]
        %v484 = vld [vmem:[#allocation6 + $0x410] sm:$0xff]
        %v485 = vld [vmem:[#allocation6 + $0x418] sm:$0xff]
        %v486 = vld [vmem:[#allocation6 + $0x420] sm:$0xff]
        %v487 = vld [vmem:[#allocation6 + $0x428] sm:$0xff]
        %v488 = vld [vmem:[#allocation6 + $0x430] sm:$0xff]
        %v489 = vld [vmem:[#allocation6 + $0x438] sm:$0xff]
        %v490 = vld [vmem:[#allocation6 + $0x440] sm:$0xff]
        %v491 = vld [vmem:[#allocation6 + $0x448] sm:$0xff]
        %v492 = vld [vmem:[#allocation6 + $0x450] sm:$0xff]
        %v493 = vld [vmem:[#allocation6 + $0x458] sm:$0xff]
        %v494 = vld [vmem:[#allocation6 + $0x460] sm:$0xff]
        %v495 = vld [vmem:[#allocation6 + $0x468] sm:$0xff]
        %v496 = vld [vmem:[#allocation6 + $0x470] sm:$0xff]
        %v497 = vld [vmem:[#allocation6 + $0x478] sm:$0xff]
        %v498 = vld [vmem:[#allocation6 + $0x480] sm:$0xff]
        %v499 = vld [vmem:[#allocation6 + $0x488] sm:$0xff]
        %v500 = vld [vmem:[#allocation6 + $0x490] sm:$0xff]
        %v501 = vld [vmem:[#allocation6 + $0x498] sm:$0xff]
        %v502 = vld [vmem:[#allocation6 + $0x4a0] sm:$0xff]
        %v503 = vld [vmem:[#allocation6 + $0x4a8] sm:$0xff]
        %v504 = vld [vmem:[#allocation6 + $0x4b0] sm:$0xff]
        %v505 = vld [vmem:[#allocation6 + $0x4b8] sm:$0xff]
        %v506 = vld [vmem:[#allocation6 + $0x4c0] sm:$0xff]
        %v507 = vld [vmem:[#allocation6 + $0x4c8] sm:$0xff]
        %v508 = vld [vmem:[#allocation6 + $0x4d0] sm:$0xff]
        %v509 = vld [vmem:[#allocation6 + $0x4d8] sm:$0xff]
        %v510 = vld [vmem:[#allocation6 + $0x4e0] sm:$0xff]
        %v511 = vld [vmem:[#allocation6 + $0x4e8] sm:$0xff]
        %v512 = vld [vmem:[#allocation6 + $0x4f0] sm:$0xff]
        %v513 = vld [vmem:[#allocation6 + $0x4f8] sm:$0xff]
        %v514 = vld [vmem:[#allocation6 + $0x500] sm:$0xff]
        %v515 = vld [vmem:[#allocation6 + $0x508] sm:$0xff]
        %v516 = vld [vmem:[#allocation6 + $0x510] sm:$0xff]
        %v517 = vld [vmem:[#allocation6 + $0x518] sm:$0xff]
        %v518 = vld [vmem:[#allocation6 + $0x520] sm:$0xff]
        %v519 = vld [vmem:[#allocation6 + $0x528] sm:$0xff]
        %v520 = vld [vmem:[#allocation6 + $0x530] sm:$0xff]
        %v521 = vld [vmem:[#allocation6 + $0x538] sm:$0xff]
        %v522 = vld [vmem:[#allocation6 + $0x540] sm:$0xff]
        %v523 = vld [vmem:[#allocation6 + $0x548] sm:$0xff]
        %v524 = vld [vmem:[#allocation6 + $0x550] sm:$0xff]
        %v525 = vld [vmem:[#allocation6 + $0x558] sm:$0xff]
        %v526 = vld [vmem:[#allocation6 + $0x560] sm:$0xff]
        %v527 = vld [vmem:[#allocation6 + $0x568] sm:$0xff]
        %v528 = vld [vmem:[#allocation6 + $0x570] sm:$0xff]
        %v529 = vld [vmem:[#allocation6 + $0x578] sm:$0xff]
        %v530 = vld [vmem:[#allocation6 + $0x580] sm:$0xff]
        %v531 = vld [vmem:[#allocation6 + $0x588] sm:$0xff]
        %v532 = vld [vmem:[#allocation6 + $0x590] sm:$0xff]
        %v533 = vld [vmem:[#allocation6 + $0x598] sm:$0xff]
        %v534 = vld [vmem:[#allocation6 + $0x5a0] sm:$0xff]
        %v535 = vld [vmem:[#allocation6 + $0x5a8] sm:$0xff]
        %v536 = vld [vmem:[#allocation6 + $0x5b0] sm:$0xff]
        %v537 = vld [vmem:[#allocation6 + $0x5b8] sm:$0xff]
        %v538 = vld [vmem:[#allocation6 + $0x5c0] sm:$0xff]
        %v539 = vld [vmem:[#allocation6 + $0x5c8] sm:$0xff]
        %v540 = vld [vmem:[#allocation6 + $0x5d0] sm:$0xff]
        %v541 = vld [vmem:[#allocation6 + $0x5d8] sm:$0xff]
        %v542 = vld [vmem:[#allocation6 + $0x5e0] sm:$0xff]
        %v543 = vld [vmem:[#allocation6 + $0x5e8] sm:$0xff]
        %v544 = vld [vmem:[#allocation6 + $0x5f0] sm:$0xff]
        %v545 = vld [vmem:[#allocation6 + $0x5f8] sm:$0xff]
        %v546 = vld [vmem:[#allocation6 + $0x600] sm:$0xff]
        %v547 = vld [vmem:[#allocation6 + $0x608] sm:$0xff]
        %v548 = vld [vmem:[#allocation6 + $0x610] sm:$0xff]
        %v549 = vld [vmem:[#allocation6 + $0x618] sm:$0xff]
        %v550 = vld [vmem:[#allocation6 + $0x620] sm:$0xff]
        %v551 = vld [vmem:[#allocation6 + $0x628] sm:$0xff]
        %v552 = vld [vmem:[#allocation6 + $0x630] sm:$0xff]
        %v553 = vld [vmem:[#allocation6 + $0x638] sm:$0xff]
        %v554 = vld [vmem:[#allocation6 + $0x640] sm:$0xff]
        %v555 = vld [vmem:[#allocation6 + $0x648] sm:$0xff]
        %v556 = vld [vmem:[#allocation6 + $0x650] sm:$0xff]
        %v557 = vld [vmem:[#allocation6 + $0x658] sm:$0xff]
        %v558 = vld [vmem:[#allocation6 + $0x660] sm:$0xff]
        %v559 = vld [vmem:[#allocation6 + $0x668] sm:$0xff]
        %v560 = vld [vmem:[#allocation6 + $0x670] sm:$0xff]
        %v561 = vld [vmem:[#allocation6 + $0x678] sm:$0xff]
        %v562 = vld [vmem:[#allocation6 + $0x680] sm:$0xff]
        %v563 = vld [vmem:[#allocation6 + $0x688] sm:$0xff]
        %v564 = vld [vmem:[#allocation6 + $0x690] sm:$0xff]
        %v565 = vld [vmem:[#allocation6 + $0x698] sm:$0xff]
        %v566 = vld [vmem:[#allocation6 + $0x6a0] sm:$0xff]
        %v567 = vld [vmem:[#allocation6 + $0x6a8] sm:$0xff]
        %v568 = vld [vmem:[#allocation6 + $0x6b0] sm:$0xff]
        %v569 = vld [vmem:[#allocation6 + $0x6b8] sm:$0xff]
        %v570 = vld [vmem:[#allocation6 + $0x6c0] sm:$0xff]
        %v571 = vld [vmem:[#allocation6 + $0x6c8] sm:$0xff]
        %v572 = vld [vmem:[#allocation6 + $0x6d0] sm:$0xff]
        %v573 = vld [vmem:[#allocation6 + $0x6d8] sm:$0xff]
        %v574 = vld [vmem:[#allocation6 + $0x6e0] sm:$0xff]
        %v575 = vld [vmem:[#allocation6 + $0x6e8] sm:$0xff]
        %v576 = vld [vmem:[#allocation6 + $0x6f0] sm:$0xff]
        %v577 = vld [vmem:[#allocation6 + $0x6f8] sm:$0xff]
        %v578 = vld [vmem:[#allocation6 + $0x700] sm:$0xff]
        %v579 = vld [vmem:[#allocation6 + $0x708] sm:$0xff]
        %v580 = vld [vmem:[#allocation6 + $0x710] sm:$0xff]
        %v581 = vld [vmem:[#allocation6 + $0x718] sm:$0xff]
        %v582 = vld [vmem:[#allocation6 + $0x720] sm:$0xff]
        %v583 = vld [vmem:[#allocation6 + $0x728] sm:$0xff]
        %v584 = vld [vmem:[#allocation6 + $0x730] sm:$0xff]
        %v585 = vld [vmem:[#allocation6 + $0x738] sm:$0xff]
        %v586 = vld [vmem:[#allocation6 + $0x740] sm:$0xff]
        %v587 = vld [vmem:[#allocation6 + $0x748] sm:$0xff]
        %v588 = vld [vmem:[#allocation6 + $0x750] sm:$0xff]
        %v589 = vld [vmem:[#allocation6 + $0x758] sm:$0xff]
        %v590 = vld [vmem:[#allocation6 + $0x760] sm:$0xff]
        %v591 = vld [vmem:[#allocation6 + $0x768] sm:$0xff]
        %v592 = vld [vmem:[#allocation6 + $0x770] sm:$0xff]
        %v593 = vld [vmem:[#allocation6 + $0x778] sm:$0xff]
        %v594 = vld [vmem:[#allocation6 + $0x780] sm:$0xff]
        %v595 = vld [vmem:[#allocation6 + $0x788] sm:$0xff]
        %v596 = vld [vmem:[#allocation6 + $0x790] sm:$0xff]
        %v597 = vld [vmem:[#allocation6 + $0x798] sm:$0xff]
        %v598 = vld [vmem:[#allocation6 + $0x7a0] sm:$0xff]
        %v599 = vld [vmem:[#allocation6 + $0x7a8] sm:$0xff]
        %v600 = vld [vmem:[#allocation6 + $0x7b0] sm:$0xff]
        %v601 = vld [vmem:[#allocation6 + $0x7b8] sm:$0xff]
        %v602 = vld [vmem:[#allocation6 + $0x7c0] sm:$0xff]
        %v603 = vld [vmem:[#allocation6 + $0x7c8] sm:$0xff]
        %v604 = vld [vmem:[#allocation6 + $0x7d0] sm:$0xff]
        %v605 = vld [vmem:[#allocation6 + $0x7d8] sm:$0xff]
        %v606 = vld [vmem:[#allocation6 + $0x7e0] sm:$0xff]
        %v607 = vld [vmem:[#allocation6 + $0x7e8] sm:$0xff]
        %v608 = vld [vmem:[#allocation6 + $0x7f0] sm:$0xff]
        %v609 = vld [vmem:[#allocation6 + $0x7f8] sm:$0xff]
        %v610 = vld [vmem:[#allocation6 + $0x800] sm:$0xff]
        %v611 = vld [vmem:[#allocation6 + $0x808] sm:$0xff]
        %v612 = vld [vmem:[#allocation6 + $0x810] sm:$0xff]
        %v613 = vld [vmem:[#allocation6 + $0x818] sm:$0xff]
        %v614 = vld [vmem:[#allocation6 + $0x820] sm:$0xff]
        %v615 = vld [vmem:[#allocation6 + $0x828] sm:$0xff]
        %v616 = vld [vmem:[#allocation6 + $0x830] sm:$0xff]
        %v617 = vld [vmem:[#allocation6 + $0x838] sm:$0xff]
        %v618 = vld [vmem:[#allocation6 + $0x840] sm:$0xff]
        %v619 = vld [vmem:[#allocation6 + $0x848] sm:$0xff]
        %v620 = vld [vmem:[#allocation6 + $0x850] sm:$0xff]
        %v621 = vld [vmem:[#allocation6 + $0x858] sm:$0xff]
        %v622 = vld [vmem:[#allocation6 + $0x860] sm:$0xff]
        %v623 = vld [vmem:[#allocation6 + $0x868] sm:$0xff]
        %v624 = vld [vmem:[#allocation6 + $0x870] sm:$0xff]
        %v625 = vld [vmem:[#allocation6 + $0x878] sm:$0xff]
        %v626 = vld [vmem:[#allocation6 + $0x880] sm:$0xff]
        %v627 = vld [vmem:[#allocation6 + $0x888] sm:$0xff]
        %v628 = vld [vmem:[#allocation6 + $0x890] sm:$0xff]
        %v629 = vld [vmem:[#allocation6 + $0x898] sm:$0xff]
        %v630 = vld [vmem:[#allocation6 + $0x8a0] sm:$0xff]
        %v631 = vld [vmem:[#allocation6 + $0x8a8] sm:$0xff]
        %v632 = vld [vmem:[#allocation6 + $0x8b0] sm:$0xff]
        %v633 = vld [vmem:[#allocation6 + $0x8b8] sm:$0xff]
        %v634 = vld [vmem:[#allocation6 + $0x8c0] sm:$0xff]
        %v635 = vld [vmem:[#allocation6 + $0x8c8] sm:$0xff]
        %v636 = vld [vmem:[#allocation6 + $0x8d0] sm:$0xff]
        %v637 = vld [vmem:[#allocation6 + $0x8d8] sm:$0xff]
        %v638 = vld [vmem:[#allocation6 + $0x8e0] sm:$0xff]
        %v639 = vld [vmem:[#allocation6 + $0x8e8] sm:$0xff]
        %v640 = vld [vmem:[#allocation6 + $0x8f0] sm:$0xff]
        %v641 = vld [vmem:[#allocation6 + $0x8f8] sm:$0xff]
        %v642 = vld [vmem:[#allocation6 + $0x900] sm:$0xff]
        %v643 = vld [vmem:[#allocation6 + $0x908] sm:$0xff]
        %v644 = vld [vmem:[#allocation6 + $0x910] sm:$0xff]
        %v645 = vld [vmem:[#allocation6 + $0x918] sm:$0xff]
        %v646 = vld [vmem:[#allocation6 + $0x920] sm:$0xff]
        %v647 = vld [vmem:[#allocation6 + $0x928] sm:$0xff]
        %v648 = vld [vmem:[#allocation6 + $0x930] sm:$0xff]
        %v649 = vld [vmem:[#allocation6 + $0x938] sm:$0xff]
        %v650 = vld [vmem:[#allocation6 + $0x940] sm:$0xff]
        %v651 = vld [vmem:[#allocation6 + $0x948] sm:$0xff]
        %v652 = vld [vmem:[#allocation6 + $0x950] sm:$0xff]
        %v653 = vld [vmem:[#allocation6 + $0x958] sm:$0xff]
        %v654 = vld [vmem:[#allocation6 + $0x960] sm:$0xff]
        %v655 = vld [vmem:[#allocation6 + $0x968] sm:$0xff]
        %v656 = vld [vmem:[#allocation6 + $0x970] sm:$0xff]
        %v657 = vld [vmem:[#allocation6 + $0x978] sm:$0xff]
        %v658 = vld [vmem:[#allocation6 + $0x980] sm:$0xff]
        %v659 = vld [vmem:[#allocation6 + $0x988] sm:$0xff]
        %v660 = vld [vmem:[#allocation6 + $0x990] sm:$0xff]
        %v661 = vld [vmem:[#allocation6 + $0x998] sm:$0xff]
        %v662 = vld [vmem:[#allocation6 + $0x9a0] sm:$0xff]
        %v663 = vld [vmem:[#allocation6 + $0x9a8] sm:$0xff]
        %v664 = vld [vmem:[#allocation6 + $0x9b0] sm:$0xff]
        %v665 = vld [vmem:[#allocation6 + $0x9b8] sm:$0xff]
        %v666 = vld [vmem:[#allocation6 + $0x9c0] sm:$0xff]
        %v667 = vld [vmem:[#allocation6 + $0x9c8] sm:$0xff]
        %v668 = vld [vmem:[#allocation6 + $0x9d0] sm:$0xff]
        %v669 = vld [vmem:[#allocation6 + $0x9d8] sm:$0xff]
        %v670 = vld [vmem:[#allocation6 + $0x9e0] sm:$0xff]
        %v671 = vld [vmem:[#allocation6 + $0x9e8] sm:$0xff]
        %v672 = vld [vmem:[#allocation6 + $0x9f0] sm:$0xff]
        %v673 = vld [vmem:[#allocation6 + $0x9f8] sm:$0xff]
        %v674 = vld [vmem:[#allocation6 + $0xa00] sm:$0xff]
        %v675 = vld [vmem:[#allocation6 + $0xa08] sm:$0xff]
        %v676 = vld [vmem:[#allocation6 + $0xa10] sm:$0xff]
        %v677 = vld [vmem:[#allocation6 + $0xa18] sm:$0xff]
        %v678 = vld [vmem:[#allocation6 + $0xa20] sm:$0xff]
        %v679 = vld [vmem:[#allocation6 + $0xa28] sm:$0xff]
        %v680 = vld [vmem:[#allocation6 + $0xa30] sm:$0xff]
        %v681 = vld [vmem:[#allocation6 + $0xa38] sm:$0xff]
        %v682 = vld [vmem:[#allocation6 + $0xa40] sm:$0xff]
        %v683 = vld [vmem:[#allocation6 + $0xa48] sm:$0xff]
        %v684 = vld [vmem:[#allocation6 + $0xa50] sm:$0xff]
        %v685 = vld [vmem:[#allocation6 + $0xa58] sm:$0xff]
        %v686 = vld [vmem:[#allocation6 + $0xa60] sm:$0xff]
        %v687 = vld [vmem:[#allocation6 + $0xa68] sm:$0xff]
        %v688 = vld [vmem:[#allocation6 + $0xa70] sm:$0xff]
        %v689 = vld [vmem:[#allocation6 + $0xa78] sm:$0xff]
        %v690 = vld [vmem:[#allocation6 + $0xa80] sm:$0xff]
        %v691 = vld [vmem:[#allocation6 + $0xa88] sm:$0xff]
        %v692 = vld [vmem:[#allocation6 + $0xa90] sm:$0xff]
        %v693 = vld [vmem:[#allocation6 + $0xa98] sm:$0xff]
        %v694 = vld [vmem:[#allocation6 + $0xaa0] sm:$0xff]
        %v695 = vld [vmem:[#allocation6 + $0xaa8] sm:$0xff]
        %v696 = vld [vmem:[#allocation6 + $0xab0] sm:$0xff]
        %v697 = vld [vmem:[#allocation6 + $0xab8] sm:$0xff]
        %v698 = vld [vmem:[#allocation6 + $0xac0] sm:$0xff]
        %v699 = vld [vmem:[#allocation6 + $0xac8] sm:$0xff]
        %v700 = vld [vmem:[#allocation6 + $0xad0] sm:$0xff]
        %v701 = vld [vmem:[#allocation6 + $0xad8] sm:$0xff]
        %v702 = vld [vmem:[#allocation6 + $0xae0] sm:$0xff]
        %v703 = vld [vmem:[#allocation6 + $0xae8] sm:$0xff]
        %v704 = vld [vmem:[#allocation6 + $0xaf0] sm:$0xff]
        %v705 = vld [vmem:[#allocation6 + $0xaf8] sm:$0xff]
        %v706 = vld [vmem:[#allocation6 + $0xb00] sm:$0xff]
        %v707 = vld [vmem:[#allocation6 + $0xb08] sm:$0xff]
        %v708 = vld [vmem:[#allocation6 + $0xb10] sm:$0xff]
        %v709 = vld [vmem:[#allocation6 + $0xb18] sm:$0xff]
        %v710 = vld [vmem:[#allocation6 + $0xb20] sm:$0xff]
        %v711 = vld [vmem:[#allocation6 + $0xb28] sm:$0xff]
        %v712 = vld [vmem:[#allocation6 + $0xb30] sm:$0xff]
        %v713 = vld [vmem:[#allocation6 + $0xb38] sm:$0xff]
        %v714 = vld [vmem:[#allocation6 + $0xb40] sm:$0xff]
        %v715 = vld [vmem:[#allocation6 + $0xb48] sm:$0xff]
        %v716 = vld [vmem:[#allocation6 + $0xb50] sm:$0xff]
        %v717 = vld [vmem:[#allocation6 + $0xb58] sm:$0xff]
        %v718 = vld [vmem:[#allocation6 + $0xb60] sm:$0xff]
        %v719 = vld [vmem:[#allocation6 + $0xb68] sm:$0xff]
        %v720 = vld [vmem:[#allocation6 + $0xb70] sm:$0xff]
        %v721 = vld [vmem:[#allocation6 + $0xb78] sm:$0xff]
        %v722 = vld [vmem:[#allocation6 + $0xb80] sm:$0xff]
        %v723 = vld [vmem:[#allocation6 + $0xb88] sm:$0xff]
        %v724 = vld [vmem:[#allocation6 + $0xb90] sm:$0xff]
        %v725 = vld [vmem:[#allocation6 + $0xb98] sm:$0xff]
        %v726 = vld [vmem:[#allocation6 + $0xba0] sm:$0xff]
        %v727 = vld [vmem:[#allocation6 + $0xba8] sm:$0xff]
        %v728 = vld [vmem:[#allocation6 + $0xbb0] sm:$0xff]
        %v729 = vld [vmem:[#allocation6 + $0xbb8] sm:$0xff]
        %v730 = vld [vmem:[#allocation6 + $0xbc0] sm:$0xff]
        %v731 = vld [vmem:[#allocation6 + $0xbc8] sm:$0xff]
        %v732 = vld [vmem:[#allocation6 + $0xbd0] sm:$0xff]
        %v733 = vld [vmem:[#allocation6 + $0xbd8] sm:$0xff]
        %v734 = vld [vmem:[#allocation6 + $0xbe0] sm:$0xff]
        %v735 = vld [vmem:[#allocation6 + $0xbe8] sm:$0xff]
        %v736 = vld [vmem:[#allocation6 + $0xbf0] sm:$0xff]
        %v737 = vld [vmem:[#allocation6 + $0xbf8] sm:$0xff]
        %v738 = vld [vmem:[#allocation6 + $0xc00] sm:$0xff]
        %v739 = vld [vmem:[#allocation6 + $0xc08] sm:$0xff]
        %v740 = vld [vmem:[#allocation6 + $0xc10] sm:$0xff]
        %v741 = vld [vmem:[#allocation6 + $0xc18] sm:$0xff]
        %v742 = vld [vmem:[#allocation6 + $0xc20] sm:$0xff]
        %v743 = vld [vmem:[#allocation6 + $0xc28] sm:$0xff]
        %v744 = vld [vmem:[#allocation6 + $0xc30] sm:$0xff]
        %v745 = vld [vmem:[#allocation6 + $0xc38] sm:$0xff]
        %v746 = vld [vmem:[#allocation6 + $0xc40] sm:$0xff]
        %v747 = vld [vmem:[#allocation6 + $0xc48] sm:$0xff]
        %v748 = vld [vmem:[#allocation6 + $0xc50] sm:$0xff]
        %v749 = vld [vmem:[#allocation6 + $0xc58] sm:$0xff]
        %v750 = vld [vmem:[#allocation6 + $0xc60] sm:$0xff]
        %v751 = vld [vmem:[#allocation6 + $0xc68] sm:$0xff]
        %v752 = vld [vmem:[#allocation6 + $0xc70] sm:$0xff]
        %v753 = vld [vmem:[#allocation6 + $0xc78] sm:$0xff]
        %v754 = vld [vmem:[#allocation6 + $0xc80] sm:$0xff]
        %v755 = vld [vmem:[#allocation6 + $0xc88] sm:$0xff]
        %v756 = vld [vmem:[#allocation6 + $0xc90] sm:$0xff]
        %v757 = vld [vmem:[#allocation6 + $0xc98] sm:$0xff]
        %v758 = vld [vmem:[#allocation6 + $0xca0] sm:$0xff]
        %v759 = vld [vmem:[#allocation6 + $0xca8] sm:$0xff]
        %v760 = vld [vmem:[#allocation6 + $0xcb0] sm:$0xff]
        %v761 = vld [vmem:[#allocation6 + $0xcb8] sm:$0xff]
        %v762 = vld [vmem:[#allocation6 + $0xcc0] sm:$0xff]
        %v763 = vld [vmem:[#allocation6 + $0xcc8] sm:$0xff]
        %v764 = vld [vmem:[#allocation6 + $0xcd0] sm:$0xff]
        %v765 = vld [vmem:[#allocation6 + $0xcd8] sm:$0xff]
        %v766 = vld [vmem:[#allocation6 + $0xce0] sm:$0xff]
        %v767 = vld [vmem:[#allocation6 + $0xce8] sm:$0xff]
        %v768 = vld [vmem:[#allocation6 + $0xcf0] sm:$0xff]
        %v769 = vld [vmem:[#allocation6 + $0xcf8] sm:$0xff]
        %v770 = vld [vmem:[#allocation6 + $0xd00] sm:$0xff]
        %v771 = vld [vmem:[#allocation6 + $0xd08] sm:$0xff]
        %v772 = vld [vmem:[#allocation6 + $0xd10] sm:$0xff]
        %v773 = vld [vmem:[#allocation6 + $0xd18] sm:$0xff]
        %v774 = vld [vmem:[#allocation6 + $0xd20] sm:$0xff]
        %v775 = vld [vmem:[#allocation6 + $0xd28] sm:$0xff]
        %v776 = vld [vmem:[#allocation6 + $0xd30] sm:$0xff]
        %v777 = vld [vmem:[#allocation6 + $0xd38] sm:$0xff]
        %v778 = vld [vmem:[#allocation6 + $0xd40] sm:$0xff]
        %v779 = vld [vmem:[#allocation6 + $0xd48] sm:$0xff]
        %v780 = vld [vmem:[#allocation6 + $0xd50] sm:$0xff]
        %v781 = vld [vmem:[#allocation6 + $0xd58] sm:$0xff]
        %v782 = vld [vmem:[#allocation6 + $0xd60] sm:$0xff]
        %v783 = vld [vmem:[#allocation6 + $0xd68] sm:$0xff]
        %v784 = vld [vmem:[#allocation6 + $0xd70] sm:$0xff]
        %v785 = vld [vmem:[#allocation6 + $0xd78] sm:$0xff]
        %v786 = vld [vmem:[#allocation6 + $0xd80] sm:$0xff]
        %v787 = vld [vmem:[#allocation6 + $0xd88] sm:$0xff]
        %v788 = vld [vmem:[#allocation6 + $0xd90] sm:$0xff]
        %v789 = vld [vmem:[#allocation6 + $0xd98] sm:$0xff]
        %v790 = vld [vmem:[#allocation6 + $0xda0] sm:$0xff]
        %v791 = vld [vmem:[#allocation6 + $0xda8] sm:$0xff]
        %v792 = vld [vmem:[#allocation6 + $0xdb0] sm:$0xff]
        %v793 = vld [vmem:[#allocation6 + $0xdb8] sm:$0xff]
        %v794 = vld [vmem:[#allocation6 + $0xdc0] sm:$0xff]
        %v795 = vld [vmem:[#allocation6 + $0xdc8] sm:$0xff]
        %v796 = vld [vmem:[#allocation6 + $0xdd0] sm:$0xff]
        %v797 = vld [vmem:[#allocation6 + $0xdd8] sm:$0xff]
        %v798 = vld [vmem:[#allocation6 + $0xde0] sm:$0xff]
        %v799 = vld [vmem:[#allocation6 + $0xde8] sm:$0xff]
        %v800 = vld [vmem:[#allocation6 + $0xdf0] sm:$0xff]
        %v801 = vld [vmem:[#allocation6 + $0xdf8] sm:$0xff]
        %v802 = vld [vmem:[#allocation6 + $0xe00] sm:$0xff]
        %v803 = vld [vmem:[#allocation6 + $0xe08] sm:$0xff]
        %v804 = vld [vmem:[#allocation6 + $0xe10] sm:$0xff]
        %v805 = vld [vmem:[#allocation6 + $0xe18] sm:$0xff]
        %v806 = vld [vmem:[#allocation6 + $0xe20] sm:$0xff]
        %v807 = vld [vmem:[#allocation6 + $0xe28] sm:$0xff]
        %v808 = vld [vmem:[#allocation6 + $0xe30] sm:$0xff]
        %v809 = vld [vmem:[#allocation6 + $0xe38] sm:$0xff]
        %v810 = vld [vmem:[#allocation6 + $0xe40] sm:$0xff]
        %v811 = vld [vmem:[#allocation6 + $0xe48] sm:$0xff]
        %v812 = vld [vmem:[#allocation6 + $0xe50] sm:$0xff]
        %v813 = vld [vmem:[#allocation6 + $0xe58] sm:$0xff]
        %v814 = vld [vmem:[#allocation6 + $0xe60] sm:$0xff]
        %v815 = vld [vmem:[#allocation6 + $0xe68] sm:$0xff]
        %v816 = vld [vmem:[#allocation6 + $0xe70] sm:$0xff]
        %v817 = vld [vmem:[#allocation6 + $0xe78] sm:$0xff]
        %v818 = vld [vmem:[#allocation6 + $0xe80] sm:$0xff]
        %v819 = vld [vmem:[#allocation6 + $0xe88] sm:$0xff]
        %v820 = vld [vmem:[#allocation6 + $0xe90] sm:$0xff]
        %v821 = vld [vmem:[#allocation6 + $0xe98] sm:$0xff]
        %v822 = vld [vmem:[#allocation6 + $0xea0] sm:$0xff]
        %v823 = vld [vmem:[#allocation6 + $0xea8] sm:$0xff]
        %v824 = vld [vmem:[#allocation6 + $0xeb0] sm:$0xff]
        %v825 = vld [vmem:[#allocation6 + $0xeb8] sm:$0xff]
        %v826 = vld [vmem:[#allocation6 + $0xec0] sm:$0xff]
        %v827 = vld [vmem:[#allocation6 + $0xec8] sm:$0xff]
        %v828 = vld [vmem:[#allocation6 + $0xed0] sm:$0xff]
        %v829 = vld [vmem:[#allocation6 + $0xed8] sm:$0xff]
        %v830 = vld [vmem:[#allocation6 + $0xee0] sm:$0xff]
        %v831 = vld [vmem:[#allocation6 + $0xee8] sm:$0xff]
        %v832 = vld [vmem:[#allocation6 + $0xef0] sm:$0xff]
        %v833 = vld [vmem:[#allocation6 + $0xef8] sm:$0xff]
        %v834 = vld [vmem:[#allocation6 + $0xf00] sm:$0xff]
        %v835 = vld [vmem:[#allocation6 + $0xf08] sm:$0xff]
        %v836 = vld [vmem:[#allocation6 + $0xf10] sm:$0xff]
        %v837 = vld [vmem:[#allocation6 + $0xf18] sm:$0xff]
        %v838 = vld [vmem:[#allocation6 + $0xf20] sm:$0xff]
        %v839 = vld [vmem:[#allocation6 + $0xf28] sm:$0xff]
        %v840 = vld [vmem:[#allocation6 + $0xf30] sm:$0xff]
        %v841 = vld [vmem:[#allocation6 + $0xf38] sm:$0xff]
        %v842 = vld [vmem:[#allocation6 + $0xf40] sm:$0xff]
        %v843 = vld [vmem:[#allocation6 + $0xf48] sm:$0xff]
        %v844 = vld [vmem:[#allocation6 + $0xf50] sm:$0xff]
        %v845 = vld [vmem:[#allocation6 + $0xf58] sm:$0xff]
        %v846 = vld [vmem:[#allocation6 + $0xf60] sm:$0xff]
        %v847 = vld [vmem:[#allocation6 + $0xf68] sm:$0xff]
        %v848 = vld [vmem:[#allocation6 + $0xf70] sm:$0xff]
        %v849 = vld [vmem:[#allocation6 + $0xf78] sm:$0xff]
        %v850 = vld [vmem:[#allocation6 + $0xf80] sm:$0xff]
        %v851 = vld [vmem:[#allocation6 + $0xf88] sm:$0xff]
        %v852 = vld [vmem:[#allocation6 + $0xf90] sm:$0xff]
        %v853 = vld [vmem:[#allocation6 + $0xf98] sm:$0xff]
        %v854 = vld [vmem:[#allocation6 + $0xfa0] sm:$0xff]
        %v855 = vld [vmem:[#allocation6 + $0xfa8] sm:$0xff]
        %v856 = vld [vmem:[#allocation6 + $0xfb0] sm:$0xff]
        %v857 = vld [vmem:[#allocation6 + $0xfb8] sm:$0xff]
        %v858 = vld [vmem:[#allocation6 + $0xfc0] sm:$0xff]
        %v859 = vld [vmem:[#allocation6 + $0xfc8] sm:$0xff]
        %v860 = vld [vmem:[#allocation6 + $0xfd0] sm:$0xff]
        %v861 = vld [vmem:[#allocation6 + $0xfd8] sm:$0xff]
        %v862 = vld [vmem:[#allocation6 + $0xfe0] sm:$0xff]
        %v863 = vld [vmem:[#allocation6 + $0xfe8] sm:$0xff]
        %v864 = vld [vmem:[#allocation6 + $0xff0] sm:$0xff]
        %v865 = vld [vmem:[#allocation6 + $0xff8] sm:$0xff]
        %v866 = vld [vmem:[#allocation6 + $0x1000] sm:$0xff]
        %v867 = vld [vmem:[#allocation6 + $0x1008] sm:$0xff]
        %v868 = vld [vmem:[#allocation6 + $0x1010] sm:$0xff]
        %v869 = vld [vmem:[#allocation6 + $0x1018] sm:$0xff]
        %v870 = vld [vmem:[#allocation6 + $0x1020] sm:$0xff]
        %v871 = vld [vmem:[#allocation6 + $0x1028] sm:$0xff]
        %v872 = vld [vmem:[#allocation6 + $0x1030] sm:$0xff]
        %v873 = vld [vmem:[#allocation6 + $0x1038] sm:$0xff]
        %v874 = vld [vmem:[#allocation6 + $0x1040] sm:$0xff]
        %v875 = vld [vmem:[#allocation6 + $0x1048] sm:$0xff]
        %v876 = vld [vmem:[#allocation6 + $0x1050] sm:$0xff]
        %v877 = vld [vmem:[#allocation6 + $0x1058] sm:$0xff]
        %v878 = vld [vmem:[#allocation6 + $0x1060] sm:$0xff]
        %v879 = vld [vmem:[#allocation6 + $0x1068] sm:$0xff]
        %v880 = vld [vmem:[#allocation6 + $0x1070] sm:$0xff]
        %v881 = vld [vmem:[#allocation6 + $0x1078] sm:$0xff]
        %v882 = vld [vmem:[#allocation6 + $0x1080] sm:$0xff]
        %v883 = vld [vmem:[#allocation6 + $0x1088] sm:$0xff]
        %v884 = vld [vmem:[#allocation6 + $0x1090] sm:$0xff]
        %v885 = vld [vmem:[#allocation6 + $0x1098] sm:$0xff]
        %v886 = vld [vmem:[#allocation6 + $0x10a0] sm:$0xff]
        %v887 = vld [vmem:[#allocation6 + $0x10a8] sm:$0xff]
        %v888 = vld [vmem:[#allocation6 + $0x10b0] sm:$0xff]
        %v889 = vld [vmem:[#allocation6 + $0x10b8] sm:$0xff]
        %v890 = vld [vmem:[#allocation6 + $0x10c0] sm:$0xff]
        %v891 = vld [vmem:[#allocation6 + $0x10c8] sm:$0xff]
        %v892 = vld [vmem:[#allocation6 + $0x10d0] sm:$0xff]
        %v893 = vld [vmem:[#allocation6 + $0x10d8] sm:$0xff]
        %v894 = vld [vmem:[#allocation6 + $0x10e0] sm:$0xff]
        %v895 = vld [vmem:[#allocation6 + $0x10e8] sm:$0xff]
        %v896 = vld [vmem:[#allocation6 + $0x10f0] sm:$0xff]
        %v897 = vld [vmem:[#allocation6 + $0x10f8] sm:$0xff]
        %v898 = vld [vmem:[#allocation6 + $0x1100] sm:$0xff]
        %v899 = vld [vmem:[#allocation6 + $0x1108] sm:$0xff]
        %v900 = vld [vmem:[#allocation6 + $0x1110] sm:$0xff]
        %v901 = vld [vmem:[#allocation6 + $0x1118] sm:$0xff]
        %v902 = vld [vmem:[#allocation6 + $0x1120] sm:$0xff]
        %v903 = vld [vmem:[#allocation6 + $0x1128] sm:$0xff]
        %v904 = vld [vmem:[#allocation6 + $0x1130] sm:$0xff]
        %v905 = vld [vmem:[#allocation6 + $0x1138] sm:$0xff]
        %v906 = vld [vmem:[#allocation6 + $0x1140] sm:$0xff]
        %v907 = vld [vmem:[#allocation6 + $0x1148] sm:$0xff]
        %v908 = vld [vmem:[#allocation6 + $0x1150] sm:$0xff]
        %v909 = vld [vmem:[#allocation6 + $0x1158] sm:$0xff]
        %v910 = vld [vmem:[#allocation6 + $0x1160] sm:$0xff]
        %v911 = vld [vmem:[#allocation6 + $0x1168] sm:$0xff]
        %v912 = vld [vmem:[#allocation6 + $0x1170] sm:$0xff]
        %v913 = vld [vmem:[#allocation6 + $0x1178] sm:$0xff]
        %v914 = vld [vmem:[#allocation6 + $0x1180] sm:$0xff]
        %v915 = vld [vmem:[#allocation6 + $0x1188] sm:$0xff]
        %v916 = vld [vmem:[#allocation6 + $0x1190] sm:$0xff]
        %v917 = vld [vmem:[#allocation6 + $0x1198] sm:$0xff]
        %v918 = vld [vmem:[#allocation6 + $0x11a0] sm:$0xff]
        %v919 = vld [vmem:[#allocation6 + $0x11a8] sm:$0xff]
        %v920 = vld [vmem:[#allocation6 + $0x11b0] sm:$0xff]
        %v921 = vld [vmem:[#allocation6 + $0x11b8] sm:$0xff]
        %v922 = vld [vmem:[#allocation6 + $0x11c0] sm:$0xff]
        %v923 = vld [vmem:[#allocation6 + $0x11c8] sm:$0xff]
        %v924 = vld [vmem:[#allocation6 + $0x11d0] sm:$0xff]
        %v925 = vld [vmem:[#allocation6 + $0x11d8] sm:$0xff]
        %v926 = vld [vmem:[#allocation6 + $0x11e0] sm:$0xff]
        %v927 = vld [vmem:[#allocation6 + $0x11e8] sm:$0xff]
        %v928 = vld [vmem:[#allocation6 + $0x11f0] sm:$0xff]
        %v929 = vld [vmem:[#allocation6 + $0x11f8] sm:$0xff]
        %v930 = vld [vmem:[#allocation8] sm:$0xf]
        %v932 = vlaneseq
        %v933 = vshrl.u32 %v932, 7
        %v934 = vsub.s32 0, %v933
        %v935 = vrot.slane %v930, %v934
        %v936 = vlaneseq
        %v937 = vshrl.u32 %v936, 7
        %v938 = vsub.s32 1, %v937
        %v939 = vrot.slane %v930, %v938
        %v940 = vlaneseq
        %v941 = vshrl.u32 %v940, 7
        %v942 = vsub.s32 2, %v941
        %v943 = vrot.slane %v930, %v942
        %v944 = vlaneseq
        %v945 = vshrl.u32 %v944, 7
        %v946 = vsub.s32 3, %v945
        %v947 = vrot.slane %v930, %v946
        %v1528 = vunpack.c.l.b16 %v354
        %v1529 = vunpack.c.h.b16 %v354
        %v1530 = vunpack.c.l.b16 %v355
        %v1531 = vunpack.c.h.b16 %v355
        %v1532 = vunpack.c.l.b16 %v356
        %v1533 = vunpack.c.h.b16 %v356
        %v1534 = vunpack.c.l.b16 %v357
        %v1535 = vunpack.c.h.b16 %v357
        %v1536 = vunpack.c.l.b16 %v358
        %v1537 = vunpack.c.h.b16 %v358
        %v1538 = vunpack.c.l.b16 %v359
        %v1539 = vunpack.c.h.b16 %v359
        %v1540 = vunpack.c.l.b16 %v360
        %v1541 = vunpack.c.h.b16 %v360
        %v1542 = vunpack.c.l.b16 %v361
        %v1543 = vunpack.c.h.b16 %v361
        %v1544 = vunpack.c.l.b16 %v362
        %v1545 = vunpack.c.h.b16 %v362
        %v1546 = vunpack.c.l.b16 %v363
        %v1547 = vunpack.c.h.b16 %v363
        %v1548 = vunpack.c.l.b16 %v364
        %v1549 = vunpack.c.h.b16 %v364
        %v1550 = vunpack.c.l.b16 %v365
        %v1551 = vunpack.c.h.b16 %v365
        %v1552 = vunpack.c.l.b16 %v366
        %v1553 = vunpack.c.h.b16 %v366
        %v1554 = vunpack.c.l.b16 %v367
        %v1555 = vunpack.c.h.b16 %v367
        %v1556 = vunpack.c.l.b16 %v368
        %v1557 = vunpack.c.h.b16 %v368
        %v1558 = vunpack.c.l.b16 %v369
        %v1559 = vunpack.c.h.b16 %v369
        %v1560 = vunpack.c.l.b16 %v370
        %v1561 = vunpack.c.h.b16 %v370
        %v1562 = vunpack.c.l.b16 %v371
        %v1563 = vunpack.c.h.b16 %v371
        %v1564 = vunpack.c.l.b16 %v372
        %v1565 = vunpack.c.h.b16 %v372
        %v1566 = vunpack.c.l.b16 %v373
        %v1567 = vunpack.c.h.b16 %v373
        %v1568 = vunpack.c.l.b16 %v374
        %v1569 = vunpack.c.h.b16 %v374
        %v1570 = vunpack.c.l.b16 %v375
        %v1571 = vunpack.c.h.b16 %v375
        %v1572 = vunpack.c.l.b16 %v376
        %v1573 = vunpack.c.h.b16 %v376
        %v1574 = vunpack.c.l.b16 %v377
        %v1575 = vunpack.c.h.b16 %v377
        %v1576 = vunpack.c.l.b16 %v378
        %v1577 = vunpack.c.h.b16 %v378
        %v1578 = vunpack.c.l.b16 %v379
        %v1579 = vunpack.c.h.b16 %v379
        %v1580 = vunpack.c.l.b16 %v380
        %v1581 = vunpack.c.h.b16 %v380
        %v1582 = vunpack.c.l.b16 %v381
        %v1583 = vunpack.c.h.b16 %v381
        %v1584 = vunpack.c.l.b16 %v382
        %v1585 = vunpack.c.h.b16 %v382
        %v1586 = vunpack.c.l.b16 %v383
        %v1587 = vunpack.c.h.b16 %v383
        %v1588 = vunpack.c.l.b16 %v384
        %v1589 = vunpack.c.h.b16 %v384
        %v1590 = vunpack.c.l.b16 %v385
        %v1591 = vunpack.c.h.b16 %v385
        %v1592 = vunpack.c.l.b16 %v386
        %v1593 = vunpack.c.h.b16 %v386
        %v1594 = vunpack.c.l.b16 %v387
        %v1595 = vunpack.c.h.b16 %v387
        %v1596 = vunpack.c.l.b16 %v388
        %v1597 = vunpack.c.h.b16 %v388
        %v1598 = vunpack.c.l.b16 %v389
        %v1599 = vunpack.c.h.b16 %v389
        %v1600 = vunpack.c.l.b16 %v390
        %v1601 = vunpack.c.h.b16 %v390
        %v1602 = vunpack.c.l.b16 %v391
        %v1603 = vunpack.c.h.b16 %v391
        %v1604 = vunpack.c.l.b16 %v392
        %v1605 = vunpack.c.h.b16 %v392
        %v1606 = vunpack.c.l.b16 %v393
        %v1607 = vunpack.c.h.b16 %v393
        %v1608 = vunpack.c.l.b16 %v394
        %v1609 = vunpack.c.h.b16 %v394
        %v1610 = vunpack.c.l.b16 %v395
        %v1611 = vunpack.c.h.b16 %v395
        %v1612 = vunpack.c.l.b16 %v396
        %v1613 = vunpack.c.h.b16 %v396
        %v1614 = vunpack.c.l.b16 %v397
        %v1615 = vunpack.c.h.b16 %v397
        %v1616 = vunpack.c.l.b16 %v398
        %v1617 = vunpack.c.h.b16 %v398
        %v1618 = vunpack.c.l.b16 %v399
        %v1619 = vunpack.c.h.b16 %v399
        %v1620 = vunpack.c.l.b16 %v400
        %v1621 = vunpack.c.h.b16 %v400
        %v1622 = vunpack.c.l.b16 %v401
        %v1623 = vunpack.c.h.b16 %v401
        %v1624 = vunpack.c.l.b16 %v402
        %v1625 = vunpack.c.h.b16 %v402
        %v1626 = vunpack.c.l.b16 %v403
        %v1627 = vunpack.c.h.b16 %v403
        %v1628 = vunpack.c.l.b16 %v404
        %v1629 = vunpack.c.h.b16 %v404
        %v1630 = vunpack.c.l.b16 %v405
        %v1631 = vunpack.c.h.b16 %v405
        %v1632 = vunpack.c.l.b16 %v406
        %v1633 = vunpack.c.h.b16 %v406
        %v1634 = vunpack.c.l.b16 %v407
        %v1635 = vunpack.c.h.b16 %v407
        %v1636 = vunpack.c.l.b16 %v408
        %v1637 = vunpack.c.h.b16 %v408
        %v1638 = vunpack.c.l.b16 %v409
        %v1639 = vunpack.c.h.b16 %v409
        %v1640 = vunpack.c.l.b16 %v410
        %v1641 = vunpack.c.h.b16 %v410
        %v1642 = vunpack.c.l.b16 %v411
        %v1643 = vunpack.c.h.b16 %v411
        %v1644 = vunpack.c.l.b16 %v412
        %v1645 = vunpack.c.h.b16 %v412
        %v1646 = vunpack.c.l.b16 %v413
        %v1647 = vunpack.c.h.b16 %v413
        %v1648 = vunpack.c.l.b16 %v414
        %v1649 = vunpack.c.h.b16 %v414
        %v1650 = vunpack.c.l.b16 %v415
        %v1651 = vunpack.c.h.b16 %v415
        %v1652 = vunpack.c.l.b16 %v416
        %v1653 = vunpack.c.h.b16 %v416
        %v1654 = vunpack.c.l.b16 %v417
        %v1655 = vunpack.c.h.b16 %v417
        %v1656 = vunpack.c.l.b16 %v418
        %v1657 = vunpack.c.h.b16 %v418
        %v1658 = vunpack.c.l.b16 %v419
        %v1659 = vunpack.c.h.b16 %v419
        %v1660 = vunpack.c.l.b16 %v420
        %v1661 = vunpack.c.h.b16 %v420
        %v1662 = vunpack.c.l.b16 %v421
        %v1663 = vunpack.c.h.b16 %v421
        %v1664 = vunpack.c.l.b16 %v422
        %v1665 = vunpack.c.h.b16 %v422
        %v1666 = vunpack.c.l.b16 %v423
        %v1667 = vunpack.c.h.b16 %v423
        %v1668 = vunpack.c.l.b16 %v424
        %v1669 = vunpack.c.h.b16 %v424
        %v1670 = vunpack.c.l.b16 %v425
        %v1671 = vunpack.c.h.b16 %v425
        %v1672 = vunpack.c.l.b16 %v426
        %v1673 = vunpack.c.h.b16 %v426
        %v1674 = vunpack.c.l.b16 %v427
        %v1675 = vunpack.c.h.b16 %v427
        %v1676 = vunpack.c.l.b16 %v428
        %v1677 = vunpack.c.h.b16 %v428
        %v1678 = vunpack.c.l.b16 %v429
        %v1679 = vunpack.c.h.b16 %v429
        %v1680 = vunpack.c.l.b16 %v430
        %v1681 = vunpack.c.h.b16 %v430
        %v1682 = vunpack.c.l.b16 %v431
        %v1683 = vunpack.c.h.b16 %v431
        %v1684 = vunpack.c.l.b16 %v432
        %v1685 = vunpack.c.h.b16 %v432
        %v1686 = vunpack.c.l.b16 %v433
        %v1687 = vunpack.c.h.b16 %v433
        %v1688 = vunpack.c.l.b16 %v434
        %v1689 = vunpack.c.h.b16 %v434
        %v1690 = vunpack.c.l.b16 %v435
        %v1691 = vunpack.c.h.b16 %v435
        %v1692 = vunpack.c.l.b16 %v436
        %v1693 = vunpack.c.h.b16 %v436
        %v1694 = vunpack.c.l.b16 %v437
        %v1695 = vunpack.c.h.b16 %v437
        %v1696 = vunpack.c.l.b16 %v438
        %v1697 = vunpack.c.h.b16 %v438
        %v1698 = vunpack.c.l.b16 %v439
        %v1699 = vunpack.c.h.b16 %v439
        %v1700 = vunpack.c.l.b16 %v440
        %v1701 = vunpack.c.h.b16 %v440
        %v1702 = vunpack.c.l.b16 %v441
        %v1703 = vunpack.c.h.b16 %v441
        %v1704 = vunpack.c.l.b16 %v442
        %v1705 = vunpack.c.h.b16 %v442
        %v1706 = vunpack.c.l.b16 %v443
        %v1707 = vunpack.c.h.b16 %v443
        %v1708 = vunpack.c.l.b16 %v444
        %v1709 = vunpack.c.h.b16 %v444
        %v1710 = vunpack.c.l.b16 %v445
        %v1711 = vunpack.c.h.b16 %v445
        %v1712 = vunpack.c.l.b16 %v446
        %v1713 = vunpack.c.h.b16 %v446
        %v1714 = vunpack.c.l.b16 %v447
        %v1715 = vunpack.c.h.b16 %v447
        %v1716 = vunpack.c.l.b16 %v448
        %v1717 = vunpack.c.h.b16 %v448
        %v1718 = vunpack.c.l.b16 %v449
        %v1719 = vunpack.c.h.b16 %v449
        %v1720 = vunpack.c.l.b16 %v450
        %v1721 = vunpack.c.h.b16 %v450
        %v1722 = vunpack.c.l.b16 %v451
        %v1723 = vunpack.c.h.b16 %v451
        %v1724 = vunpack.c.l.b16 %v452
        %v1725 = vunpack.c.h.b16 %v452
        %v1726 = vunpack.c.l.b16 %v453
        %v1727 = vunpack.c.h.b16 %v453
        %v1728 = vunpack.c.l.b16 %v454
        %v1729 = vunpack.c.h.b16 %v454
        %v1730 = vunpack.c.l.b16 %v455
        %v1731 = vunpack.c.h.b16 %v455
        %v1732 = vunpack.c.l.b16 %v456
        %v1733 = vunpack.c.h.b16 %v456
        %v1734 = vunpack.c.l.b16 %v457
        %v1735 = vunpack.c.h.b16 %v457
        %v1736 = vunpack.c.l.b16 %v458
        %v1737 = vunpack.c.h.b16 %v458
        %v1738 = vunpack.c.l.b16 %v459
        %v1739 = vunpack.c.h.b16 %v459
        %v1740 = vunpack.c.l.b16 %v460
        %v1741 = vunpack.c.h.b16 %v460
        %v1742 = vunpack.c.l.b16 %v461
        %v1743 = vunpack.c.h.b16 %v461
        %v1744 = vunpack.c.l.b16 %v462
        %v1745 = vunpack.c.h.b16 %v462
        %v1746 = vunpack.c.l.b16 %v463
        %v1747 = vunpack.c.h.b16 %v463
        %v1748 = vunpack.c.l.b16 %v464
        %v1749 = vunpack.c.h.b16 %v464
        %v1750 = vunpack.c.l.b16 %v465
        %v1751 = vunpack.c.h.b16 %v465
        %v1752 = vunpack.c.l.b16 %v466
        %v1753 = vunpack.c.h.b16 %v466
        %v1754 = vunpack.c.l.b16 %v467
        %v1755 = vunpack.c.h.b16 %v467
        %v1756 = vunpack.c.l.b16 %v468
        %v1757 = vunpack.c.h.b16 %v468
        %v1758 = vunpack.c.l.b16 %v469
        %v1759 = vunpack.c.h.b16 %v469
        %v1760 = vunpack.c.l.b16 %v470
        %v1761 = vunpack.c.h.b16 %v470
        %v1762 = vunpack.c.l.b16 %v471
        %v1763 = vunpack.c.h.b16 %v471
        %v1764 = vunpack.c.l.b16 %v472
        %v1765 = vunpack.c.h.b16 %v472
        %v1766 = vunpack.c.l.b16 %v473
        %v1767 = vunpack.c.h.b16 %v473
        %v1768 = vunpack.c.l.b16 %v474
        %v1769 = vunpack.c.h.b16 %v474
        %v1770 = vunpack.c.l.b16 %v475
        %v1771 = vunpack.c.h.b16 %v475
        %v1772 = vunpack.c.l.b16 %v476
        %v1773 = vunpack.c.h.b16 %v476
        %v1774 = vunpack.c.l.b16 %v477
        %v1775 = vunpack.c.h.b16 %v477
        %v1776 = vunpack.c.l.b16 %v478
        %v1777 = vunpack.c.h.b16 %v478
        %v1778 = vunpack.c.l.b16 %v479
        %v1779 = vunpack.c.h.b16 %v479
        %v1780 = vunpack.c.l.b16 %v480
        %v1781 = vunpack.c.h.b16 %v480
        %v1782 = vunpack.c.l.b16 %v481
        %v1783 = vunpack.c.h.b16 %v481
        %v1784 = vunpack.c.l.b16 %v482
        %v1785 = vunpack.c.h.b16 %v482
        %v1786 = vunpack.c.l.b16 %v483
        %v1787 = vunpack.c.h.b16 %v483
        %v1788 = vunpack.c.l.b16 %v484
        %v1789 = vunpack.c.h.b16 %v484
        %v1790 = vunpack.c.l.b16 %v485
        %v1791 = vunpack.c.h.b16 %v485
        %v1792 = vunpack.c.l.b16 %v486
        %v1793 = vunpack.c.h.b16 %v486
        %v1794 = vunpack.c.l.b16 %v487
        %v1795 = vunpack.c.h.b16 %v487
        %v1796 = vunpack.c.l.b16 %v488
        %v1797 = vunpack.c.h.b16 %v488
        %v1798 = vunpack.c.l.b16 %v489
        %v1799 = vunpack.c.h.b16 %v489
        %v1800 = vunpack.c.l.b16 %v490
        %v1801 = vunpack.c.h.b16 %v490
        %v1802 = vunpack.c.l.b16 %v491
        %v1803 = vunpack.c.h.b16 %v491
        %v1804 = vunpack.c.l.b16 %v492
        %v1805 = vunpack.c.h.b16 %v492
        %v1806 = vunpack.c.l.b16 %v493
        %v1807 = vunpack.c.h.b16 %v493
        %v1808 = vunpack.c.l.b16 %v494
        %v1809 = vunpack.c.h.b16 %v494
        %v1810 = vunpack.c.l.b16 %v495
        %v1811 = vunpack.c.h.b16 %v495
        %v1812 = vunpack.c.l.b16 %v496
        %v1813 = vunpack.c.h.b16 %v496
        %v1814 = vunpack.c.l.b16 %v497
        %v1815 = vunpack.c.h.b16 %v497
        %v1816 = vunpack.c.l.b16 %v498
        %v1817 = vunpack.c.h.b16 %v498
        %v1818 = vunpack.c.l.b16 %v499
        %v1819 = vunpack.c.h.b16 %v499
        %v1820 = vunpack.c.l.b16 %v500
        %v1821 = vunpack.c.h.b16 %v500
        %v1822 = vunpack.c.l.b16 %v501
        %v1823 = vunpack.c.h.b16 %v501
        %v1824 = vunpack.c.l.b16 %v502
        %v1825 = vunpack.c.h.b16 %v502
        %v1826 = vunpack.c.l.b16 %v503
        %v1827 = vunpack.c.h.b16 %v503
        %v1828 = vunpack.c.l.b16 %v504
        %v1829 = vunpack.c.h.b16 %v504
        %v1830 = vunpack.c.l.b16 %v505
        %v1831 = vunpack.c.h.b16 %v505
        %v1832 = vunpack.c.l.b16 %v506
        %v1833 = vunpack.c.h.b16 %v506
        %v1834 = vunpack.c.l.b16 %v507
        %v1835 = vunpack.c.h.b16 %v507
        %v1836 = vunpack.c.l.b16 %v508
        %v1837 = vunpack.c.h.b16 %v508
        %v1838 = vunpack.c.l.b16 %v509
        %v1839 = vunpack.c.h.b16 %v509
        %v1840 = vunpack.c.l.b16 %v510
        %v1841 = vunpack.c.h.b16 %v510
        %v1842 = vunpack.c.l.b16 %v511
        %v1843 = vunpack.c.h.b16 %v511
        %v1844 = vunpack.c.l.b16 %v512
        %v1845 = vunpack.c.h.b16 %v512
        %v1846 = vunpack.c.l.b16 %v513
        %v1847 = vunpack.c.h.b16 %v513
        %v1848 = vunpack.c.l.b16 %v514
        %v1849 = vunpack.c.h.b16 %v514
        %v1850 = vunpack.c.l.b16 %v515
        %v1851 = vunpack.c.h.b16 %v515
        %v1852 = vunpack.c.l.b16 %v516
        %v1853 = vunpack.c.h.b16 %v516
        %v1854 = vunpack.c.l.b16 %v517
        %v1855 = vunpack.c.h.b16 %v517
        %v1856 = vunpack.c.l.b16 %v518
        %v1857 = vunpack.c.h.b16 %v518
        %v1858 = vunpack.c.l.b16 %v519
        %v1859 = vunpack.c.h.b16 %v519
        %v1860 = vunpack.c.l.b16 %v520
        %v1861 = vunpack.c.h.b16 %v520
        %v1862 = vunpack.c.l.b16 %v521
        %v1863 = vunpack.c.h.b16 %v521
        %v1864 = vunpack.c.l.b16 %v522
        %v1865 = vunpack.c.h.b16 %v522
        %v1866 = vunpack.c.l.b16 %v523
        %v1867 = vunpack.c.h.b16 %v523
        %v1868 = vunpack.c.l.b16 %v524
        %v1869 = vunpack.c.h.b16 %v524
        %v1870 = vunpack.c.l.b16 %v525
        %v1871 = vunpack.c.h.b16 %v525
        %v1872 = vunpack.c.l.b16 %v526
        %v1873 = vunpack.c.h.b16 %v526
        %v1874 = vunpack.c.l.b16 %v527
        %v1875 = vunpack.c.h.b16 %v527
        %v1876 = vunpack.c.l.b16 %v528
        %v1877 = vunpack.c.h.b16 %v528
        %v1878 = vunpack.c.l.b16 %v529
        %v1879 = vunpack.c.h.b16 %v529
        %v1880 = vunpack.c.l.b16 %v530
        %v1881 = vunpack.c.h.b16 %v530
        %v1882 = vunpack.c.l.b16 %v531
        %v1883 = vunpack.c.h.b16 %v531
        %v1884 = vunpack.c.l.b16 %v532
        %v1885 = vunpack.c.h.b16 %v532
        %v1886 = vunpack.c.l.b16 %v533
        %v1887 = vunpack.c.h.b16 %v533
        %v1888 = vunpack.c.l.b16 %v534
        %v1889 = vunpack.c.h.b16 %v534
        %v1890 = vunpack.c.l.b16 %v535
        %v1891 = vunpack.c.h.b16 %v535
        %v1892 = vunpack.c.l.b16 %v536
        %v1893 = vunpack.c.h.b16 %v536
        %v1894 = vunpack.c.l.b16 %v537
        %v1895 = vunpack.c.h.b16 %v537
        %v1896 = vunpack.c.l.b16 %v538
        %v1897 = vunpack.c.h.b16 %v538
        %v1898 = vunpack.c.l.b16 %v539
        %v1899 = vunpack.c.h.b16 %v539
        %v1900 = vunpack.c.l.b16 %v540
        %v1901 = vunpack.c.h.b16 %v540
        %v1902 = vunpack.c.l.b16 %v541
        %v1903 = vunpack.c.h.b16 %v541
        %v1904 = vunpack.c.l.b16 %v542
        %v1905 = vunpack.c.h.b16 %v542
        %v1906 = vunpack.c.l.b16 %v543
        %v1907 = vunpack.c.h.b16 %v543
        %v1908 = vunpack.c.l.b16 %v544
        %v1909 = vunpack.c.h.b16 %v544
        %v1910 = vunpack.c.l.b16 %v545
        %v1911 = vunpack.c.h.b16 %v545
        %v1912 = vunpack.c.l.b16 %v546
        %v1913 = vunpack.c.h.b16 %v546
        %v1914 = vunpack.c.l.b16 %v547
        %v1915 = vunpack.c.h.b16 %v547
        %v1916 = vunpack.c.l.b16 %v548
        %v1917 = vunpack.c.h.b16 %v548
        %v1918 = vunpack.c.l.b16 %v549
        %v1919 = vunpack.c.h.b16 %v549
        %v1920 = vunpack.c.l.b16 %v550
        %v1921 = vunpack.c.h.b16 %v550
        %v1922 = vunpack.c.l.b16 %v551
        %v1923 = vunpack.c.h.b16 %v551
        %v1924 = vunpack.c.l.b16 %v552
        %v1925 = vunpack.c.h.b16 %v552
        %v1926 = vunpack.c.l.b16 %v553
        %v1927 = vunpack.c.h.b16 %v553
        %v1928 = vunpack.c.l.b16 %v554
        %v1929 = vunpack.c.h.b16 %v554
        %v1930 = vunpack.c.l.b16 %v555
        %v1931 = vunpack.c.h.b16 %v555
        %v1932 = vunpack.c.l.b16 %v556
        %v1933 = vunpack.c.h.b16 %v556
        %v1934 = vunpack.c.l.b16 %v557
        %v1935 = vunpack.c.h.b16 %v557
        %v1936 = vunpack.c.l.b16 %v558
        %v1937 = vunpack.c.h.b16 %v558
        %v1938 = vunpack.c.l.b16 %v559
        %v1939 = vunpack.c.h.b16 %v559
        %v1940 = vunpack.c.l.b16 %v560
        %v1941 = vunpack.c.h.b16 %v560
        %v1942 = vunpack.c.l.b16 %v561
        %v1943 = vunpack.c.h.b16 %v561
        %v1944 = vunpack.c.l.b16 %v562
        %v1945 = vunpack.c.h.b16 %v562
        %v1946 = vunpack.c.l.b16 %v563
        %v1947 = vunpack.c.h.b16 %v563
        %v1948 = vunpack.c.l.b16 %v564
        %v1949 = vunpack.c.h.b16 %v564
        %v1950 = vunpack.c.l.b16 %v565
        %v1951 = vunpack.c.h.b16 %v565
        %v1952 = vunpack.c.l.b16 %v566
        %v1953 = vunpack.c.h.b16 %v566
        %v1954 = vunpack.c.l.b16 %v567
        %v1955 = vunpack.c.h.b16 %v567
        %v1956 = vunpack.c.l.b16 %v568
        %v1957 = vunpack.c.h.b16 %v568
        %v1958 = vunpack.c.l.b16 %v569
        %v1959 = vunpack.c.h.b16 %v569
        %v1960 = vunpack.c.l.b16 %v570
        %v1961 = vunpack.c.h.b16 %v570
        %v1962 = vunpack.c.l.b16 %v571
        %v1963 = vunpack.c.h.b16 %v571
        %v1964 = vunpack.c.l.b16 %v572
        %v1965 = vunpack.c.h.b16 %v572
        %v1966 = vunpack.c.l.b16 %v573
        %v1967 = vunpack.c.h.b16 %v573
        %v1968 = vunpack.c.l.b16 %v574
        %v1969 = vunpack.c.h.b16 %v574
        %v1970 = vunpack.c.l.b16 %v575
        %v1971 = vunpack.c.h.b16 %v575
        %v1972 = vunpack.c.l.b16 %v576
        %v1973 = vunpack.c.h.b16 %v576
        %v1974 = vunpack.c.l.b16 %v577
        %v1975 = vunpack.c.h.b16 %v577
        %v1976 = vunpack.c.l.b16 %v578
        %v1977 = vunpack.c.h.b16 %v578
        %v1978 = vunpack.c.l.b16 %v579
        %v1979 = vunpack.c.h.b16 %v579
        %v1980 = vunpack.c.l.b16 %v580
        %v1981 = vunpack.c.h.b16 %v580
        %v1982 = vunpack.c.l.b16 %v581
        %v1983 = vunpack.c.h.b16 %v581
        %v1984 = vunpack.c.l.b16 %v582
        %v1985 = vunpack.c.h.b16 %v582
        %v1986 = vunpack.c.l.b16 %v583
        %v1987 = vunpack.c.h.b16 %v583
        %v1988 = vunpack.c.l.b16 %v584
        %v1989 = vunpack.c.h.b16 %v584
        %v1990 = vunpack.c.l.b16 %v585
        %v1991 = vunpack.c.h.b16 %v585
        %v1992 = vunpack.c.l.b16 %v586
        %v1993 = vunpack.c.h.b16 %v586
        %v1994 = vunpack.c.l.b16 %v587
        %v1995 = vunpack.c.h.b16 %v587
        %v1996 = vunpack.c.l.b16 %v588
        %v1997 = vunpack.c.h.b16 %v588
        %v1998 = vunpack.c.l.b16 %v589
        %v1999 = vunpack.c.h.b16 %v589
        %v2000 = vunpack.c.l.b16 %v590
        %v2001 = vunpack.c.h.b16 %v590
        %v2002 = vunpack.c.l.b16 %v591
        %v2003 = vunpack.c.h.b16 %v591
        %v2004 = vunpack.c.l.b16 %v592
        %v2005 = vunpack.c.h.b16 %v592
        %v2006 = vunpack.c.l.b16 %v593
        %v2007 = vunpack.c.h.b16 %v593
        %v2008 = vunpack.c.l.b16 %v594
        %v2009 = vunpack.c.h.b16 %v594
        %v2010 = vunpack.c.l.b16 %v595
        %v2011 = vunpack.c.h.b16 %v595
        %v2012 = vunpack.c.l.b16 %v596
        %v2013 = vunpack.c.h.b16 %v596
        %v2014 = vunpack.c.l.b16 %v597
        %v2015 = vunpack.c.h.b16 %v597
        %v2016 = vunpack.c.l.b16 %v598
        %v2017 = vunpack.c.h.b16 %v598
        %v2018 = vunpack.c.l.b16 %v599
        %v2019 = vunpack.c.h.b16 %v599
        %v2020 = vunpack.c.l.b16 %v600
        %v2021 = vunpack.c.h.b16 %v600
        %v2022 = vunpack.c.l.b16 %v601
        %v2023 = vunpack.c.h.b16 %v601
        %v2024 = vunpack.c.l.b16 %v602
        %v2025 = vunpack.c.h.b16 %v602
        %v2026 = vunpack.c.l.b16 %v603
        %v2027 = vunpack.c.h.b16 %v603
        %v2028 = vunpack.c.l.b16 %v604
        %v2029 = vunpack.c.h.b16 %v604
        %v2030 = vunpack.c.l.b16 %v605
        %v2031 = vunpack.c.h.b16 %v605
        %v2032 = vunpack.c.l.b16 %v606
        %v2033 = vunpack.c.h.b16 %v606
        %v2034 = vunpack.c.l.b16 %v607
        %v2035 = vunpack.c.h.b16 %v607
        %v2036 = vunpack.c.l.b16 %v608
        %v2037 = vunpack.c.h.b16 %v608
        %v2038 = vunpack.c.l.b16 %v609
        %v2039 = vunpack.c.h.b16 %v609
        %v2040 = vunpack.c.l.b16 %v610
        %v2041 = vunpack.c.h.b16 %v610
        %v2042 = vunpack.c.l.b16 %v611
        %v2043 = vunpack.c.h.b16 %v611
        %v2044 = vunpack.c.l.b16 %v612
        %v2045 = vunpack.c.h.b16 %v612
        %v2046 = vunpack.c.l.b16 %v613
        %v2047 = vunpack.c.h.b16 %v613
        %v2048 = vunpack.c.l.b16 %v614
        %v2049 = vunpack.c.h.b16 %v614
        %v2050 = vunpack.c.l.b16 %v615
        %v2051 = vunpack.c.h.b16 %v615
        %v2052 = vunpack.c.l.b16 %v616
        %v2053 = vunpack.c.h.b16 %v616
        %v2054 = vunpack.c.l.b16 %v617
        %v2055 = vunpack.c.h.b16 %v617
        %v2056 = vunpack.c.l.b16 %v618
        %v2057 = vunpack.c.h.b16 %v618
        %v2058 = vunpack.c.l.b16 %v619
        %v2059 = vunpack.c.h.b16 %v619
        %v2060 = vunpack.c.l.b16 %v620
        %v2061 = vunpack.c.h.b16 %v620
        %v2062 = vunpack.c.l.b16 %v621
        %v2063 = vunpack.c.h.b16 %v621
        %v2064 = vunpack.c.l.b16 %v622
        %v2065 = vunpack.c.h.b16 %v622
        %v2066 = vunpack.c.l.b16 %v623
        %v2067 = vunpack.c.h.b16 %v623
        %v2068 = vunpack.c.l.b16 %v624
        %v2069 = vunpack.c.h.b16 %v624
        %v2070 = vunpack.c.l.b16 %v625
        %v2071 = vunpack.c.h.b16 %v625
        %v2072 = vunpack.c.l.b16 %v626
        %v2073 = vunpack.c.h.b16 %v626
        %v2074 = vunpack.c.l.b16 %v627
        %v2075 = vunpack.c.h.b16 %v627
        %v2076 = vunpack.c.l.b16 %v628
        %v2077 = vunpack.c.h.b16 %v628
        %v2078 = vunpack.c.l.b16 %v629
        %v2079 = vunpack.c.h.b16 %v629
        %v2080 = vunpack.c.l.b16 %v630
        %v2081 = vunpack.c.h.b16 %v630
        %v2082 = vunpack.c.l.b16 %v631
        %v2083 = vunpack.c.h.b16 %v631
        %v2084 = vunpack.c.l.b16 %v632
        %v2085 = vunpack.c.h.b16 %v632
        %v2086 = vunpack.c.l.b16 %v633
        %v2087 = vunpack.c.h.b16 %v633
        %v2088 = vunpack.c.l.b16 %v634
        %v2089 = vunpack.c.h.b16 %v634
        %v2090 = vunpack.c.l.b16 %v635
        %v2091 = vunpack.c.h.b16 %v635
        %v2092 = vunpack.c.l.b16 %v636
        %v2093 = vunpack.c.h.b16 %v636
        %v2094 = vunpack.c.l.b16 %v637
        %v2095 = vunpack.c.h.b16 %v637
        %v2096 = vunpack.c.l.b16 %v638
        %v2097 = vunpack.c.h.b16 %v638
        %v2098 = vunpack.c.l.b16 %v639
        %v2099 = vunpack.c.h.b16 %v639
        %v2100 = vunpack.c.l.b16 %v640
        %v2101 = vunpack.c.h.b16 %v640
        %v2102 = vunpack.c.l.b16 %v641
        %v2103 = vunpack.c.h.b16 %v641
        %v2104 = vunpack.c.l.b16 %v642
        %v2105 = vunpack.c.h.b16 %v642
        %v2106 = vunpack.c.l.b16 %v643
        %v2107 = vunpack.c.h.b16 %v643
        %v2108 = vunpack.c.l.b16 %v644
        %v2109 = vunpack.c.h.b16 %v644
        %v2110 = vunpack.c.l.b16 %v645
        %v2111 = vunpack.c.h.b16 %v645
        %v2112 = vunpack.c.l.b16 %v646
        %v2113 = vunpack.c.h.b16 %v646
        %v2114 = vunpack.c.l.b16 %v647
        %v2115 = vunpack.c.h.b16 %v647
        %v2116 = vunpack.c.l.b16 %v648
        %v2117 = vunpack.c.h.b16 %v648
        %v2118 = vunpack.c.l.b16 %v649
        %v2119 = vunpack.c.h.b16 %v649
        %v2120 = vunpack.c.l.b16 %v650
        %v2121 = vunpack.c.h.b16 %v650
        %v2122 = vunpack.c.l.b16 %v651
        %v2123 = vunpack.c.h.b16 %v651
        %v2124 = vunpack.c.l.b16 %v652
        %v2125 = vunpack.c.h.b16 %v652
        %v2126 = vunpack.c.l.b16 %v653
        %v2127 = vunpack.c.h.b16 %v653
        %v2128 = vunpack.c.l.b16 %v654
        %v2129 = vunpack.c.h.b16 %v654
        %v2130 = vunpack.c.l.b16 %v655
        %v2131 = vunpack.c.h.b16 %v655
        %v2132 = vunpack.c.l.b16 %v656
        %v2133 = vunpack.c.h.b16 %v656
        %v2134 = vunpack.c.l.b16 %v657
        %v2135 = vunpack.c.h.b16 %v657
        %v2136 = vunpack.c.l.b16 %v658
        %v2137 = vunpack.c.h.b16 %v658
        %v2138 = vunpack.c.l.b16 %v659
        %v2139 = vunpack.c.h.b16 %v659
        %v2140 = vunpack.c.l.b16 %v660
        %v2141 = vunpack.c.h.b16 %v660
        %v2142 = vunpack.c.l.b16 %v661
        %v2143 = vunpack.c.h.b16 %v661
        %v2144 = vunpack.c.l.b16 %v662
        %v2145 = vunpack.c.h.b16 %v662
        %v2146 = vunpack.c.l.b16 %v663
        %v2147 = vunpack.c.h.b16 %v663
        %v2148 = vunpack.c.l.b16 %v664
        %v2149 = vunpack.c.h.b16 %v664
        %v2150 = vunpack.c.l.b16 %v665
        %v2151 = vunpack.c.h.b16 %v665
        %v2152 = vunpack.c.l.b16 %v666
        %v2153 = vunpack.c.h.b16 %v666
        %v2154 = vunpack.c.l.b16 %v667
        %v2155 = vunpack.c.h.b16 %v667
        %v2156 = vunpack.c.l.b16 %v668
        %v2157 = vunpack.c.h.b16 %v668
        %v2158 = vunpack.c.l.b16 %v669
        %v2159 = vunpack.c.h.b16 %v669
        %v2160 = vunpack.c.l.b16 %v670
        %v2161 = vunpack.c.h.b16 %v670
        %v2162 = vunpack.c.l.b16 %v671
        %v2163 = vunpack.c.h.b16 %v671
        %v2164 = vunpack.c.l.b16 %v672
        %v2165 = vunpack.c.h.b16 %v672
        %v2166 = vunpack.c.l.b16 %v673
        %v2167 = vunpack.c.h.b16 %v673
        %v2168 = vunpack.c.l.b16 %v674
        %v2169 = vunpack.c.h.b16 %v674
        %v2170 = vunpack.c.l.b16 %v675
        %v2171 = vunpack.c.h.b16 %v675
        %v2172 = vunpack.c.l.b16 %v676
        %v2173 = vunpack.c.h.b16 %v676
        %v2174 = vunpack.c.l.b16 %v677
        %v2175 = vunpack.c.h.b16 %v677
        %v2176 = vunpack.c.l.b16 %v678
        %v2177 = vunpack.c.h.b16 %v678
        %v2178 = vunpack.c.l.b16 %v679
        %v2179 = vunpack.c.h.b16 %v679
        %v2180 = vunpack.c.l.b16 %v680
        %v2181 = vunpack.c.h.b16 %v680
        %v2182 = vunpack.c.l.b16 %v681
        %v2183 = vunpack.c.h.b16 %v681
        %v2184 = vunpack.c.l.b16 %v682
        %v2185 = vunpack.c.h.b16 %v682
        %v2186 = vunpack.c.l.b16 %v683
        %v2187 = vunpack.c.h.b16 %v683
        %v2188 = vunpack.c.l.b16 %v684
        %v2189 = vunpack.c.h.b16 %v684
        %v2190 = vunpack.c.l.b16 %v685
        %v2191 = vunpack.c.h.b16 %v685
        %v2192 = vunpack.c.l.b16 %v686
        %v2193 = vunpack.c.h.b16 %v686
        %v2194 = vunpack.c.l.b16 %v687
        %v2195 = vunpack.c.h.b16 %v687
        %v2196 = vunpack.c.l.b16 %v688
        %v2197 = vunpack.c.h.b16 %v688
        %v2198 = vunpack.c.l.b16 %v689
        %v2199 = vunpack.c.h.b16 %v689
        %v2200 = vunpack.c.l.b16 %v690
        %v2201 = vunpack.c.h.b16 %v690
        %v2202 = vunpack.c.l.b16 %v691
        %v2203 = vunpack.c.h.b16 %v691
        %v2204 = vunpack.c.l.b16 %v692
        %v2205 = vunpack.c.h.b16 %v692
        %v2206 = vunpack.c.l.b16 %v693
        %v2207 = vunpack.c.h.b16 %v693
        %v2208 = vunpack.c.l.b16 %v694
        %v2209 = vunpack.c.h.b16 %v694
        %v2210 = vunpack.c.l.b16 %v695
        %v2211 = vunpack.c.h.b16 %v695
        %v2212 = vunpack.c.l.b16 %v696
        %v2213 = vunpack.c.h.b16 %v696
        %v2214 = vunpack.c.l.b16 %v697
        %v2215 = vunpack.c.h.b16 %v697
        %v2216 = vunpack.c.l.b16 %v698
        %v2217 = vunpack.c.h.b16 %v698
        %v2218 = vunpack.c.l.b16 %v699
        %v2219 = vunpack.c.h.b16 %v699
        %v2220 = vunpack.c.l.b16 %v700
        %v2221 = vunpack.c.h.b16 %v700
        %v2222 = vunpack.c.l.b16 %v701
        %v2223 = vunpack.c.h.b16 %v701
        %v2224 = vunpack.c.l.b16 %v702
        %v2225 = vunpack.c.h.b16 %v702
        %v2226 = vunpack.c.l.b16 %v703
        %v2227 = vunpack.c.h.b16 %v703
        %v2228 = vunpack.c.l.b16 %v704
        %v2229 = vunpack.c.h.b16 %v704
        %v2230 = vunpack.c.l.b16 %v705
        %v2231 = vunpack.c.h.b16 %v705
        %v2232 = vunpack.c.l.b16 %v706
        %v2233 = vunpack.c.h.b16 %v706
        %v2234 = vunpack.c.l.b16 %v707
        %v2235 = vunpack.c.h.b16 %v707
        %v2236 = vunpack.c.l.b16 %v708
        %v2237 = vunpack.c.h.b16 %v708
        %v2238 = vunpack.c.l.b16 %v709
        %v2239 = vunpack.c.h.b16 %v709
        %v2240 = vunpack.c.l.b16 %v710
        %v2241 = vunpack.c.h.b16 %v710
        %v2242 = vunpack.c.l.b16 %v711
        %v2243 = vunpack.c.h.b16 %v711
        %v2244 = vunpack.c.l.b16 %v712
        %v2245 = vunpack.c.h.b16 %v712
        %v2246 = vunpack.c.l.b16 %v713
        %v2247 = vunpack.c.h.b16 %v713
        %v2248 = vunpack.c.l.b16 %v714
        %v2249 = vunpack.c.h.b16 %v714
        %v2250 = vunpack.c.l.b16 %v715
        %v2251 = vunpack.c.h.b16 %v715
        %v2252 = vunpack.c.l.b16 %v716
        %v2253 = vunpack.c.h.b16 %v716
        %v2254 = vunpack.c.l.b16 %v717
        %v2255 = vunpack.c.h.b16 %v717
        %v2256 = vunpack.c.l.b16 %v718
        %v2257 = vunpack.c.h.b16 %v718
        %v2258 = vunpack.c.l.b16 %v719
        %v2259 = vunpack.c.h.b16 %v719
        %v2260 = vunpack.c.l.b16 %v720
        %v2261 = vunpack.c.h.b16 %v720
        %v2262 = vunpack.c.l.b16 %v721
        %v2263 = vunpack.c.h.b16 %v721
        %v2264 = vunpack.c.l.b16 %v722
        %v2265 = vunpack.c.h.b16 %v722
        %v2266 = vunpack.c.l.b16 %v723
        %v2267 = vunpack.c.h.b16 %v723
        %v2268 = vunpack.c.l.b16 %v724
        %v2269 = vunpack.c.h.b16 %v724
        %v2270 = vunpack.c.l.b16 %v725
        %v2271 = vunpack.c.h.b16 %v725
        %v2272 = vunpack.c.l.b16 %v726
        %v2273 = vunpack.c.h.b16 %v726
        %v2274 = vunpack.c.l.b16 %v727
        %v2275 = vunpack.c.h.b16 %v727
        %v2276 = vunpack.c.l.b16 %v728
        %v2277 = vunpack.c.h.b16 %v728
        %v2278 = vunpack.c.l.b16 %v729
        %v2279 = vunpack.c.h.b16 %v729
        %v2280 = vunpack.c.l.b16 %v730
        %v2281 = vunpack.c.h.b16 %v730
        %v2282 = vunpack.c.l.b16 %v731
        %v2283 = vunpack.c.h.b16 %v731
        %v2284 = vunpack.c.l.b16 %v732
        %v2285 = vunpack.c.h.b16 %v732
        %v2286 = vunpack.c.l.b16 %v733
        %v2287 = vunpack.c.h.b16 %v733
        %v2288 = vunpack.c.l.b16 %v734
        %v2289 = vunpack.c.h.b16 %v734
        %v2290 = vunpack.c.l.b16 %v735
        %v2291 = vunpack.c.h.b16 %v735
        %v2292 = vunpack.c.l.b16 %v736
        %v2293 = vunpack.c.h.b16 %v736
        %v2294 = vunpack.c.l.b16 %v737
        %v2295 = vunpack.c.h.b16 %v737
        %v2296 = vunpack.c.l.b16 %v738
        %v2297 = vunpack.c.h.b16 %v738
        %v2298 = vunpack.c.l.b16 %v739
        %v2299 = vunpack.c.h.b16 %v739
        %v2300 = vunpack.c.l.b16 %v740
        %v2301 = vunpack.c.h.b16 %v740
        %v2302 = vunpack.c.l.b16 %v741
        %v2303 = vunpack.c.h.b16 %v741
        %v2304 = vunpack.c.l.b16 %v742
        %v2305 = vunpack.c.h.b16 %v742
        %v2306 = vunpack.c.l.b16 %v743
        %v2307 = vunpack.c.h.b16 %v743
        %v2308 = vunpack.c.l.b16 %v744
        %v2309 = vunpack.c.h.b16 %v744
        %v2310 = vunpack.c.l.b16 %v745
        %v2311 = vunpack.c.h.b16 %v745
        %v2312 = vunpack.c.l.b16 %v746
        %v2313 = vunpack.c.h.b16 %v746
        %v2314 = vunpack.c.l.b16 %v747
        %v2315 = vunpack.c.h.b16 %v747
        %v2316 = vunpack.c.l.b16 %v748
        %v2317 = vunpack.c.h.b16 %v748
        %v2318 = vunpack.c.l.b16 %v749
        %v2319 = vunpack.c.h.b16 %v749
        %v2320 = vunpack.c.l.b16 %v750
        %v2321 = vunpack.c.h.b16 %v750
        %v2322 = vunpack.c.l.b16 %v751
        %v2323 = vunpack.c.h.b16 %v751
        %v2324 = vunpack.c.l.b16 %v752
        %v2325 = vunpack.c.h.b16 %v752
        %v2326 = vunpack.c.l.b16 %v753
        %v2327 = vunpack.c.h.b16 %v753
        %v2328 = vunpack.c.l.b16 %v754
        %v2329 = vunpack.c.h.b16 %v754
        %v2330 = vunpack.c.l.b16 %v755
        %v2331 = vunpack.c.h.b16 %v755
        %v2332 = vunpack.c.l.b16 %v756
        %v2333 = vunpack.c.h.b16 %v756
        %v2334 = vunpack.c.l.b16 %v757
        %v2335 = vunpack.c.h.b16 %v757
        %v2336 = vunpack.c.l.b16 %v758
        %v2337 = vunpack.c.h.b16 %v758
        %v2338 = vunpack.c.l.b16 %v759
        %v2339 = vunpack.c.h.b16 %v759
        %v2340 = vunpack.c.l.b16 %v760
        %v2341 = vunpack.c.h.b16 %v760
        %v2342 = vunpack.c.l.b16 %v761
        %v2343 = vunpack.c.h.b16 %v761
        %v2344 = vunpack.c.l.b16 %v762
        %v2345 = vunpack.c.h.b16 %v762
        %v2346 = vunpack.c.l.b16 %v763
        %v2347 = vunpack.c.h.b16 %v763
        %v2348 = vunpack.c.l.b16 %v764
        %v2349 = vunpack.c.h.b16 %v764
        %v2350 = vunpack.c.l.b16 %v765
        %v2351 = vunpack.c.h.b16 %v765
        %v2352 = vunpack.c.l.b16 %v766
        %v2353 = vunpack.c.h.b16 %v766
        %v2354 = vunpack.c.l.b16 %v767
        %v2355 = vunpack.c.h.b16 %v767
        %v2356 = vunpack.c.l.b16 %v768
        %v2357 = vunpack.c.h.b16 %v768
        %v2358 = vunpack.c.l.b16 %v769
        %v2359 = vunpack.c.h.b16 %v769
        %v2360 = vunpack.c.l.b16 %v770
        %v2361 = vunpack.c.h.b16 %v770
        %v2362 = vunpack.c.l.b16 %v771
        %v2363 = vunpack.c.h.b16 %v771
        %v2364 = vunpack.c.l.b16 %v772
        %v2365 = vunpack.c.h.b16 %v772
        %v2366 = vunpack.c.l.b16 %v773
        %v2367 = vunpack.c.h.b16 %v773
        %v2368 = vunpack.c.l.b16 %v774
        %v2369 = vunpack.c.h.b16 %v774
        %v2370 = vunpack.c.l.b16 %v775
        %v2371 = vunpack.c.h.b16 %v775
        %v2372 = vunpack.c.l.b16 %v776
        %v2373 = vunpack.c.h.b16 %v776
        %v2374 = vunpack.c.l.b16 %v777
        %v2375 = vunpack.c.h.b16 %v777
        %v2376 = vunpack.c.l.b16 %v778
        %v2377 = vunpack.c.h.b16 %v778
        %v2378 = vunpack.c.l.b16 %v779
        %v2379 = vunpack.c.h.b16 %v779
        %v2380 = vunpack.c.l.b16 %v780
        %v2381 = vunpack.c.h.b16 %v780
        %v2382 = vunpack.c.l.b16 %v781
        %v2383 = vunpack.c.h.b16 %v781
        %v2384 = vunpack.c.l.b16 %v782
        %v2385 = vunpack.c.h.b16 %v782
        %v2386 = vunpack.c.l.b16 %v783
        %v2387 = vunpack.c.h.b16 %v783
        %v2388 = vunpack.c.l.b16 %v784
        %v2389 = vunpack.c.h.b16 %v784
        %v2390 = vunpack.c.l.b16 %v785
        %v2391 = vunpack.c.h.b16 %v785
        %v2392 = vunpack.c.l.b16 %v786
        %v2393 = vunpack.c.h.b16 %v786
        %v2394 = vunpack.c.l.b16 %v787
        %v2395 = vunpack.c.h.b16 %v787
        %v2396 = vunpack.c.l.b16 %v788
        %v2397 = vunpack.c.h.b16 %v788
        %v2398 = vunpack.c.l.b16 %v789
        %v2399 = vunpack.c.h.b16 %v789
        %v2400 = vunpack.c.l.b16 %v790
        %v2401 = vunpack.c.h.b16 %v790
        %v2402 = vunpack.c.l.b16 %v791
        %v2403 = vunpack.c.h.b16 %v791
        %v2404 = vunpack.c.l.b16 %v792
        %v2405 = vunpack.c.h.b16 %v792
        %v2406 = vunpack.c.l.b16 %v793
        %v2407 = vunpack.c.h.b16 %v793
        %v2408 = vunpack.c.l.b16 %v794
        %v2409 = vunpack.c.h.b16 %v794
        %v2410 = vunpack.c.l.b16 %v795
        %v2411 = vunpack.c.h.b16 %v795
        %v2412 = vunpack.c.l.b16 %v796
        %v2413 = vunpack.c.h.b16 %v796
        %v2414 = vunpack.c.l.b16 %v797
        %v2415 = vunpack.c.h.b16 %v797
        %v2416 = vunpack.c.l.b16 %v798
        %v2417 = vunpack.c.h.b16 %v798
        %v2418 = vunpack.c.l.b16 %v799
        %v2419 = vunpack.c.h.b16 %v799
        %v2420 = vunpack.c.l.b16 %v800
        %v2421 = vunpack.c.h.b16 %v800
        %v2422 = vunpack.c.l.b16 %v801
        %v2423 = vunpack.c.h.b16 %v801
        %v2424 = vunpack.c.l.b16 %v802
        %v2425 = vunpack.c.h.b16 %v802
        %v2426 = vunpack.c.l.b16 %v803
        %v2427 = vunpack.c.h.b16 %v803
        %v2428 = vunpack.c.l.b16 %v804
        %v2429 = vunpack.c.h.b16 %v804
        %v2430 = vunpack.c.l.b16 %v805
        %v2431 = vunpack.c.h.b16 %v805
        %v2432 = vunpack.c.l.b16 %v806
        %v2433 = vunpack.c.h.b16 %v806
        %v2434 = vunpack.c.l.b16 %v807
        %v2435 = vunpack.c.h.b16 %v807
        %v2436 = vunpack.c.l.b16 %v808
        %v2437 = vunpack.c.h.b16 %v808
        %v2438 = vunpack.c.l.b16 %v809
        %v2439 = vunpack.c.h.b16 %v809
        %v2440 = vunpack.c.l.b16 %v810
        %v2441 = vunpack.c.h.b16 %v810
        %v2442 = vunpack.c.l.b16 %v811
        %v2443 = vunpack.c.h.b16 %v811
        %v2444 = vunpack.c.l.b16 %v812
        %v2445 = vunpack.c.h.b16 %v812
        %v2446 = vunpack.c.l.b16 %v813
        %v2447 = vunpack.c.h.b16 %v813
        %v2448 = vunpack.c.l.b16 %v814
        %v2449 = vunpack.c.h.b16 %v814
        %v2450 = vunpack.c.l.b16 %v815
        %v2451 = vunpack.c.h.b16 %v815
        %v2452 = vunpack.c.l.b16 %v816
        %v2453 = vunpack.c.h.b16 %v816
        %v2454 = vunpack.c.l.b16 %v817
        %v2455 = vunpack.c.h.b16 %v817
        %v2456 = vunpack.c.l.b16 %v818
        %v2457 = vunpack.c.h.b16 %v818
        %v2458 = vunpack.c.l.b16 %v819
        %v2459 = vunpack.c.h.b16 %v819
        %v2460 = vunpack.c.l.b16 %v820
        %v2461 = vunpack.c.h.b16 %v820
        %v2462 = vunpack.c.l.b16 %v821
        %v2463 = vunpack.c.h.b16 %v821
        %v2464 = vunpack.c.l.b16 %v822
        %v2465 = vunpack.c.h.b16 %v822
        %v2466 = vunpack.c.l.b16 %v823
        %v2467 = vunpack.c.h.b16 %v823
        %v2468 = vunpack.c.l.b16 %v824
        %v2469 = vunpack.c.h.b16 %v824
        %v2470 = vunpack.c.l.b16 %v825
        %v2471 = vunpack.c.h.b16 %v825
        %v2472 = vunpack.c.l.b16 %v826
        %v2473 = vunpack.c.h.b16 %v826
        %v2474 = vunpack.c.l.b16 %v827
        %v2475 = vunpack.c.h.b16 %v827
        %v2476 = vunpack.c.l.b16 %v828
        %v2477 = vunpack.c.h.b16 %v828
        %v2478 = vunpack.c.l.b16 %v829
        %v2479 = vunpack.c.h.b16 %v829
        %v2480 = vunpack.c.l.b16 %v830
        %v2481 = vunpack.c.h.b16 %v830
        %v2482 = vunpack.c.l.b16 %v831
        %v2483 = vunpack.c.h.b16 %v831
        %v2484 = vunpack.c.l.b16 %v832
        %v2485 = vunpack.c.h.b16 %v832
        %v2486 = vunpack.c.l.b16 %v833
        %v2487 = vunpack.c.h.b16 %v833
        %v2488 = vunpack.c.l.b16 %v834
        %v2489 = vunpack.c.h.b16 %v834
        %v2490 = vunpack.c.l.b16 %v835
        %v2491 = vunpack.c.h.b16 %v835
        %v2492 = vunpack.c.l.b16 %v836
        %v2493 = vunpack.c.h.b16 %v836
        %v2494 = vunpack.c.l.b16 %v837
        %v2495 = vunpack.c.h.b16 %v837
        %v2496 = vunpack.c.l.b16 %v838
        %v2497 = vunpack.c.h.b16 %v838
        %v2498 = vunpack.c.l.b16 %v839
        %v2499 = vunpack.c.h.b16 %v839
        %v2500 = vunpack.c.l.b16 %v840
        %v2501 = vunpack.c.h.b16 %v840
        %v2502 = vunpack.c.l.b16 %v841
        %v2503 = vunpack.c.h.b16 %v841
        %v2504 = vunpack.c.l.b16 %v842
        %v2505 = vunpack.c.h.b16 %v842
        %v2506 = vunpack.c.l.b16 %v843
        %v2507 = vunpack.c.h.b16 %v843
        %v2508 = vunpack.c.l.b16 %v844
        %v2509 = vunpack.c.h.b16 %v844
        %v2510 = vunpack.c.l.b16 %v845
        %v2511 = vunpack.c.h.b16 %v845
        %v2512 = vunpack.c.l.b16 %v846
        %v2513 = vunpack.c.h.b16 %v846
        %v2514 = vunpack.c.l.b16 %v847
        %v2515 = vunpack.c.h.b16 %v847
        %v2516 = vunpack.c.l.b16 %v848
        %v2517 = vunpack.c.h.b16 %v848
        %v2518 = vunpack.c.l.b16 %v849
        %v2519 = vunpack.c.h.b16 %v849
        %v2520 = vunpack.c.l.b16 %v850
        %v2521 = vunpack.c.h.b16 %v850
        %v2522 = vunpack.c.l.b16 %v851
        %v2523 = vunpack.c.h.b16 %v851
        %v2524 = vunpack.c.l.b16 %v852
        %v2525 = vunpack.c.h.b16 %v852
        %v2526 = vunpack.c.l.b16 %v853
        %v2527 = vunpack.c.h.b16 %v853
        %v2528 = vunpack.c.l.b16 %v854
        %v2529 = vunpack.c.h.b16 %v854
        %v2530 = vunpack.c.l.b16 %v855
        %v2531 = vunpack.c.h.b16 %v855
        %v2532 = vunpack.c.l.b16 %v856
        %v2533 = vunpack.c.h.b16 %v856
        %v2534 = vunpack.c.l.b16 %v857
        %v2535 = vunpack.c.h.b16 %v857
        %v2536 = vunpack.c.l.b16 %v858
        %v2537 = vunpack.c.h.b16 %v858
        %v2538 = vunpack.c.l.b16 %v859
        %v2539 = vunpack.c.h.b16 %v859
        %v2540 = vunpack.c.l.b16 %v860
        %v2541 = vunpack.c.h.b16 %v860
        %v2542 = vunpack.c.l.b16 %v861
        %v2543 = vunpack.c.h.b16 %v861
        %v2544 = vunpack.c.l.b16 %v862
        %v2545 = vunpack.c.h.b16 %v862
        %v2546 = vunpack.c.l.b16 %v863
        %v2547 = vunpack.c.h.b16 %v863
        %v2548 = vunpack.c.l.b16 %v864
        %v2549 = vunpack.c.h.b16 %v864
        %v2550 = vunpack.c.l.b16 %v865
        %v2551 = vunpack.c.h.b16 %v865
        %v2552 = vunpack.c.l.b16 %v866
        %v2553 = vunpack.c.h.b16 %v866
        %v2554 = vunpack.c.l.b16 %v867
        %v2555 = vunpack.c.h.b16 %v867
        %v2556 = vunpack.c.l.b16 %v868
        %v2557 = vunpack.c.h.b16 %v868
        %v2558 = vunpack.c.l.b16 %v869
        %v2559 = vunpack.c.h.b16 %v869
        %v2560 = vunpack.c.l.b16 %v870
        %v2561 = vunpack.c.h.b16 %v870
        %v2562 = vunpack.c.l.b16 %v871
        %v2563 = vunpack.c.h.b16 %v871
        %v2564 = vunpack.c.l.b16 %v872
        %v2565 = vunpack.c.h.b16 %v872
        %v2566 = vunpack.c.l.b16 %v873
        %v2567 = vunpack.c.h.b16 %v873
        %v2568 = vunpack.c.l.b16 %v874
        %v2569 = vunpack.c.h.b16 %v874
        %v2570 = vunpack.c.l.b16 %v875
        %v2571 = vunpack.c.h.b16 %v875
        %v2572 = vunpack.c.l.b16 %v876
        %v2573 = vunpack.c.h.b16 %v876
        %v2574 = vunpack.c.l.b16 %v877
        %v2575 = vunpack.c.h.b16 %v877
        %v2576 = vunpack.c.l.b16 %v878
        %v2577 = vunpack.c.h.b16 %v878
        %v2578 = vunpack.c.l.b16 %v879
        %v2579 = vunpack.c.h.b16 %v879
        %v2580 = vunpack.c.l.b16 %v880
        %v2581 = vunpack.c.h.b16 %v880
        %v2582 = vunpack.c.l.b16 %v881
        %v2583 = vunpack.c.h.b16 %v881
        %v2584 = vunpack.c.l.b16 %v882
        %v2585 = vunpack.c.h.b16 %v882
        %v2586 = vunpack.c.l.b16 %v883
        %v2587 = vunpack.c.h.b16 %v883
        %v2588 = vunpack.c.l.b16 %v884
        %v2589 = vunpack.c.h.b16 %v884
        %v2590 = vunpack.c.l.b16 %v885
        %v2591 = vunpack.c.h.b16 %v885
        %v2592 = vunpack.c.l.b16 %v886
        %v2593 = vunpack.c.h.b16 %v886
        %v2594 = vunpack.c.l.b16 %v887
        %v2595 = vunpack.c.h.b16 %v887
        %v2596 = vunpack.c.l.b16 %v888
        %v2597 = vunpack.c.h.b16 %v888
        %v2598 = vunpack.c.l.b16 %v889
        %v2599 = vunpack.c.h.b16 %v889
        %v2600 = vunpack.c.l.b16 %v890
        %v2601 = vunpack.c.h.b16 %v890
        %v2602 = vunpack.c.l.b16 %v891
        %v2603 = vunpack.c.h.b16 %v891
        %v2604 = vunpack.c.l.b16 %v892
        %v2605 = vunpack.c.h.b16 %v892
        %v2606 = vunpack.c.l.b16 %v893
        %v2607 = vunpack.c.h.b16 %v893
        %v2608 = vunpack.c.l.b16 %v894
        %v2609 = vunpack.c.h.b16 %v894
        %v2610 = vunpack.c.l.b16 %v895
        %v2611 = vunpack.c.h.b16 %v895
        %v2612 = vunpack.c.l.b16 %v896
        %v2613 = vunpack.c.h.b16 %v896
        %v2614 = vunpack.c.l.b16 %v897
        %v2615 = vunpack.c.h.b16 %v897
        %v2616 = vunpack.c.l.b16 %v898
        %v2617 = vunpack.c.h.b16 %v898
        %v2618 = vunpack.c.l.b16 %v899
        %v2619 = vunpack.c.h.b16 %v899
        %v2620 = vunpack.c.l.b16 %v900
        %v2621 = vunpack.c.h.b16 %v900
        %v2622 = vunpack.c.l.b16 %v901
        %v2623 = vunpack.c.h.b16 %v901
        %v2624 = vunpack.c.l.b16 %v902
        %v2625 = vunpack.c.h.b16 %v902
        %v2626 = vunpack.c.l.b16 %v903
        %v2627 = vunpack.c.h.b16 %v903
        %v2628 = vunpack.c.l.b16 %v904
        %v2629 = vunpack.c.h.b16 %v904
        %v2630 = vunpack.c.l.b16 %v905
        %v2631 = vunpack.c.h.b16 %v905
        %v2632 = vunpack.c.l.b16 %v906
        %v2633 = vunpack.c.h.b16 %v906
        %v2634 = vunpack.c.l.b16 %v907
        %v2635 = vunpack.c.h.b16 %v907
        %v2636 = vunpack.c.l.b16 %v908
        %v2637 = vunpack.c.h.b16 %v908
        %v2638 = vunpack.c.l.b16 %v909
        %v2639 = vunpack.c.h.b16 %v909
        %v2640 = vunpack.c.l.b16 %v910
        %v2641 = vunpack.c.h.b16 %v910
        %v2642 = vunpack.c.l.b16 %v911
        %v2643 = vunpack.c.h.b16 %v911
        %v2644 = vunpack.c.l.b16 %v912
        %v2645 = vunpack.c.h.b16 %v912
        %v2646 = vunpack.c.l.b16 %v913
        %v2647 = vunpack.c.h.b16 %v913
        %v2648 = vunpack.c.l.b16 %v914
        %v2649 = vunpack.c.h.b16 %v914
        %v2650 = vunpack.c.l.b16 %v915
        %v2651 = vunpack.c.h.b16 %v915
        %v2652 = vunpack.c.l.b16 %v916
        %v2653 = vunpack.c.h.b16 %v916
        %v2654 = vunpack.c.l.b16 %v917
        %v2655 = vunpack.c.h.b16 %v917
        %v2656 = vunpack.c.l.b16 %v918
        %v2657 = vunpack.c.h.b16 %v918
        %v2658 = vunpack.c.l.b16 %v919
        %v2659 = vunpack.c.h.b16 %v919
        %v2660 = vunpack.c.l.b16 %v920
        %v2661 = vunpack.c.h.b16 %v920
        %v2662 = vunpack.c.l.b16 %v921
        %v2663 = vunpack.c.h.b16 %v921
        %v2664 = vunpack.c.l.b16 %v922
        %v2665 = vunpack.c.h.b16 %v922
        %v2666 = vunpack.c.l.b16 %v923
        %v2667 = vunpack.c.h.b16 %v923
        %v2668 = vunpack.c.l.b16 %v924
        %v2669 = vunpack.c.h.b16 %v924
        %v2670 = vunpack.c.l.b16 %v925
        %v2671 = vunpack.c.h.b16 %v925
        %v2672 = vunpack.c.l.b16 %v926
        %v2673 = vunpack.c.h.b16 %v926
        %v2674 = vunpack.c.l.b16 %v927
        %v2675 = vunpack.c.h.b16 %v927
        %v2676 = vunpack.c.l.b16 %v928
        %v2677 = vunpack.c.h.b16 %v928
        %v2678 = vunpack.c.l.b16 %v929
        %v2679 = vunpack.c.h.b16 %v929
        %v2680 = vpack.c.b16 %v1532, %v1528
        %v2681 = vpack.c.b16 %v1533, %v1529
        %v2682 = vpack.c.b16 %v1534, %v1530
        %v2683 = vpack.c.b16 %v1535, %v1531
        %v2684 = vpack.c.b16 %v1540, %v1536
        %v2685 = vpack.c.b16 %v1541, %v1537
        %v2686 = vpack.c.b16 %v1542, %v1538
        %v2687 = vpack.c.b16 %v1543, %v1539
        %v2688 = vpack.c.b16 %v1548, %v1544
        %v2689 = vpack.c.b16 %v1549, %v1545
        %v2690 = vpack.c.b16 %v1550, %v1546
        %v2691 = vpack.c.b16 %v1551, %v1547
        %v2692 = vpack.c.b16 %v1556, %v1552
        %v2693 = vpack.c.b16 %v1557, %v1553
        %v2694 = vpack.c.b16 %v1558, %v1554
        %v2695 = vpack.c.b16 %v1559, %v1555
        %v2696 = vpack.c.b16 %v1564, %v1560
        %v2697 = vpack.c.b16 %v1565, %v1561
        %v2698 = vpack.c.b16 %v1566, %v1562
        %v2699 = vpack.c.b16 %v1567, %v1563
        %v2700 = vpack.c.b16 %v1572, %v1568
        %v2701 = vpack.c.b16 %v1573, %v1569
        %v2702 = vpack.c.b16 %v1574, %v1570
        %v2703 = vpack.c.b16 %v1575, %v1571
        %v2704 = vpack.c.b16 %v1580, %v1576
        %v2705 = vpack.c.b16 %v1581, %v1577
        %v2706 = vpack.c.b16 %v1582, %v1578
        %v2707 = vpack.c.b16 %v1583, %v1579
        %v2708 = vpack.c.b16 %v1588, %v1584
        %v2709 = vpack.c.b16 %v1589, %v1585
        %v2710 = vpack.c.b16 %v1590, %v1586
        %v2711 = vpack.c.b16 %v1591, %v1587
        %v2712 = vpack.c.b16 %v1596, %v1592
        %v2713 = vpack.c.b16 %v1597, %v1593
        %v2714 = vpack.c.b16 %v1598, %v1594
        %v2715 = vpack.c.b16 %v1599, %v1595
        %v2716 = vpack.c.b16 %v1604, %v1600
        %v2717 = vpack.c.b16 %v1605, %v1601
        %v2718 = vpack.c.b16 %v1606, %v1602
        %v2719 = vpack.c.b16 %v1607, %v1603
        %v2720 = vpack.c.b16 %v1612, %v1608
        %v2721 = vpack.c.b16 %v1613, %v1609
        %v2722 = vpack.c.b16 %v1614, %v1610
        %v2723 = vpack.c.b16 %v1615, %v1611
        %v2724 = vpack.c.b16 %v1620, %v1616
        %v2725 = vpack.c.b16 %v1621, %v1617
        %v2726 = vpack.c.b16 %v1622, %v1618
        %v2727 = vpack.c.b16 %v1623, %v1619
        %v2728 = vpack.c.b16 %v1628, %v1624
        %v2729 = vpack.c.b16 %v1629, %v1625
        %v2730 = vpack.c.b16 %v1630, %v1626
        %v2731 = vpack.c.b16 %v1631, %v1627
        %v2732 = vpack.c.b16 %v1636, %v1632
        %v2733 = vpack.c.b16 %v1637, %v1633
        %v2734 = vpack.c.b16 %v1638, %v1634
        %v2735 = vpack.c.b16 %v1639, %v1635
        %v2736 = vpack.c.b16 %v1644, %v1640
        %v2737 = vpack.c.b16 %v1645, %v1641
        %v2738 = vpack.c.b16 %v1646, %v1642
        %v2739 = vpack.c.b16 %v1647, %v1643
        %v2740 = vpack.c.b16 %v1652, %v1648
        %v2741 = vpack.c.b16 %v1653, %v1649
        %v2742 = vpack.c.b16 %v1654, %v1650
        %v2743 = vpack.c.b16 %v1655, %v1651
        %v2744 = vpack.c.b16 %v1660, %v1656
        %v2745 = vpack.c.b16 %v1661, %v1657
        %v2746 = vpack.c.b16 %v1662, %v1658
        %v2747 = vpack.c.b16 %v1663, %v1659
        %v2748 = vpack.c.b16 %v1668, %v1664
        %v2749 = vpack.c.b16 %v1669, %v1665
        %v2750 = vpack.c.b16 %v1670, %v1666
        %v2751 = vpack.c.b16 %v1671, %v1667
        %v2752 = vpack.c.b16 %v1676, %v1672
        %v2753 = vpack.c.b16 %v1677, %v1673
        %v2754 = vpack.c.b16 %v1678, %v1674
        %v2755 = vpack.c.b16 %v1679, %v1675
        %v2756 = vpack.c.b16 %v1684, %v1680
        %v2757 = vpack.c.b16 %v1685, %v1681
        %v2758 = vpack.c.b16 %v1686, %v1682
        %v2759 = vpack.c.b16 %v1687, %v1683
        %v2760 = vpack.c.b16 %v1692, %v1688
        %v2761 = vpack.c.b16 %v1693, %v1689
        %v2762 = vpack.c.b16 %v1694, %v1690
        %v2763 = vpack.c.b16 %v1695, %v1691
        %v2764 = vpack.c.b16 %v1700, %v1696
        %v2765 = vpack.c.b16 %v1701, %v1697
        %v2766 = vpack.c.b16 %v1702, %v1698
        %v2767 = vpack.c.b16 %v1703, %v1699
        %v2768 = vpack.c.b16 %v1708, %v1704
        %v2769 = vpack.c.b16 %v1709, %v1705
        %v2770 = vpack.c.b16 %v1710, %v1706
        %v2771 = vpack.c.b16 %v1711, %v1707
        %v2772 = vpack.c.b16 %v1716, %v1712
        %v2773 = vpack.c.b16 %v1717, %v1713
        %v2774 = vpack.c.b16 %v1718, %v1714
        %v2775 = vpack.c.b16 %v1719, %v1715
        %v2776 = vpack.c.b16 %v1724, %v1720
        %v2777 = vpack.c.b16 %v1725, %v1721
        %v2778 = vpack.c.b16 %v1726, %v1722
        %v2779 = vpack.c.b16 %v1727, %v1723
        %v2780 = vpack.c.b16 %v1732, %v1728
        %v2781 = vpack.c.b16 %v1733, %v1729
        %v2782 = vpack.c.b16 %v1734, %v1730
        %v2783 = vpack.c.b16 %v1735, %v1731
        %v2784 = vpack.c.b16 %v1740, %v1736
        %v2785 = vpack.c.b16 %v1741, %v1737
        %v2786 = vpack.c.b16 %v1742, %v1738
        %v2787 = vpack.c.b16 %v1743, %v1739
        %v2788 = vpack.c.b16 %v1748, %v1744
        %v2789 = vpack.c.b16 %v1749, %v1745
        %v2790 = vpack.c.b16 %v1750, %v1746
        %v2791 = vpack.c.b16 %v1751, %v1747
        %v2792 = vpack.c.b16 %v1756, %v1752
        %v2793 = vpack.c.b16 %v1757, %v1753
        %v2794 = vpack.c.b16 %v1758, %v1754
        %v2795 = vpack.c.b16 %v1759, %v1755
        %v2796 = vpack.c.b16 %v1764, %v1760
        %v2797 = vpack.c.b16 %v1765, %v1761
        %v2798 = vpack.c.b16 %v1766, %v1762
        %v2799 = vpack.c.b16 %v1767, %v1763
        %v2800 = vpack.c.b16 %v1772, %v1768
        %v2801 = vpack.c.b16 %v1773, %v1769
        %v2802 = vpack.c.b16 %v1774, %v1770
        %v2803 = vpack.c.b16 %v1775, %v1771
        %v2804 = vpack.c.b16 %v1780, %v1776
        %v2805 = vpack.c.b16 %v1781, %v1777
        %v2806 = vpack.c.b16 %v1782, %v1778
        %v2807 = vpack.c.b16 %v1783, %v1779
        %v2808 = vpack.c.b16 %v1788, %v1784
        %v2809 = vpack.c.b16 %v1789, %v1785
        %v2810 = vpack.c.b16 %v1790, %v1786
        %v2811 = vpack.c.b16 %v1791, %v1787
        %v2812 = vpack.c.b16 %v1796, %v1792
        %v2813 = vpack.c.b16 %v1797, %v1793
        %v2814 = vpack.c.b16 %v1798, %v1794
        %v2815 = vpack.c.b16 %v1799, %v1795
        %v2816 = vpack.c.b16 %v1804, %v1800
        %v2817 = vpack.c.b16 %v1805, %v1801
        %v2818 = vpack.c.b16 %v1806, %v1802
        %v2819 = vpack.c.b16 %v1807, %v1803
        %v2820 = vpack.c.b16 %v1812, %v1808
        %v2821 = vpack.c.b16 %v1813, %v1809
        %v2822 = vpack.c.b16 %v1814, %v1810
        %v2823 = vpack.c.b16 %v1815, %v1811
        %v2824 = vpack.c.b16 %v1820, %v1816
        %v2825 = vpack.c.b16 %v1821, %v1817
        %v2826 = vpack.c.b16 %v1822, %v1818
        %v2827 = vpack.c.b16 %v1823, %v1819
        %v2828 = vpack.c.b16 %v1828, %v1824
        %v2829 = vpack.c.b16 %v1829, %v1825
        %v2830 = vpack.c.b16 %v1830, %v1826
        %v2831 = vpack.c.b16 %v1831, %v1827
        %v2832 = vpack.c.b16 %v1836, %v1832
        %v2833 = vpack.c.b16 %v1837, %v1833
        %v2834 = vpack.c.b16 %v1838, %v1834
        %v2835 = vpack.c.b16 %v1839, %v1835
        %v2836 = vpack.c.b16 %v1844, %v1840
        %v2837 = vpack.c.b16 %v1845, %v1841
        %v2838 = vpack.c.b16 %v1846, %v1842
        %v2839 = vpack.c.b16 %v1847, %v1843
        %v2840 = vpack.c.b16 %v1852, %v1848
        %v2841 = vpack.c.b16 %v1853, %v1849
        %v2842 = vpack.c.b16 %v1854, %v1850
        %v2843 = vpack.c.b16 %v1855, %v1851
        %v2844 = vpack.c.b16 %v1860, %v1856
        %v2845 = vpack.c.b16 %v1861, %v1857
        %v2846 = vpack.c.b16 %v1862, %v1858
        %v2847 = vpack.c.b16 %v1863, %v1859
        %v2848 = vpack.c.b16 %v1868, %v1864
        %v2849 = vpack.c.b16 %v1869, %v1865
        %v2850 = vpack.c.b16 %v1870, %v1866
        %v2851 = vpack.c.b16 %v1871, %v1867
        %v2852 = vpack.c.b16 %v1876, %v1872
        %v2853 = vpack.c.b16 %v1877, %v1873
        %v2854 = vpack.c.b16 %v1878, %v1874
        %v2855 = vpack.c.b16 %v1879, %v1875
        %v2856 = vpack.c.b16 %v1884, %v1880
        %v2857 = vpack.c.b16 %v1885, %v1881
        %v2858 = vpack.c.b16 %v1886, %v1882
        %v2859 = vpack.c.b16 %v1887, %v1883
        %v2860 = vpack.c.b16 %v1892, %v1888
        %v2861 = vpack.c.b16 %v1893, %v1889
        %v2862 = vpack.c.b16 %v1894, %v1890
        %v2863 = vpack.c.b16 %v1895, %v1891
        %v2864 = vpack.c.b16 %v1900, %v1896
        %v2865 = vpack.c.b16 %v1901, %v1897
        %v2866 = vpack.c.b16 %v1902, %v1898
        %v2867 = vpack.c.b16 %v1903, %v1899
        %v2868 = vpack.c.b16 %v1908, %v1904
        %v2869 = vpack.c.b16 %v1909, %v1905
        %v2870 = vpack.c.b16 %v1910, %v1906
        %v2871 = vpack.c.b16 %v1911, %v1907
        %v2872 = vpack.c.b16 %v1916, %v1912
        %v2873 = vpack.c.b16 %v1917, %v1913
        %v2874 = vpack.c.b16 %v1918, %v1914
        %v2875 = vpack.c.b16 %v1919, %v1915
        %v2876 = vpack.c.b16 %v1924, %v1920
        %v2877 = vpack.c.b16 %v1925, %v1921
        %v2878 = vpack.c.b16 %v1926, %v1922
        %v2879 = vpack.c.b16 %v1927, %v1923
        %v2880 = vpack.c.b16 %v1932, %v1928
        %v2881 = vpack.c.b16 %v1933, %v1929
        %v2882 = vpack.c.b16 %v1934, %v1930
        %v2883 = vpack.c.b16 %v1935, %v1931
        %v2884 = vpack.c.b16 %v1940, %v1936
        %v2885 = vpack.c.b16 %v1941, %v1937
        %v2886 = vpack.c.b16 %v1942, %v1938
        %v2887 = vpack.c.b16 %v1943, %v1939
        %v2888 = vpack.c.b16 %v1948, %v1944
        %v2889 = vpack.c.b16 %v1949, %v1945
        %v2890 = vpack.c.b16 %v1950, %v1946
        %v2891 = vpack.c.b16 %v1951, %v1947
        %v2892 = vpack.c.b16 %v1956, %v1952
        %v2893 = vpack.c.b16 %v1957, %v1953
        %v2894 = vpack.c.b16 %v1958, %v1954
        %v2895 = vpack.c.b16 %v1959, %v1955
        %v2896 = vpack.c.b16 %v1964, %v1960
        %v2897 = vpack.c.b16 %v1965, %v1961
        %v2898 = vpack.c.b16 %v1966, %v1962
        %v2899 = vpack.c.b16 %v1967, %v1963
        %v2900 = vpack.c.b16 %v1972, %v1968
        %v2901 = vpack.c.b16 %v1973, %v1969
        %v2902 = vpack.c.b16 %v1974, %v1970
        %v2903 = vpack.c.b16 %v1975, %v1971
        %v2904 = vpack.c.b16 %v1980, %v1976
        %v2905 = vpack.c.b16 %v1981, %v1977
        %v2906 = vpack.c.b16 %v1982, %v1978
        %v2907 = vpack.c.b16 %v1983, %v1979
        %v2908 = vpack.c.b16 %v1988, %v1984
        %v2909 = vpack.c.b16 %v1989, %v1985
        %v2910 = vpack.c.b16 %v1990, %v1986
        %v2911 = vpack.c.b16 %v1991, %v1987
        %v2912 = vpack.c.b16 %v1996, %v1992
        %v2913 = vpack.c.b16 %v1997, %v1993
        %v2914 = vpack.c.b16 %v1998, %v1994
        %v2915 = vpack.c.b16 %v1999, %v1995
        %v2916 = vpack.c.b16 %v2004, %v2000
        %v2917 = vpack.c.b16 %v2005, %v2001
        %v2918 = vpack.c.b16 %v2006, %v2002
        %v2919 = vpack.c.b16 %v2007, %v2003
        %v2920 = vpack.c.b16 %v2012, %v2008
        %v2921 = vpack.c.b16 %v2013, %v2009
        %v2922 = vpack.c.b16 %v2014, %v2010
        %v2923 = vpack.c.b16 %v2015, %v2011
        %v2924 = vpack.c.b16 %v2020, %v2016
        %v2925 = vpack.c.b16 %v2021, %v2017
        %v2926 = vpack.c.b16 %v2022, %v2018
        %v2927 = vpack.c.b16 %v2023, %v2019
        %v2928 = vpack.c.b16 %v2028, %v2024
        %v2929 = vpack.c.b16 %v2029, %v2025
        %v2930 = vpack.c.b16 %v2030, %v2026
        %v2931 = vpack.c.b16 %v2031, %v2027
        %v2932 = vpack.c.b16 %v2036, %v2032
        %v2933 = vpack.c.b16 %v2037, %v2033
        %v2934 = vpack.c.b16 %v2038, %v2034
        %v2935 = vpack.c.b16 %v2039, %v2035
        %v2936 = vpack.c.b16 %v2044, %v2040
        %v2937 = vpack.c.b16 %v2045, %v2041
        %v2938 = vpack.c.b16 %v2046, %v2042
        %v2939 = vpack.c.b16 %v2047, %v2043
        %v2940 = vpack.c.b16 %v2052, %v2048
        %v2941 = vpack.c.b16 %v2053, %v2049
        %v2942 = vpack.c.b16 %v2054, %v2050
        %v2943 = vpack.c.b16 %v2055, %v2051
        %v2944 = vpack.c.b16 %v2060, %v2056
        %v2945 = vpack.c.b16 %v2061, %v2057
        %v2946 = vpack.c.b16 %v2062, %v2058
        %v2947 = vpack.c.b16 %v2063, %v2059
        %v2948 = vpack.c.b16 %v2068, %v2064
        %v2949 = vpack.c.b16 %v2069, %v2065
        %v2950 = vpack.c.b16 %v2070, %v2066
        %v2951 = vpack.c.b16 %v2071, %v2067
        %v2952 = vpack.c.b16 %v2076, %v2072
        %v2953 = vpack.c.b16 %v2077, %v2073
        %v2954 = vpack.c.b16 %v2078, %v2074
        %v2955 = vpack.c.b16 %v2079, %v2075
        %v2956 = vpack.c.b16 %v2084, %v2080
        %v2957 = vpack.c.b16 %v2085, %v2081
        %v2958 = vpack.c.b16 %v2086, %v2082
        %v2959 = vpack.c.b16 %v2087, %v2083
        %v2960 = vpack.c.b16 %v2092, %v2088
        %v2961 = vpack.c.b16 %v2093, %v2089
        %v2962 = vpack.c.b16 %v2094, %v2090
        %v2963 = vpack.c.b16 %v2095, %v2091
        %v2964 = vpack.c.b16 %v2100, %v2096
        %v2965 = vpack.c.b16 %v2101, %v2097
        %v2966 = vpack.c.b16 %v2102, %v2098
        %v2967 = vpack.c.b16 %v2103, %v2099
        %v2968 = vpack.c.b16 %v2108, %v2104
        %v2969 = vpack.c.b16 %v2109, %v2105
        %v2970 = vpack.c.b16 %v2110, %v2106
        %v2971 = vpack.c.b16 %v2111, %v2107
        %v2972 = vpack.c.b16 %v2116, %v2112
        %v2973 = vpack.c.b16 %v2117, %v2113
        %v2974 = vpack.c.b16 %v2118, %v2114
        %v2975 = vpack.c.b16 %v2119, %v2115
        %v2976 = vpack.c.b16 %v2124, %v2120
        %v2977 = vpack.c.b16 %v2125, %v2121
        %v2978 = vpack.c.b16 %v2126, %v2122
        %v2979 = vpack.c.b16 %v2127, %v2123
        %v2980 = vpack.c.b16 %v2132, %v2128
        %v2981 = vpack.c.b16 %v2133, %v2129
        %v2982 = vpack.c.b16 %v2134, %v2130
        %v2983 = vpack.c.b16 %v2135, %v2131
        %v2984 = vpack.c.b16 %v2140, %v2136
        %v2985 = vpack.c.b16 %v2141, %v2137
        %v2986 = vpack.c.b16 %v2142, %v2138
        %v2987 = vpack.c.b16 %v2143, %v2139
        %v2988 = vpack.c.b16 %v2148, %v2144
        %v2989 = vpack.c.b16 %v2149, %v2145
        %v2990 = vpack.c.b16 %v2150, %v2146
        %v2991 = vpack.c.b16 %v2151, %v2147
        %v2992 = vpack.c.b16 %v2156, %v2152
        %v2993 = vpack.c.b16 %v2157, %v2153
        %v2994 = vpack.c.b16 %v2158, %v2154
        %v2995 = vpack.c.b16 %v2159, %v2155
        %v2996 = vpack.c.b16 %v2164, %v2160
        %v2997 = vpack.c.b16 %v2165, %v2161
        %v2998 = vpack.c.b16 %v2166, %v2162
        %v2999 = vpack.c.b16 %v2167, %v2163
        %v3000 = vpack.c.b16 %v2172, %v2168
        %v3001 = vpack.c.b16 %v2173, %v2169
        %v3002 = vpack.c.b16 %v2174, %v2170
        %v3003 = vpack.c.b16 %v2175, %v2171
        %v3004 = vpack.c.b16 %v2180, %v2176
        %v3005 = vpack.c.b16 %v2181, %v2177
        %v3006 = vpack.c.b16 %v2182, %v2178
        %v3007 = vpack.c.b16 %v2183, %v2179
        %v3008 = vpack.c.b16 %v2188, %v2184
        %v3009 = vpack.c.b16 %v2189, %v2185
        %v3010 = vpack.c.b16 %v2190, %v2186
        %v3011 = vpack.c.b16 %v2191, %v2187
        %v3012 = vpack.c.b16 %v2196, %v2192
        %v3013 = vpack.c.b16 %v2197, %v2193
        %v3014 = vpack.c.b16 %v2198, %v2194
        %v3015 = vpack.c.b16 %v2199, %v2195
        %v3016 = vpack.c.b16 %v2204, %v2200
        %v3017 = vpack.c.b16 %v2205, %v2201
        %v3018 = vpack.c.b16 %v2206, %v2202
        %v3019 = vpack.c.b16 %v2207, %v2203
        %v3020 = vpack.c.b16 %v2212, %v2208
        %v3021 = vpack.c.b16 %v2213, %v2209
        %v3022 = vpack.c.b16 %v2214, %v2210
        %v3023 = vpack.c.b16 %v2215, %v2211
        %v3024 = vpack.c.b16 %v2220, %v2216
        %v3025 = vpack.c.b16 %v2221, %v2217
        %v3026 = vpack.c.b16 %v2222, %v2218
        %v3027 = vpack.c.b16 %v2223, %v2219
        %v3028 = vpack.c.b16 %v2228, %v2224
        %v3029 = vpack.c.b16 %v2229, %v2225
        %v3030 = vpack.c.b16 %v2230, %v2226
        %v3031 = vpack.c.b16 %v2231, %v2227
        %v3032 = vpack.c.b16 %v2236, %v2232
        %v3033 = vpack.c.b16 %v2237, %v2233
        %v3034 = vpack.c.b16 %v2238, %v2234
        %v3035 = vpack.c.b16 %v2239, %v2235
        %v3036 = vpack.c.b16 %v2244, %v2240
        %v3037 = vpack.c.b16 %v2245, %v2241
        %v3038 = vpack.c.b16 %v2246, %v2242
        %v3039 = vpack.c.b16 %v2247, %v2243
        %v3040 = vpack.c.b16 %v2252, %v2248
        %v3041 = vpack.c.b16 %v2253, %v2249
        %v3042 = vpack.c.b16 %v2254, %v2250
        %v3043 = vpack.c.b16 %v2255, %v2251
        %v3044 = vpack.c.b16 %v2260, %v2256
        %v3045 = vpack.c.b16 %v2261, %v2257
        %v3046 = vpack.c.b16 %v2262, %v2258
        %v3047 = vpack.c.b16 %v2263, %v2259
        %v3048 = vpack.c.b16 %v2268, %v2264
        %v3049 = vpack.c.b16 %v2269, %v2265
        %v3050 = vpack.c.b16 %v2270, %v2266
        %v3051 = vpack.c.b16 %v2271, %v2267
        %v3052 = vpack.c.b16 %v2276, %v2272
        %v3053 = vpack.c.b16 %v2277, %v2273
        %v3054 = vpack.c.b16 %v2278, %v2274
        %v3055 = vpack.c.b16 %v2279, %v2275
        %v3056 = vpack.c.b16 %v2284, %v2280
        %v3057 = vpack.c.b16 %v2285, %v2281
        %v3058 = vpack.c.b16 %v2286, %v2282
        %v3059 = vpack.c.b16 %v2287, %v2283
        %v3060 = vpack.c.b16 %v2292, %v2288
        %v3061 = vpack.c.b16 %v2293, %v2289
        %v3062 = vpack.c.b16 %v2294, %v2290
        %v3063 = vpack.c.b16 %v2295, %v2291
        %v3064 = vpack.c.b16 %v2300, %v2296
        %v3065 = vpack.c.b16 %v2301, %v2297
        %v3066 = vpack.c.b16 %v2302, %v2298
        %v3067 = vpack.c.b16 %v2303, %v2299
        %v3068 = vpack.c.b16 %v2308, %v2304
        %v3069 = vpack.c.b16 %v2309, %v2305
        %v3070 = vpack.c.b16 %v2310, %v2306
        %v3071 = vpack.c.b16 %v2311, %v2307
        %v3072 = vpack.c.b16 %v2316, %v2312
        %v3073 = vpack.c.b16 %v2317, %v2313
        %v3074 = vpack.c.b16 %v2318, %v2314
        %v3075 = vpack.c.b16 %v2319, %v2315
        %v3076 = vpack.c.b16 %v2324, %v2320
        %v3077 = vpack.c.b16 %v2325, %v2321
        %v3078 = vpack.c.b16 %v2326, %v2322
        %v3079 = vpack.c.b16 %v2327, %v2323
        %v3080 = vpack.c.b16 %v2332, %v2328
        %v3081 = vpack.c.b16 %v2333, %v2329
        %v3082 = vpack.c.b16 %v2334, %v2330
        %v3083 = vpack.c.b16 %v2335, %v2331
        %v3084 = vpack.c.b16 %v2340, %v2336
        %v3085 = vpack.c.b16 %v2341, %v2337
        %v3086 = vpack.c.b16 %v2342, %v2338
        %v3087 = vpack.c.b16 %v2343, %v2339
        %v3088 = vpack.c.b16 %v2348, %v2344
        %v3089 = vpack.c.b16 %v2349, %v2345
        %v3090 = vpack.c.b16 %v2350, %v2346
        %v3091 = vpack.c.b16 %v2351, %v2347
        %v3092 = vpack.c.b16 %v2356, %v2352
        %v3093 = vpack.c.b16 %v2357, %v2353
        %v3094 = vpack.c.b16 %v2358, %v2354
        %v3095 = vpack.c.b16 %v2359, %v2355
        %v3096 = vpack.c.b16 %v2364, %v2360
        %v3097 = vpack.c.b16 %v2365, %v2361
        %v3098 = vpack.c.b16 %v2366, %v2362
        %v3099 = vpack.c.b16 %v2367, %v2363
        %v3100 = vpack.c.b16 %v2372, %v2368
        %v3101 = vpack.c.b16 %v2373, %v2369
        %v3102 = vpack.c.b16 %v2374, %v2370
        %v3103 = vpack.c.b16 %v2375, %v2371
        %v3104 = vpack.c.b16 %v2380, %v2376
        %v3105 = vpack.c.b16 %v2381, %v2377
        %v3106 = vpack.c.b16 %v2382, %v2378
        %v3107 = vpack.c.b16 %v2383, %v2379
        %v3108 = vpack.c.b16 %v2388, %v2384
        %v3109 = vpack.c.b16 %v2389, %v2385
        %v3110 = vpack.c.b16 %v2390, %v2386
        %v3111 = vpack.c.b16 %v2391, %v2387
        %v3112 = vpack.c.b16 %v2396, %v2392
        %v3113 = vpack.c.b16 %v2397, %v2393
        %v3114 = vpack.c.b16 %v2398, %v2394
        %v3115 = vpack.c.b16 %v2399, %v2395
        %v3116 = vpack.c.b16 %v2404, %v2400
        %v3117 = vpack.c.b16 %v2405, %v2401
        %v3118 = vpack.c.b16 %v2406, %v2402
        %v3119 = vpack.c.b16 %v2407, %v2403
        %v3120 = vpack.c.b16 %v2412, %v2408
        %v3121 = vpack.c.b16 %v2413, %v2409
        %v3122 = vpack.c.b16 %v2414, %v2410
        %v3123 = vpack.c.b16 %v2415, %v2411
        %v3124 = vpack.c.b16 %v2420, %v2416
        %v3125 = vpack.c.b16 %v2421, %v2417
        %v3126 = vpack.c.b16 %v2422, %v2418
        %v3127 = vpack.c.b16 %v2423, %v2419
        %v3128 = vpack.c.b16 %v2428, %v2424
        %v3129 = vpack.c.b16 %v2429, %v2425
        %v3130 = vpack.c.b16 %v2430, %v2426
        %v3131 = vpack.c.b16 %v2431, %v2427
        %v3132 = vpack.c.b16 %v2436, %v2432
        %v3133 = vpack.c.b16 %v2437, %v2433
        %v3134 = vpack.c.b16 %v2438, %v2434
        %v3135 = vpack.c.b16 %v2439, %v2435
        %v3136 = vpack.c.b16 %v2444, %v2440
        %v3137 = vpack.c.b16 %v2445, %v2441
        %v3138 = vpack.c.b16 %v2446, %v2442
        %v3139 = vpack.c.b16 %v2447, %v2443
        %v3140 = vpack.c.b16 %v2452, %v2448
        %v3141 = vpack.c.b16 %v2453, %v2449
        %v3142 = vpack.c.b16 %v2454, %v2450
        %v3143 = vpack.c.b16 %v2455, %v2451
        %v3144 = vpack.c.b16 %v2460, %v2456
        %v3145 = vpack.c.b16 %v2461, %v2457
        %v3146 = vpack.c.b16 %v2462, %v2458
        %v3147 = vpack.c.b16 %v2463, %v2459
        %v3148 = vpack.c.b16 %v2468, %v2464
        %v3149 = vpack.c.b16 %v2469, %v2465
        %v3150 = vpack.c.b16 %v2470, %v2466
        %v3151 = vpack.c.b16 %v2471, %v2467
        %v3152 = vpack.c.b16 %v2476, %v2472
        %v3153 = vpack.c.b16 %v2477, %v2473
        %v3154 = vpack.c.b16 %v2478, %v2474
        %v3155 = vpack.c.b16 %v2479, %v2475
        %v3156 = vpack.c.b16 %v2484, %v2480
        %v3157 = vpack.c.b16 %v2485, %v2481
        %v3158 = vpack.c.b16 %v2486, %v2482
        %v3159 = vpack.c.b16 %v2487, %v2483
        %v3160 = vpack.c.b16 %v2492, %v2488
        %v3161 = vpack.c.b16 %v2493, %v2489
        %v3162 = vpack.c.b16 %v2494, %v2490
        %v3163 = vpack.c.b16 %v2495, %v2491
        %v3164 = vpack.c.b16 %v2500, %v2496
        %v3165 = vpack.c.b16 %v2501, %v2497
        %v3166 = vpack.c.b16 %v2502, %v2498
        %v3167 = vpack.c.b16 %v2503, %v2499
        %v3168 = vpack.c.b16 %v2508, %v2504
        %v3169 = vpack.c.b16 %v2509, %v2505
        %v3170 = vpack.c.b16 %v2510, %v2506
        %v3171 = vpack.c.b16 %v2511, %v2507
        %v3172 = vpack.c.b16 %v2516, %v2512
        %v3173 = vpack.c.b16 %v2517, %v2513
        %v3174 = vpack.c.b16 %v2518, %v2514
        %v3175 = vpack.c.b16 %v2519, %v2515
        %v3176 = vpack.c.b16 %v2524, %v2520
        %v3177 = vpack.c.b16 %v2525, %v2521
        %v3178 = vpack.c.b16 %v2526, %v2522
        %v3179 = vpack.c.b16 %v2527, %v2523
        %v3180 = vpack.c.b16 %v2532, %v2528
        %v3181 = vpack.c.b16 %v2533, %v2529
        %v3182 = vpack.c.b16 %v2534, %v2530
        %v3183 = vpack.c.b16 %v2535, %v2531
        %v3184 = vpack.c.b16 %v2540, %v2536
        %v3185 = vpack.c.b16 %v2541, %v2537
        %v3186 = vpack.c.b16 %v2542, %v2538
        %v3187 = vpack.c.b16 %v2543, %v2539
        %v3188 = vpack.c.b16 %v2548, %v2544
        %v3189 = vpack.c.b16 %v2549, %v2545
        %v3190 = vpack.c.b16 %v2550, %v2546
        %v3191 = vpack.c.b16 %v2551, %v2547
        %v3192 = vpack.c.b16 %v2556, %v2552
        %v3193 = vpack.c.b16 %v2557, %v2553
        %v3194 = vpack.c.b16 %v2558, %v2554
        %v3195 = vpack.c.b16 %v2559, %v2555
        %v3196 = vpack.c.b16 %v2564, %v2560
        %v3197 = vpack.c.b16 %v2565, %v2561
        %v3198 = vpack.c.b16 %v2566, %v2562
        %v3199 = vpack.c.b16 %v2567, %v2563
        %v3200 = vpack.c.b16 %v2572, %v2568
        %v3201 = vpack.c.b16 %v2573, %v2569
        %v3202 = vpack.c.b16 %v2574, %v2570
        %v3203 = vpack.c.b16 %v2575, %v2571
        %v3204 = vpack.c.b16 %v2580, %v2576
        %v3205 = vpack.c.b16 %v2581, %v2577
        %v3206 = vpack.c.b16 %v2582, %v2578
        %v3207 = vpack.c.b16 %v2583, %v2579
        %v3208 = vpack.c.b16 %v2588, %v2584
        %v3209 = vpack.c.b16 %v2589, %v2585
        %v3210 = vpack.c.b16 %v2590, %v2586
        %v3211 = vpack.c.b16 %v2591, %v2587
        %v3212 = vpack.c.b16 %v2596, %v2592
        %v3213 = vpack.c.b16 %v2597, %v2593
        %v3214 = vpack.c.b16 %v2598, %v2594
        %v3215 = vpack.c.b16 %v2599, %v2595
        %v3216 = vpack.c.b16 %v2604, %v2600
        %v3217 = vpack.c.b16 %v2605, %v2601
        %v3218 = vpack.c.b16 %v2606, %v2602
        %v3219 = vpack.c.b16 %v2607, %v2603
        %v3220 = vpack.c.b16 %v2612, %v2608
        %v3221 = vpack.c.b16 %v2613, %v2609
        %v3222 = vpack.c.b16 %v2614, %v2610
        %v3223 = vpack.c.b16 %v2615, %v2611
        %v3224 = vpack.c.b16 %v2620, %v2616
        %v3225 = vpack.c.b16 %v2621, %v2617
        %v3226 = vpack.c.b16 %v2622, %v2618
        %v3227 = vpack.c.b16 %v2623, %v2619
        %v3228 = vpack.c.b16 %v2628, %v2624
        %v3229 = vpack.c.b16 %v2629, %v2625
        %v3230 = vpack.c.b16 %v2630, %v2626
        %v3231 = vpack.c.b16 %v2631, %v2627
        %v3232 = vpack.c.b16 %v2636, %v2632
        %v3233 = vpack.c.b16 %v2637, %v2633
        %v3234 = vpack.c.b16 %v2638, %v2634
        %v3235 = vpack.c.b16 %v2639, %v2635
        %v3236 = vpack.c.b16 %v2644, %v2640
        %v3237 = vpack.c.b16 %v2645, %v2641
        %v3238 = vpack.c.b16 %v2646, %v2642
        %v3239 = vpack.c.b16 %v2647, %v2643
        %v3240 = vpack.c.b16 %v2652, %v2648
        %v3241 = vpack.c.b16 %v2653, %v2649
        %v3242 = vpack.c.b16 %v2654, %v2650
        %v3243 = vpack.c.b16 %v2655, %v2651
        %v3244 = vpack.c.b16 %v2660, %v2656
        %v3245 = vpack.c.b16 %v2661, %v2657
        %v3246 = vpack.c.b16 %v2662, %v2658
        %v3247 = vpack.c.b16 %v2663, %v2659
        %v3248 = vpack.c.b16 %v2668, %v2664
        %v3249 = vpack.c.b16 %v2669, %v2665
        %v3250 = vpack.c.b16 %v2670, %v2666
        %v3251 = vpack.c.b16 %v2671, %v2667
        %v3252 = vpack.c.b16 %v2676, %v2672
        %v3253 = vpack.c.b16 %v2677, %v2673
        %v3254 = vpack.c.b16 %v2678, %v2674
        %v3255 = vpack.c.b16 %v2679, %v2675
        %3832 = vmatprep.subr.bf16.mxu0 %v2681
        %3833 = vmatpush1.bf16.msra.mxu0 %v2680
        %3834 = vmatprep.subr.bf16.mxu0 %v2685
        %3835 = vmatpush1.bf16.msra.mxu0 %v2684
        %3836 = vmatprep.subr.bf16.mxu0 %v2689
        %3837 = vmatpush1.bf16.msra.mxu0 %v2688
        %3838 = vmatprep.subr.bf16.mxu0 %v2693
        %3839 = vmatpush1.bf16.msra.mxu0 %v2692
        %3840 = vmatprep.subr.bf16.mxu0 %v2697
        %3841 = vmatpush1.bf16.msra.mxu0 %v2696
        %3842 = vmatprep.subr.bf16.mxu0 %v2701
        %3843 = vmatpush1.bf16.msra.mxu0 %v2700
        %3844 = vmatprep.subr.bf16.mxu0 %v2705
        %3845 = vmatpush1.bf16.msra.mxu0 %v2704
        %3846 = vmatprep.subr.bf16.mxu0 %v2709
        %3847 = vmatpush1.bf16.msra.mxu0 %v2708
        %3848 = vmatprep.subr.bf16.mxu0 %v2713
        %3849 = vmatpush1.bf16.msra.mxu0 %v2712
        %3850 = vmatprep.subr.bf16.mxu0 %v2717
        %3851 = vmatpush1.bf16.msra.mxu0 %v2716
        %3852 = vmatprep.subr.bf16.mxu0 %v2721
        %3853 = vmatpush1.bf16.msra.mxu0 %v2720
        %3854 = vmatprep.subr.bf16.mxu0 %v2725
        %3855 = vmatpush1.bf16.msra.mxu0 %v2724
        %3856 = vmatprep.subr.bf16.mxu0 %v2729
        %3857 = vmatpush1.bf16.msra.mxu0 %v2728
        %3858 = vmatprep.subr.bf16.mxu0 %v2733
        %3859 = vmatpush1.bf16.msra.mxu0 %v2732
        %3860 = vmatprep.subr.bf16.mxu0 %v2737
        %3861 = vmatpush1.bf16.msra.mxu0 %v2736
        %3862 = vmatprep.subr.bf16.mxu0 %v2741
        %3863 = vmatpush1.bf16.msra.mxu0 %v2740
        %3864 = vmatprep.mubr.bf16.mxu0 %v337
        %3865 = vmatmul.mubr.bf16.gmra.mrb[0].mxu0 %v336
        %v3866 = vpop.f32.mrb[0].mxu0
        %v3867 = vadd.f32 %v935, %v3866
        %v3868 = vpop.f32.mrb[0].mxu0
        %v3869 = vadd.f32 %v939, %v3868
        %v3870 = vpop.f32.mrb[0].mxu0
        %v3871 = vadd.f32 %v935, %v3870
        %v3872 = vpop.f32.mrb[0].mxu0
        %v3873 = vadd.f32 %v939, %v3872
        %3874 = vdwg.mxu0
        %3875 = vmatprep.subr.bf16.mxu0 %v2745
        %3876 = vmatpush1.bf16.msra.mxu0 %v2744
        %3877 = vmatprep.subr.bf16.mxu0 %v2749
        %3878 = vmatpush1.bf16.msra.mxu0 %v2748
        %3879 = vmatprep.subr.bf16.mxu0 %v2753
        %3880 = vmatpush1.bf16.msra.mxu0 %v2752
        %3881 = vmatprep.subr.bf16.mxu0 %v2757
        %3882 = vmatpush1.bf16.msra.mxu0 %v2756
        %3883 = vmatprep.subr.bf16.mxu0 %v2761
        %3884 = vmatpush1.bf16.msra.mxu0 %v2760
        %3885 = vmatprep.subr.bf16.mxu0 %v2765
        %3886 = vmatpush1.bf16.msra.mxu0 %v2764
        %3887 = vmatprep.subr.bf16.mxu0 %v2769
        %3888 = vmatpush1.bf16.msra.mxu0 %v2768
        %3889 = vmatprep.subr.bf16.mxu0 %v2773
        %3890 = vmatpush1.bf16.msra.mxu0 %v2772
        %3891 = vmatprep.subr.bf16.mxu0 %v2777
        %3892 = vmatpush1.bf16.msra.mxu0 %v2776
        %3893 = vmatprep.subr.bf16.mxu0 %v2781
        %3894 = vmatpush1.bf16.msra.mxu0 %v2780
        %3895 = vmatprep.subr.bf16.mxu0 %v2785
        %3896 = vmatpush1.bf16.msra.mxu0 %v2784
        %3897 = vmatprep.subr.bf16.mxu0 %v2789
        %3898 = vmatpush1.bf16.msra.mxu0 %v2788
        %3899 = vmatprep.subr.bf16.mxu0 %v2793
        %3900 = vmatpush1.bf16.msra.mxu0 %v2792
        %3901 = vmatprep.subr.bf16.mxu0 %v2797
        %3902 = vmatpush1.bf16.msra.mxu0 %v2796
        %3903 = vmatprep.subr.bf16.mxu0 %v2801
        %3904 = vmatpush1.bf16.msra.mxu0 %v2800
        %3905 = vmatprep.subr.bf16.mxu0 %v2805
        %3906 = vmatpush1.bf16.msra.mxu0 %v2804
        %3907 = vmatprep.mubr.bf16.mxu0 %v339
        %3908 = vmatmul.mubr.bf16.gmra.mrb[0].mxu0 %v338
        %v3909 = vpop.f32.mrb[0].mxu0
        %v3910 = vadd.f32 %v3867, %v3909
        %v3911 = vpop.f32.mrb[0].mxu0
        %v3912 = vadd.f32 %v3869, %v3911
        %v3913 = vpop.f32.mrb[0].mxu0
        %v3914 = vadd.f32 %v3871, %v3913
        %v3915 = vpop.f32.mrb[0].mxu0
        %v3916 = vadd.f32 %v3873, %v3915
        %3917 = vdwg.mxu0
        %3918 = vmatprep.subr.bf16.mxu0 %v2809
        %3919 = vmatpush1.bf16.msra.mxu0 %v2808
        %3920 = vmatprep.subr.bf16.mxu0 %v2813
        %3921 = vmatpush1.bf16.msra.mxu0 %v2812
        %3922 = vmatprep.subr.bf16.mxu0 %v2817
        %3923 = vmatpush1.bf16.msra.mxu0 %v2816
        %3924 = vmatprep.subr.bf16.mxu0 %v2821
        %3925 = vmatpush1.bf16.msra.mxu0 %v2820
        %3926 = vmatprep.subr.bf16.mxu0 %v2825
        %3927 = vmatpush1.bf16.msra.mxu0 %v2824
        %3928 = vmatprep.subr.bf16.mxu0 %v2829
        %3929 = vmatpush1.bf16.msra.mxu0 %v2828
        %3930 = vmatprep.subr.bf16.mxu0 %v2833
        %3931 = vmatpush1.bf16.msra.mxu0 %v2832
        %3932 = vmatprep.subr.bf16.mxu0 %v2837
        %3933 = vmatpush1.bf16.msra.mxu0 %v2836
        %3934 = vmatprep.subr.bf16.mxu0 %v2841
        %3935 = vmatpush1.bf16.msra.mxu0 %v2840
        %3936 = vmatprep.subr.bf16.mxu0 %v2845
        %3937 = vmatpush1.bf16.msra.mxu0 %v2844
        %3938 = vmatprep.subr.bf16.mxu0 %v2849
        %3939 = vmatpush1.bf16.msra.mxu0 %v2848
        %3940 = vmatprep.subr.bf16.mxu0 %v2853
        %3941 = vmatpush1.bf16.msra.mxu0 %v2852
        %3942 = vmatprep.subr.bf16.mxu0 %v2857
        %3943 = vmatpush1.bf16.msra.mxu0 %v2856
        %3944 = vmatprep.subr.bf16.mxu0 %v2861
        %3945 = vmatpush1.bf16.msra.mxu0 %v2860
        %3946 = vmatprep.subr.bf16.mxu0 %v2865
        %3947 = vmatpush1.bf16.msra.mxu0 %v2864
        %3948 = vmatprep.subr.bf16.mxu0 %v2869
        %3949 = vmatpush1.bf16.msra.mxu0 %v2868
        %3950 = vmatprep.mubr.bf16.mxu0 %v341
        %3951 = vmatmul.mubr.bf16.gmra.mrb[0].mxu0 %v340
        %v3952 = vpop.f32.mrb[0].mxu0
        %v3953 = vadd.f32 %v3910, %v3952
        %v3954 = vpop.f32.mrb[0].mxu0
        %v3955 = vadd.f32 %v3912, %v3954
        %v3956 = vpop.f32.mrb[0].mxu0
        %v3957 = vadd.f32 %v3914, %v3956
        %v3958 = vpop.f32.mrb[0].mxu0
        %v3959 = vadd.f32 %v3916, %v3958
        %3960 = vdwg.mxu0
        %3961 = vmatprep.subr.bf16.mxu0 %v2873
        %3962 = vmatpush1.bf16.msra.mxu0 %v2872
        %3963 = vmatprep.subr.bf16.mxu0 %v2877
        %3964 = vmatpush1.bf16.msra.mxu0 %v2876
        %3965 = vmatprep.subr.bf16.mxu0 %v2881
        %3966 = vmatpush1.bf16.msra.mxu0 %v2880
        %3967 = vmatprep.subr.bf16.mxu0 %v2885
        %3968 = vmatpush1.bf16.msra.mxu0 %v2884
        %3969 = vmatprep.subr.bf16.mxu0 %v2889
        %3970 = vmatpush1.bf16.msra.mxu0 %v2888
        %3971 = vmatprep.subr.bf16.mxu0 %v2893
        %3972 = vmatpush1.bf16.msra.mxu0 %v2892
        %3973 = vmatprep.subr.bf16.mxu0 %v2897
        %3974 = vmatpush1.bf16.msra.mxu0 %v2896
        %3975 = vmatprep.subr.bf16.mxu0 %v2901
        %3976 = vmatpush1.bf16.msra.mxu0 %v2900
        %3977 = vmatprep.subr.bf16.mxu0 %v2905
        %3978 = vmatpush1.bf16.msra.mxu0 %v2904
        %3979 = vmatprep.subr.bf16.mxu0 %v2909
        %3980 = vmatpush1.bf16.msra.mxu0 %v2908
        %3981 = vmatprep.subr.bf16.mxu0 %v2913
        %3982 = vmatpush1.bf16.msra.mxu0 %v2912
        %3983 = vmatprep.subr.bf16.mxu0 %v2917
        %3984 = vmatpush1.bf16.msra.mxu0 %v2916
        %3985 = vmatprep.subr.bf16.mxu0 %v2921
        %3986 = vmatpush1.bf16.msra.mxu0 %v2920
        %3987 = vmatprep.subr.bf16.mxu0 %v2925
        %3988 = vmatpush1.bf16.msra.mxu0 %v2924
        %3989 = vmatprep.subr.bf16.mxu0 %v2929
        %3990 = vmatpush1.bf16.msra.mxu0 %v2928
        %3991 = vmatprep.subr.bf16.mxu0 %v2933
        %3992 = vmatpush1.bf16.msra.mxu0 %v2932
        %3993 = vmatprep.mubr.bf16.mxu0 %v343
        %3994 = vmatmul.mubr.bf16.gmra.mrb[0].mxu0 %v342
        %v3995 = vpop.f32.mrb[0].mxu0
        %v3996 = vadd.f32 %v3953, %v3995
        %v3997 = vpop.f32.mrb[0].mxu0
        %v3998 = vadd.f32 %v3955, %v3997
        %v3999 = vpop.f32.mrb[0].mxu0
        %v4000 = vadd.f32 %v3957, %v3999
        %v4001 = vpop.f32.mrb[0].mxu0
        %v4002 = vadd.f32 %v3959, %v4001
        %4003 = vdwg.mxu0
        %4004 = vmatprep.subr.bf16.mxu0 %v2937
        %4005 = vmatpush1.bf16.msra.mxu0 %v2936
        %4006 = vmatprep.subr.bf16.mxu0 %v2941
        %4007 = vmatpush1.bf16.msra.mxu0 %v2940
        %4008 = vmatprep.subr.bf16.mxu0 %v2945
        %4009 = vmatpush1.bf16.msra.mxu0 %v2944
        %4010 = vmatprep.subr.bf16.mxu0 %v2949
        %4011 = vmatpush1.bf16.msra.mxu0 %v2948
        %4012 = vmatprep.subr.bf16.mxu0 %v2953
        %4013 = vmatpush1.bf16.msra.mxu0 %v2952
        %4014 = vmatprep.subr.bf16.mxu0 %v2957
        %4015 = vmatpush1.bf16.msra.mxu0 %v2956
        %4016 = vmatprep.subr.bf16.mxu0 %v2961
        %4017 = vmatpush1.bf16.msra.mxu0 %v2960
        %4018 = vmatprep.subr.bf16.mxu0 %v2965
        %4019 = vmatpush1.bf16.msra.mxu0 %v2964
        %4020 = vmatprep.subr.bf16.mxu0 %v2969
        %4021 = vmatpush1.bf16.msra.mxu0 %v2968
        %4022 = vmatprep.subr.bf16.mxu0 %v2973
        %4023 = vmatpush1.bf16.msra.mxu0 %v2972
        %4024 = vmatprep.subr.bf16.mxu0 %v2977
        %4025 = vmatpush1.bf16.msra.mxu0 %v2976
        %4026 = vmatprep.subr.bf16.mxu0 %v2981
        %4027 = vmatpush1.bf16.msra.mxu0 %v2980
        %4028 = vmatprep.subr.bf16.mxu0 %v2985
        %4029 = vmatpush1.bf16.msra.mxu0 %v2984
        %4030 = vmatprep.subr.bf16.mxu0 %v2989
        %4031 = vmatpush1.bf16.msra.mxu0 %v2988
        %4032 = vmatprep.subr.bf16.mxu0 %v2993
        %4033 = vmatpush1.bf16.msra.mxu0 %v2992
        %4034 = vmatprep.subr.bf16.mxu0 %v2997
        %4035 = vmatpush1.bf16.msra.mxu0 %v2996
        %4036 = vmatprep.mubr.bf16.mxu0 %v345
        %4037 = vmatmul.mubr.bf16.gmra.mrb[0].mxu0 %v344
        %v4038 = vpop.f32.mrb[0].mxu0
        %v4039 = vadd.f32 %v3996, %v4038
        %v4040 = vpop.f32.mrb[0].mxu0
        %v4041 = vadd.f32 %v3998, %v4040
        %v4042 = vpop.f32.mrb[0].mxu0
        %v4043 = vadd.f32 %v4000, %v4042
        %v4044 = vpop.f32.mrb[0].mxu0
        %v4045 = vadd.f32 %v4002, %v4044
        %4046 = vdwg.mxu0
        %4047 = vmatprep.subr.bf16.mxu0 %v3001
        %4048 = vmatpush1.bf16.msra.mxu0 %v3000
        %4049 = vmatprep.subr.bf16.mxu0 %v3005
        %4050 = vmatpush1.bf16.msra.mxu0 %v3004
        %4051 = vmatprep.subr.bf16.mxu0 %v3009
        %4052 = vmatpush1.bf16.msra.mxu0 %v3008
        %4053 = vmatprep.subr.bf16.mxu0 %v3013
        %4054 = vmatpush1.bf16.msra.mxu0 %v3012
        %4055 = vmatprep.subr.bf16.mxu0 %v3017
        %4056 = vmatpush1.bf16.msra.mxu0 %v3016
        %4057 = vmatprep.subr.bf16.mxu0 %v3021
        %4058 = vmatpush1.bf16.msra.mxu0 %v3020
        %4059 = vmatprep.subr.bf16.mxu0 %v3025
        %4060 = vmatpush1.bf16.msra.mxu0 %v3024
        %4061 = vmatprep.subr.bf16.mxu0 %v3029
        %4062 = vmatpush1.bf16.msra.mxu0 %v3028
        %4063 = vmatprep.subr.bf16.mxu0 %v3033
        %4064 = vmatpush1.bf16.msra.mxu0 %v3032
        %4065 = vmatprep.subr.bf16.mxu0 %v3037
        %4066 = vmatpush1.bf16.msra.mxu0 %v3036
        %4067 = vmatprep.subr.bf16.mxu0 %v3041
        %4068 = vmatpush1.bf16.msra.mxu0 %v3040
        %4069 = vmatprep.subr.bf16.mxu0 %v3045
        %4070 = vmatpush1.bf16.msra.mxu0 %v3044
        %4071 = vmatprep.subr.bf16.mxu0 %v3049
        %4072 = vmatpush1.bf16.msra.mxu0 %v3048
        %4073 = vmatprep.subr.bf16.mxu0 %v3053
        %4074 = vmatpush1.bf16.msra.mxu0 %v3052
        %4075 = vmatprep.subr.bf16.mxu0 %v3057
        %4076 = vmatpush1.bf16.msra.mxu0 %v3056
        %4077 = vmatprep.subr.bf16.mxu0 %v3061
        %4078 = vmatpush1.bf16.msra.mxu0 %v3060
        %4079 = vmatprep.mubr.bf16.mxu0 %v347
        %4080 = vmatmul.mubr.bf16.gmra.mrb[0].mxu0 %v346
        %v4081 = vpop.f32.mrb[0].mxu0
        %v4082 = vadd.f32 %v4039, %v4081
        %v4083 = vpop.f32.mrb[0].mxu0
        %v4084 = vadd.f32 %v4041, %v4083
        %v4085 = vpop.f32.mrb[0].mxu0
        %v4086 = vadd.f32 %v4043, %v4085
        %v4087 = vpop.f32.mrb[0].mxu0
        %v4088 = vadd.f32 %v4045, %v4087
        %4089 = vdwg.mxu0
        %4090 = vmatprep.subr.bf16.mxu0 %v3065
        %4091 = vmatpush1.bf16.msra.mxu0 %v3064
        %4092 = vmatprep.subr.bf16.mxu0 %v3069
        %4093 = vmatpush1.bf16.msra.mxu0 %v3068
        %4094 = vmatprep.subr.bf16.mxu0 %v3073
        %4095 = vmatpush1.bf16.msra.mxu0 %v3072
        %4096 = vmatprep.subr.bf16.mxu0 %v3077
        %4097 = vmatpush1.bf16.msra.mxu0 %v3076
        %4098 = vmatprep.subr.bf16.mxu0 %v3081
        %4099 = vmatpush1.bf16.msra.mxu0 %v3080
        %4100 = vmatprep.subr.bf16.mxu0 %v3085
        %4101 = vmatpush1.bf16.msra.mxu0 %v3084
        %4102 = vmatprep.subr.bf16.mxu0 %v3089
        %4103 = vmatpush1.bf16.msra.mxu0 %v3088
        %4104 = vmatprep.subr.bf16.mxu0 %v3093
        %4105 = vmatpush1.bf16.msra.mxu0 %v3092
        %4106 = vmatprep.subr.bf16.mxu0 %v3097
        %4107 = vmatpush1.bf16.msra.mxu0 %v3096
        %4108 = vmatprep.subr.bf16.mxu0 %v3101
        %4109 = vmatpush1.bf16.msra.mxu0 %v3100
        %4110 = vmatprep.subr.bf16.mxu0 %v3105
        %4111 = vmatpush1.bf16.msra.mxu0 %v3104
        %4112 = vmatprep.subr.bf16.mxu0 %v3109
        %4113 = vmatpush1.bf16.msra.mxu0 %v3108
        %4114 = vmatprep.subr.bf16.mxu0 %v3113
        %4115 = vmatpush1.bf16.msra.mxu0 %v3112
        %4116 = vmatprep.subr.bf16.mxu0 %v3117
        %4117 = vmatpush1.bf16.msra.mxu0 %v3116
        %4118 = vmatprep.subr.bf16.mxu0 %v3121
        %4119 = vmatpush1.bf16.msra.mxu0 %v3120
        %4120 = vmatprep.subr.bf16.mxu0 %v3125
        %4121 = vmatpush1.bf16.msra.mxu0 %v3124
        %4122 = vmatprep.mubr.bf16.mxu0 %v349
        %4123 = vmatmul.mubr.bf16.gmra.mrb[0].mxu0 %v348
        %v4124 = vpop.f32.mrb[0].mxu0
        %v4125 = vadd.f32 %v4082, %v4124
        %v4126 = vpop.f32.mrb[0].mxu0
        %v4127 = vadd.f32 %v4084, %v4126
        %v4128 = vpop.f32.mrb[0].mxu0
        %v4129 = vadd.f32 %v4086, %v4128
        %v4130 = vpop.f32.mrb[0].mxu0
        %v4131 = vadd.f32 %v4088, %v4130
        %4132 = vdwg.mxu0
        %4133 = vmatprep.subr.bf16.mxu0 %v3129
        %4134 = vmatpush1.bf16.msra.mxu0 %v3128
        %4135 = vmatprep.subr.bf16.mxu0 %v3133
        %4136 = vmatpush1.bf16.msra.mxu0 %v3132
        %4137 = vmatprep.subr.bf16.mxu0 %v3137
        %4138 = vmatpush1.bf16.msra.mxu0 %v3136
        %4139 = vmatprep.subr.bf16.mxu0 %v3141
        %4140 = vmatpush1.bf16.msra.mxu0 %v3140
        %4141 = vmatprep.subr.bf16.mxu0 %v3145
        %4142 = vmatpush1.bf16.msra.mxu0 %v3144
        %4143 = vmatprep.subr.bf16.mxu0 %v3149
        %4144 = vmatpush1.bf16.msra.mxu0 %v3148
        %4145 = vmatprep.subr.bf16.mxu0 %v3153
        %4146 = vmatpush1.bf16.msra.mxu0 %v3152
        %4147 = vmatprep.subr.bf16.mxu0 %v3157
        %4148 = vmatpush1.bf16.msra.mxu0 %v3156
        %4149 = vmatprep.subr.bf16.mxu0 %v3161
        %4150 = vmatpush1.bf16.msra.mxu0 %v3160
        %4151 = vmatprep.subr.bf16.mxu0 %v3165
        %4152 = vmatpush1.bf16.msra.mxu0 %v3164
        %4153 = vmatprep.subr.bf16.mxu0 %v3169
        %4154 = vmatpush1.bf16.msra.mxu0 %v3168
        %4155 = vmatprep.subr.bf16.mxu0 %v3173
        %4156 = vmatpush1.bf16.msra.mxu0 %v3172
        %4157 = vmatprep.subr.bf16.mxu0 %v3177
        %4158 = vmatpush1.bf16.msra.mxu0 %v3176
        %4159 = vmatprep.subr.bf16.mxu0 %v3181
        %4160 = vmatpush1.bf16.msra.mxu0 %v3180
        %4161 = vmatprep.subr.bf16.mxu0 %v3185
        %4162 = vmatpush1.bf16.msra.mxu0 %v3184
        %4163 = vmatprep.subr.bf16.mxu0 %v3189
        %4164 = vmatpush1.bf16.msra.mxu0 %v3188
        %4165 = vmatprep.mubr.bf16.mxu0 %v351
        %4166 = vmatmul.mubr.bf16.gmra.mrb[0].mxu0 %v350
        %v4167 = vpop.f32.mrb[0].mxu0
        %v4168 = vadd.f32 %v4125, %v4167
        %v4169 = vpop.f32.mrb[0].mxu0
        %v4170 = vadd.f32 %v4127, %v4169
        %v4171 = vpop.f32.mrb[0].mxu0
        %v4172 = vadd.f32 %v4129, %v4171
        %v4173 = vpop.f32.mrb[0].mxu0
        %v4174 = vadd.f32 %v4131, %v4173
        %4175 = vdwg.mxu0
        %4176 = vmatprep.subr.bf16.mxu0 %v3193
        %4177 = vmatpush1.bf16.msra.mxu0 %v3192
        %4178 = vmatprep.subr.bf16.mxu0 %v3197
        %4179 = vmatpush1.bf16.msra.mxu0 %v3196
        %4180 = vmatprep.subr.bf16.mxu0 %v3201
        %4181 = vmatpush1.bf16.msra.mxu0 %v3200
        %4182 = vmatprep.subr.bf16.mxu0 %v3205
        %4183 = vmatpush1.bf16.msra.mxu0 %v3204
        %4184 = vmatprep.subr.bf16.mxu0 %v3209
        %4185 = vmatpush1.bf16.msra.mxu0 %v3208
        %4186 = vmatprep.subr.bf16.mxu0 %v3213
        %4187 = vmatpush1.bf16.msra.mxu0 %v3212
        %4188 = vmatprep.subr.bf16.mxu0 %v3217
        %4189 = vmatpush1.bf16.msra.mxu0 %v3216
        %4190 = vmatprep.subr.bf16.mxu0 %v3221
        %4191 = vmatpush1.bf16.msra.mxu0 %v3220
        %4192 = vmatprep.subr.bf16.mxu0 %v3225
        %4193 = vmatpush1.bf16.msra.mxu0 %v3224
        %4194 = vmatprep.subr.bf16.mxu0 %v3229
        %4195 = vmatpush1.bf16.msra.mxu0 %v3228
        %4196 = vmatprep.subr.bf16.mxu0 %v3233
        %4197 = vmatpush1.bf16.msra.mxu0 %v3232
        %4198 = vmatprep.subr.bf16.mxu0 %v3237
        %4199 = vmatpush1.bf16.msra.mxu0 %v3236
        %4200 = vmatprep.subr.bf16.mxu0 %v3241
        %4201 = vmatpush1.bf16.msra.mxu0 %v3240
        %4202 = vmatprep.subr.bf16.mxu0 %v3245
        %4203 = vmatpush1.bf16.msra.mxu0 %v3244
        %4204 = vmatprep.subr.bf16.mxu0 %v3249
        %4205 = vmatpush1.bf16.msra.mxu0 %v3248
        %4206 = vmatprep.subr.bf16.mxu0 %v3253
        %4207 = vmatpush1.bf16.msra.mxu0 %v3252
        %4208 = vmatprep.mubr.bf16.mxu0 %v353
        %4209 = vmatmul.mubr.bf16.gmra.mrb[0].mxu0 %v352
        %v4210 = vpop.f32.mrb[0].mxu0
        %v4211 = vadd.f32 %v4168, %v4210
        %v4212 = vpop.f32.mrb[0].mxu0
        %v4213 = vadd.f32 %v4170, %v4212
        %v4214 = vpop.f32.mrb[0].mxu0
        %v4215 = vadd.f32 %v4172, %v4214
        %v4216 = vpop.f32.mrb[0].mxu0
        %v4217 = vadd.f32 %v4174, %v4216
        %4218 = vdwg.mxu0
        %4219 = vmatprep.subr.bf16.mxu0 %v2683
        %4220 = vmatpush1.bf16.msra.mxu0 %v2682
        %4221 = vmatprep.subr.bf16.mxu0 %v2687
        %4222 = vmatpush1.bf16.msra.mxu0 %v2686
        %4223 = vmatprep.subr.bf16.mxu0 %v2691
        %4224 = vmatpush1.bf16.msra.mxu0 %v2690
        %4225 = vmatprep.subr.bf16.mxu0 %v2695
        %4226 = vmatpush1.bf16.msra.mxu0 %v2694
        %4227 = vmatprep.subr.bf16.mxu0 %v2699
        %4228 = vmatpush1.bf16.msra.mxu0 %v2698
        %4229 = vmatprep.subr.bf16.mxu0 %v2703
        %4230 = vmatpush1.bf16.msra.mxu0 %v2702
        %4231 = vmatprep.subr.bf16.mxu0 %v2707
        %4232 = vmatpush1.bf16.msra.mxu0 %v2706
        %4233 = vmatprep.subr.bf16.mxu0 %v2711
        %4234 = vmatpush1.bf16.msra.mxu0 %v2710
        %4235 = vmatprep.subr.bf16.mxu0 %v2715
        %4236 = vmatpush1.bf16.msra.mxu0 %v2714
        %4237 = vmatprep.subr.bf16.mxu0 %v2719
        %4238 = vmatpush1.bf16.msra.mxu0 %v2718
        %4239 = vmatprep.subr.bf16.mxu0 %v2723
        %4240 = vmatpush1.bf16.msra.mxu0 %v2722
        %4241 = vmatprep.subr.bf16.mxu0 %v2727
        %4242 = vmatpush1.bf16.msra.mxu0 %v2726
        %4243 = vmatprep.subr.bf16.mxu0 %v2731
        %4244 = vmatpush1.bf16.msra.mxu0 %v2730
        %4245 = vmatprep.subr.bf16.mxu0 %v2735
        %4246 = vmatpush1.bf16.msra.mxu0 %v2734
        %4247 = vmatprep.subr.bf16.mxu0 %v2739
        %4248 = vmatpush1.bf16.msra.mxu0 %v2738
        %4249 = vmatprep.subr.bf16.mxu0 %v2743
        %4250 = vmatpush1.bf16.msra.mxu0 %v2742
        %4251 = vmatprep.mubr.bf16.mxu0 %v337
        %4252 = vmatmul.mubr.bf16.gmra.mrb[0].mxu0 %v336
        %v4253 = vpop.f32.mrb[0].mxu0
        %v4254 = vadd.f32 %v943, %v4253
        %v4255 = vpop.f32.mrb[0].mxu0
        %v4256 = vadd.f32 %v947, %v4255
        %v4257 = vpop.f32.mrb[0].mxu0
        %v4258 = vadd.f32 %v943, %v4257
        %v4259 = vpop.f32.mrb[0].mxu0
        %v4260 = vadd.f32 %v947, %v4259
        %4261 = vdwg.mxu0
        %4262 = vmatprep.subr.bf16.mxu0 %v2747
        %4263 = vmatpush1.bf16.msra.mxu0 %v2746
        %4264 = vmatprep.subr.bf16.mxu0 %v2751
        %4265 = vmatpush1.bf16.msra.mxu0 %v2750
        %4266 = vmatprep.subr.bf16.mxu0 %v2755
        %4267 = vmatpush1.bf16.msra.mxu0 %v2754
        %4268 = vmatprep.subr.bf16.mxu0 %v2759
        %4269 = vmatpush1.bf16.msra.mxu0 %v2758
        %4270 = vmatprep.subr.bf16.mxu0 %v2763
        %4271 = vmatpush1.bf16.msra.mxu0 %v2762
        %4272 = vmatprep.subr.bf16.mxu0 %v2767
        %4273 = vmatpush1.bf16.msra.mxu0 %v2766
        %4274 = vmatprep.subr.bf16.mxu0 %v2771
        %4275 = vmatpush1.bf16.msra.mxu0 %v2770
        %4276 = vmatprep.subr.bf16.mxu0 %v2775
        %4277 = vmatpush1.bf16.msra.mxu0 %v2774
        %4278 = vmatprep.subr.bf16.mxu0 %v2779
        %4279 = vmatpush1.bf16.msra.mxu0 %v2778
        %4280 = vmatprep.subr.bf16.mxu0 %v2783
        %4281 = vmatpush1.bf16.msra.mxu0 %v2782
        %4282 = vmatprep.subr.bf16.mxu0 %v2787
        %4283 = vmatpush1.bf16.msra.mxu0 %v2786
        %4284 = vmatprep.subr.bf16.mxu0 %v2791
        %4285 = vmatpush1.bf16.msra.mxu0 %v2790
        %4286 = vmatprep.subr.bf16.mxu0 %v2795
        %4287 = vmatpush1.bf16.msra.mxu0 %v2794
        %4288 = vmatprep.subr.bf16.mxu0 %v2799
        %4289 = vmatpush1.bf16.msra.mxu0 %v2798
        %4290 = vmatprep.subr.bf16.mxu0 %v2803
        %4291 = vmatpush1.bf16.msra.mxu0 %v2802
        %4292 = vmatprep.subr.bf16.mxu0 %v2807
        %4293 = vmatpush1.bf16.msra.mxu0 %v2806
        %4294 = vmatprep.mubr.bf16.mxu0 %v339
        %4295 = vmatmul.mubr.bf16.gmra.mrb[0].mxu0 %v338
        %v4296 = vpop.f32.mrb[0].mxu0
        %v4297 = vadd.f32 %v4254, %v4296
        %v4298 = vpop.f32.mrb[0].mxu0
        %v4299 = vadd.f32 %v4256, %v4298
        %v4300 = vpop.f32.mrb[0].mxu0
        %v4301 = vadd.f32 %v4258, %v4300
        %v4302 = vpop.f32.mrb[0].mxu0
        %v4303 = vadd.f32 %v4260, %v4302
        %4304 = vdwg.mxu0
        %4305 = vmatprep.subr.bf16.mxu0 %v2811
        %4306 = vmatpush1.bf16.msra.mxu0 %v2810
        %4307 = vmatprep.subr.bf16.mxu0 %v2815
        %4308 = vmatpush1.bf16.msra.mxu0 %v2814
        %4309 = vmatprep.subr.bf16.mxu0 %v2819
        %4310 = vmatpush1.bf16.msra.mxu0 %v2818
        %4311 = vmatprep.subr.bf16.mxu0 %v2823
        %4312 = vmatpush1.bf16.msra.mxu0 %v2822
        %4313 = vmatprep.subr.bf16.mxu0 %v2827
        %4314 = vmatpush1.bf16.msra.mxu0 %v2826
        %4315 = vmatprep.subr.bf16.mxu0 %v2831
        %4316 = vmatpush1.bf16.msra.mxu0 %v2830
        %4317 = vmatprep.subr.bf16.mxu0 %v2835
        %4318 = vmatpush1.bf16.msra.mxu0 %v2834
        %4319 = vmatprep.subr.bf16.mxu0 %v2839
        %4320 = vmatpush1.bf16.msra.mxu0 %v2838
        %4321 = vmatprep.subr.bf16.mxu0 %v2843
        %4322 = vmatpush1.bf16.msra.mxu0 %v2842
        %4323 = vmatprep.subr.bf16.mxu0 %v2847
        %4324 = vmatpush1.bf16.msra.mxu0 %v2846
        %4325 = vmatprep.subr.bf16.mxu0 %v2851
        %4326 = vmatpush1.bf16.msra.mxu0 %v2850
        %4327 = vmatprep.subr.bf16.mxu0 %v2855
        %4328 = vmatpush1.bf16.msra.mxu0 %v2854
        %4329 = vmatprep.subr.bf16.mxu0 %v2859
        %4330 = vmatpush1.bf16.msra.mxu0 %v2858
        %4331 = vmatprep.subr.bf16.mxu0 %v2863
        %4332 = vmatpush1.bf16.msra.mxu0 %v2862
        %4333 = vmatprep.subr.bf16.mxu0 %v2867
        %4334 = vmatpush1.bf16.msra.mxu0 %v2866
        %4335 = vmatprep.subr.bf16.mxu0 %v2871
        %4336 = vmatpush1.bf16.msra.mxu0 %v2870
        %4337 = vmatprep.mubr.bf16.mxu0 %v341
        %4338 = vmatmul.mubr.bf16.gmra.mrb[0].mxu0 %v340
        %v4339 = vpop.f32.mrb[0].mxu0
        %v4340 = vadd.f32 %v4297, %v4339
        %v4341 = vpop.f32.mrb[0].mxu0
        %v4342 = vadd.f32 %v4299, %v4341
        %v4343 = vpop.f32.mrb[0].mxu0
        %v4344 = vadd.f32 %v4301, %v4343
        %v4345 = vpop.f32.mrb[0].mxu0
        %v4346 = vadd.f32 %v4303, %v4345
        %4347 = vdwg.mxu0
        %4348 = vmatprep.subr.bf16.mxu0 %v2875
        %4349 = vmatpush1.bf16.msra.mxu0 %v2874
        %4350 = vmatprep.subr.bf16.mxu0 %v2879
        %4351 = vmatpush1.bf16.msra.mxu0 %v2878
        %4352 = vmatprep.subr.bf16.mxu0 %v2883
        %4353 = vmatpush1.bf16.msra.mxu0 %v2882
        %4354 = vmatprep.subr.bf16.mxu0 %v2887
        %4355 = vmatpush1.bf16.msra.mxu0 %v2886
        %4356 = vmatprep.subr.bf16.mxu0 %v2891
        %4357 = vmatpush1.bf16.msra.mxu0 %v2890
        %4358 = vmatprep.subr.bf16.mxu0 %v2895
        %4359 = vmatpush1.bf16.msra.mxu0 %v2894
        %4360 = vmatprep.subr.bf16.mxu0 %v2899
        %4361 = vmatpush1.bf16.msra.mxu0 %v2898
        %4362 = vmatprep.subr.bf16.mxu0 %v2903
        %4363 = vmatpush1.bf16.msra.mxu0 %v2902
        %4364 = vmatprep.subr.bf16.mxu0 %v2907
        %4365 = vmatpush1.bf16.msra.mxu0 %v2906
        %4366 = vmatprep.subr.bf16.mxu0 %v2911
        %4367 = vmatpush1.bf16.msra.mxu0 %v2910
        %4368 = vmatprep.subr.bf16.mxu0 %v2915
        %4369 = vmatpush1.bf16.msra.mxu0 %v2914
        %4370 = vmatprep.subr.bf16.mxu0 %v2919
        %4371 = vmatpush1.bf16.msra.mxu0 %v2918
        %4372 = vmatprep.subr.bf16.mxu0 %v2923
        %4373 = vmatpush1.bf16.msra.mxu0 %v2922
        %4374 = vmatprep.subr.bf16.mxu0 %v2927
        %4375 = vmatpush1.bf16.msra.mxu0 %v2926
        %4376 = vmatprep.subr.bf16.mxu0 %v2931
        %4377 = vmatpush1.bf16.msra.mxu0 %v2930
        %4378 = vmatprep.subr.bf16.mxu0 %v2935
        %4379 = vmatpush1.bf16.msra.mxu0 %v2934
        %4380 = vmatprep.mubr.bf16.mxu0 %v343
        %4381 = vmatmul.mubr.bf16.gmra.mrb[0].mxu0 %v342
        %v4382 = vpop.f32.mrb[0].mxu0
        %v4383 = vadd.f32 %v4340, %v4382
        %v4384 = vpop.f32.mrb[0].mxu0
        %v4385 = vadd.f32 %v4342, %v4384
        %v4386 = vpop.f32.mrb[0].mxu0
        %v4387 = vadd.f32 %v4344, %v4386
        %v4388 = vpop.f32.mrb[0].mxu0
        %v4389 = vadd.f32 %v4346, %v4388
        %4390 = vdwg.mxu0
        %4391 = vmatprep.subr.bf16.mxu0 %v2939
        %4392 = vmatpush1.bf16.msra.mxu0 %v2938
        %4393 = vmatprep.subr.bf16.mxu0 %v2943
        %4394 = vmatpush1.bf16.msra.mxu0 %v2942
        %4395 = vmatprep.subr.bf16.mxu0 %v2947
        %4396 = vmatpush1.bf16.msra.mxu0 %v2946
        %4397 = vmatprep.subr.bf16.mxu0 %v2951
        %4398 = vmatpush1.bf16.msra.mxu0 %v2950
        %4399 = vmatprep.subr.bf16.mxu0 %v2955
        %4400 = vmatpush1.bf16.msra.mxu0 %v2954
        %4401 = vmatprep.subr.bf16.mxu0 %v2959
        %4402 = vmatpush1.bf16.msra.mxu0 %v2958
        %4403 = vmatprep.subr.bf16.mxu0 %v2963
        %4404 = vmatpush1.bf16.msra.mxu0 %v2962
        %4405 = vmatprep.subr.bf16.mxu0 %v2967
        %4406 = vmatpush1.bf16.msra.mxu0 %v2966
        %4407 = vmatprep.subr.bf16.mxu0 %v2971
        %4408 = vmatpush1.bf16.msra.mxu0 %v2970
        %4409 = vmatprep.subr.bf16.mxu0 %v2975
        %4410 = vmatpush1.bf16.msra.mxu0 %v2974
        %4411 = vmatprep.subr.bf16.mxu0 %v2979
        %4412 = vmatpush1.bf16.msra.mxu0 %v2978
        %4413 = vmatprep.subr.bf16.mxu0 %v2983
        %4414 = vmatpush1.bf16.msra.mxu0 %v2982
        %4415 = vmatprep.subr.bf16.mxu0 %v2987
        %4416 = vmatpush1.bf16.msra.mxu0 %v2986
        %4417 = vmatprep.subr.bf16.mxu0 %v2991
        %4418 = vmatpush1.bf16.msra.mxu0 %v2990
        %4419 = vmatprep.subr.bf16.mxu0 %v2995
        %4420 = vmatpush1.bf16.msra.mxu0 %v2994
        %4421 = vmatprep.subr.bf16.mxu0 %v2999
        %4422 = vmatpush1.bf16.msra.mxu0 %v2998
        %4423 = vmatprep.mubr.bf16.mxu0 %v345
        %4424 = vmatmul.mubr.bf16.gmra.mrb[0].mxu0 %v344
        %v4425 = vpop.f32.mrb[0].mxu0
        %v4426 = vadd.f32 %v4383, %v4425
        %v4427 = vpop.f32.mrb[0].mxu0
        %v4428 = vadd.f32 %v4385, %v4427
        %v4429 = vpop.f32.mrb[0].mxu0
        %v4430 = vadd.f32 %v4387, %v4429
        %v4431 = vpop.f32.mrb[0].mxu0
        %v4432 = vadd.f32 %v4389, %v4431
        %4433 = vdwg.mxu0
        %4434 = vmatprep.subr.bf16.mxu0 %v3003
        %4435 = vmatpush1.bf16.msra.mxu0 %v3002
        %4436 = vmatprep.subr.bf16.mxu0 %v3007
        %4437 = vmatpush1.bf16.msra.mxu0 %v3006
        %4438 = vmatprep.subr.bf16.mxu0 %v3011
        %4439 = vmatpush1.bf16.msra.mxu0 %v3010
        %4440 = vmatprep.subr.bf16.mxu0 %v3015
        %4441 = vmatpush1.bf16.msra.mxu0 %v3014
        %4442 = vmatprep.subr.bf16.mxu0 %v3019
        %4443 = vmatpush1.bf16.msra.mxu0 %v3018
        %4444 = vmatprep.subr.bf16.mxu0 %v3023
        %4445 = vmatpush1.bf16.msra.mxu0 %v3022
        %4446 = vmatprep.subr.bf16.mxu0 %v3027
        %4447 = vmatpush1.bf16.msra.mxu0 %v3026
        %4448 = vmatprep.subr.bf16.mxu0 %v3031
        %4449 = vmatpush1.bf16.msra.mxu0 %v3030
        %4450 = vmatprep.subr.bf16.mxu0 %v3035
        %4451 = vmatpush1.bf16.msra.mxu0 %v3034
        %4452 = vmatprep.subr.bf16.mxu0 %v3039
        %4453 = vmatpush1.bf16.msra.mxu0 %v3038
        %4454 = vmatprep.subr.bf16.mxu0 %v3043
        %4455 = vmatpush1.bf16.msra.mxu0 %v3042
        %4456 = vmatprep.subr.bf16.mxu0 %v3047
        %4457 = vmatpush1.bf16.msra.mxu0 %v3046
        %4458 = vmatprep.subr.bf16.mxu0 %v3051
        %4459 = vmatpush1.bf16.msra.mxu0 %v3050
        %4460 = vmatprep.subr.bf16.mxu0 %v3055
        %4461 = vmatpush1.bf16.msra.mxu0 %v3054
        %4462 = vmatprep.subr.bf16.mxu0 %v3059
        %4463 = vmatpush1.bf16.msra.mxu0 %v3058
        %4464 = vmatprep.subr.bf16.mxu0 %v3063
        %4465 = vmatpush1.bf16.msra.mxu0 %v3062
        %4466 = vmatprep.mubr.bf16.mxu0 %v347
        %4467 = vmatmul.mubr.bf16.gmra.mrb[0].mxu0 %v346
        %v4468 = vpop.f32.mrb[0].mxu0
        %v4469 = vadd.f32 %v4426, %v4468
        %v4470 = vpop.f32.mrb[0].mxu0
        %v4471 = vadd.f32 %v4428, %v4470
        %v4472 = vpop.f32.mrb[0].mxu0
        %v4473 = vadd.f32 %v4430, %v4472
        %v4474 = vpop.f32.mrb[0].mxu0
        %v4475 = vadd.f32 %v4432, %v4474
        %4476 = vdwg.mxu0
        %4477 = vmatprep.subr.bf16.mxu0 %v3067
        %4478 = vmatpush1.bf16.msra.mxu0 %v3066
        %4479 = vmatprep.subr.bf16.mxu0 %v3071
        %4480 = vmatpush1.bf16.msra.mxu0 %v3070
        %4481 = vmatprep.subr.bf16.mxu0 %v3075
        %4482 = vmatpush1.bf16.msra.mxu0 %v3074
        %4483 = vmatprep.subr.bf16.mxu0 %v3079
        %4484 = vmatpush1.bf16.msra.mxu0 %v3078
        %4485 = vmatprep.subr.bf16.mxu0 %v3083
        %4486 = vmatpush1.bf16.msra.mxu0 %v3082
        %4487 = vmatprep.subr.bf16.mxu0 %v3087
        %4488 = vmatpush1.bf16.msra.mxu0 %v3086
        %4489 = vmatprep.subr.bf16.mxu0 %v3091
        %4490 = vmatpush1.bf16.msra.mxu0 %v3090
        %4491 = vmatprep.subr.bf16.mxu0 %v3095
        %4492 = vmatpush1.bf16.msra.mxu0 %v3094
        %4493 = vmatprep.subr.bf16.mxu0 %v3099
        %4494 = vmatpush1.bf16.msra.mxu0 %v3098
        %4495 = vmatprep.subr.bf16.mxu0 %v3103
        %4496 = vmatpush1.bf16.msra.mxu0 %v3102
        %4497 = vmatprep.subr.bf16.mxu0 %v3107
        %4498 = vmatpush1.bf16.msra.mxu0 %v3106
        %4499 = vmatprep.subr.bf16.mxu0 %v3111
        %4500 = vmatpush1.bf16.msra.mxu0 %v3110
        %4501 = vmatprep.subr.bf16.mxu0 %v3115
        %4502 = vmatpush1.bf16.msra.mxu0 %v3114
        %4503 = vmatprep.subr.bf16.mxu0 %v3119
        %4504 = vmatpush1.bf16.msra.mxu0 %v3118
        %4505 = vmatprep.subr.bf16.mxu0 %v3123
        %4506 = vmatpush1.bf16.msra.mxu0 %v3122
        %4507 = vmatprep.subr.bf16.mxu0 %v3127
        %4508 = vmatpush1.bf16.msra.mxu0 %v3126
        %4509 = vmatprep.mubr.bf16.mxu0 %v349
        %4510 = vmatmul.mubr.bf16.gmra.mrb[0].mxu0 %v348
        %v4511 = vpop.f32.mrb[0].mxu0
        %v4512 = vadd.f32 %v4469, %v4511
        %v4513 = vpop.f32.mrb[0].mxu0
        %v4514 = vadd.f32 %v4471, %v4513
        %v4515 = vpop.f32.mrb[0].mxu0
        %v4516 = vadd.f32 %v4473, %v4515
        %v4517 = vpop.f32.mrb[0].mxu0
        %v4518 = vadd.f32 %v4475, %v4517
        %4519 = vdwg.mxu0
        %4520 = vmatprep.subr.bf16.mxu0 %v3131
        %4521 = vmatpush1.bf16.msra.mxu0 %v3130
        %4522 = vmatprep.subr.bf16.mxu0 %v3135
        %4523 = vmatpush1.bf16.msra.mxu0 %v3134
        %4524 = vmatprep.subr.bf16.mxu0 %v3139
        %4525 = vmatpush1.bf16.msra.mxu0 %v3138
        %4526 = vmatprep.subr.bf16.mxu0 %v3143
        %4527 = vmatpush1.bf16.msra.mxu0 %v3142
        %4528 = vmatprep.subr.bf16.mxu0 %v3147
        %4529 = vmatpush1.bf16.msra.mxu0 %v3146
        %4530 = vmatprep.subr.bf16.mxu0 %v3151
        %4531 = vmatpush1.bf16.msra.mxu0 %v3150
        %4532 = vmatprep.subr.bf16.mxu0 %v3155
        %4533 = vmatpush1.bf16.msra.mxu0 %v3154
        %4534 = vmatprep.subr.bf16.mxu0 %v3159
        %4535 = vmatpush1.bf16.msra.mxu0 %v3158
        %4536 = vmatprep.subr.bf16.mxu0 %v3163
        %4537 = vmatpush1.bf16.msra.mxu0 %v3162
        %4538 = vmatprep.subr.bf16.mxu0 %v3167
        %4539 = vmatpush1.bf16.msra.mxu0 %v3166
        %4540 = vmatprep.subr.bf16.mxu0 %v3171
        %4541 = vmatpush1.bf16.msra.mxu0 %v3170
        %4542 = vmatprep.subr.bf16.mxu0 %v3175
        %4543 = vmatpush1.bf16.msra.mxu0 %v3174
        %4544 = vmatprep.subr.bf16.mxu0 %v3179
        %4545 = vmatpush1.bf16.msra.mxu0 %v3178
        %4546 = vmatprep.subr.bf16.mxu0 %v3183
        %4547 = vmatpush1.bf16.msra.mxu0 %v3182
        %4548 = vmatprep.subr.bf16.mxu0 %v3187
        %4549 = vmatpush1.bf16.msra.mxu0 %v3186
        %4550 = vmatprep.subr.bf16.mxu0 %v3191
        %4551 = vmatpush1.bf16.msra.mxu0 %v3190
        %4552 = vmatprep.mubr.bf16.mxu0 %v351
        %4553 = vmatmul.mubr.bf16.gmra.mrb[0].mxu0 %v350
        %v4554 = vpop.f32.mrb[0].mxu0
        %v4555 = vadd.f32 %v4512, %v4554
        %v4556 = vpop.f32.mrb[0].mxu0
        %v4557 = vadd.f32 %v4514, %v4556
        %v4558 = vpop.f32.mrb[0].mxu0
        %v4559 = vadd.f32 %v4516, %v4558
        %v4560 = vpop.f32.mrb[0].mxu0
        %v4561 = vadd.f32 %v4518, %v4560
        %4562 = vdwg.mxu0
        %4563 = vmatprep.subr.bf16.mxu0 %v3195
        %4564 = vmatpush1.bf16.msra.mxu0 %v3194
        %4565 = vmatprep.subr.bf16.mxu0 %v3199
        %4566 = vmatpush1.bf16.msra.mxu0 %v3198
        %4567 = vmatprep.subr.bf16.mxu0 %v3203
        %4568 = vmatpush1.bf16.msra.mxu0 %v3202
        %4569 = vmatprep.subr.bf16.mxu0 %v3207
        %4570 = vmatpush1.bf16.msra.mxu0 %v3206
        %4571 = vmatprep.subr.bf16.mxu0 %v3211
        %4572 = vmatpush1.bf16.msra.mxu0 %v3210
        %4573 = vmatprep.subr.bf16.mxu0 %v3215
        %4574 = vmatpush1.bf16.msra.mxu0 %v3214
        %4575 = vmatprep.subr.bf16.mxu0 %v3219
        %4576 = vmatpush1.bf16.msra.mxu0 %v3218
        %4577 = vmatprep.subr.bf16.mxu0 %v3223
        %4578 = vmatpush1.bf16.msra.mxu0 %v3222
        %4579 = vmatprep.subr.bf16.mxu0 %v3227
        %4580 = vmatpush1.bf16.msra.mxu0 %v3226
        %4581 = vmatprep.subr.bf16.mxu0 %v3231
        %4582 = vmatpush1.bf16.msra.mxu0 %v3230
        %4583 = vmatprep.subr.bf16.mxu0 %v3235
        %4584 = vmatpush1.bf16.msra.mxu0 %v3234
        %4585 = vmatprep.subr.bf16.mxu0 %v3239
        %4586 = vmatpush1.bf16.msra.mxu0 %v3238
        %4587 = vmatprep.subr.bf16.mxu0 %v3243
        %4588 = vmatpush1.bf16.msra.mxu0 %v3242
        %4589 = vmatprep.subr.bf16.mxu0 %v3247
        %4590 = vmatpush1.bf16.msra.mxu0 %v3246
        %4591 = vmatprep.subr.bf16.mxu0 %v3251
        %4592 = vmatpush1.bf16.msra.mxu0 %v3250
        %4593 = vmatprep.subr.bf16.mxu0 %v3255
        %4594 = vmatpush1.bf16.msra.mxu0 %v3254
        %4595 = vmatprep.mubr.bf16.mxu0 %v353
        %4596 = vmatmul.mubr.bf16.gmra.mrb[0].mxu0 %v352
        %v4597 = vpop.f32.mrb[0].mxu0
        %v4598 = vadd.f32 %v4555, %v4597
        %v4599 = vpop.f32.mrb[0].mxu0
        %v4600 = vadd.f32 %v4557, %v4599
        %v4601 = vpop.f32.mrb[0].mxu0
        %v4602 = vadd.f32 %v4559, %v4601
        %v4603 = vpop.f32.mrb[0].mxu0
        %v4604 = vadd.f32 %v4561, %v4603
        %4605 = vdwg.mxu0
        %v4606 = vmax.f32 %v4211, 0.0
        %v4607 = vmax.f32 %v4213, 0.0
        %v4608 = vmax.f32 %v4598, 0.0
        %v4609 = vmax.f32 %v4600, 0.0
        %v4610 = vmax.f32 %v4215, 0.0
        %v4611 = vmax.f32 %v4217, 0.0
        %v4612 = vmax.f32 %v4602, 0.0
        %v4613 = vmax.f32 %v4604, 0.0
        %4614 = vst [vmem:[#allocation2] sm:$0xff] %v4606
        %4615 = vst [vmem:[#allocation2 + $0x8] sm:$0xff] %v4607
        %4616 = vst [vmem:[#allocation2 + $0x10] sm:$0xff] %v4608
        %4617 = vst [vmem:[#allocation2 + $0x18] sm:$0xff] %v4609
        %4618 = vst [vmem:[#allocation2 + $0x20] sm:$0xff] %v4610
        %4619 = vst [vmem:[#allocation2 + $0x28] sm:$0xff] %v4611
        %4620 = vst [vmem:[#allocation2 + $0x30] sm:$0xff] %v4612
        %4621 = vst [vmem:[#allocation2 + $0x38] sm:$0xff] %v4613
        %v4622 = vld [vmem:[#allocation2] sm:$0xff]
        %v4623 = vld [vmem:[#allocation2 + $0x8] sm:$0xff]
        %v4624 = vld [vmem:[#allocation2 + $0x10] sm:$0xff]
        %v4625 = vld [vmem:[#allocation2 + $0x18] sm:$0xff]
        %v4626 = vld [vmem:[#allocation2 + $0x20] sm:$0xff]
        %v4627 = vld [vmem:[#allocation2 + $0x28] sm:$0xff]
        %v4628 = vld [vmem:[#allocation2 + $0x30] sm:$0xff]
        %v4629 = vld [vmem:[#allocation2 + $0x38] sm:$0xff]
        %v4630 = vld [vmem:[#allocation9] sm:$0xff]
        %v4631 = vld [vmem:[#allocation9 + $0x8] sm:$0xff]
        %v4632 = vld [vmem:[#allocation9 + $0x10] sm:$0xff]
        %v4633 = vld [vmem:[#allocation9 + $0x18] sm:$0xff]
        %v4634 = vld [vmem:[#allocation9 + $0x20] sm:$0xff]
        %v4635 = vld [vmem:[#allocation9 + $0x28] sm:$0xff]
        %v4636 = vld [vmem:[#allocation9 + $0x30] sm:$0xff]
        %v4637 = vld [vmem:[#allocation9 + $0x38] sm:$0xff]
        %v4638 = vld [vmem:[#allocation9 + $0x40] sm:$0xff]
        %v4639 = vld [vmem:[#allocation9 + $0x48] sm:$0xff]
        %v4640 = vld [vmem:[#allocation9 + $0x50] sm:$0xff]
        %v4641 = vld [vmem:[#allocation9 + $0x58] sm:$0xff]
        %v4642 = vld [vmem:[#allocation9 + $0x60] sm:$0xff]
        %v4643 = vld [vmem:[#allocation9 + $0x68] sm:$0xff]
        %v4644 = vld [vmem:[#allocation9 + $0x70] sm:$0xff]
        %v4645 = vld [vmem:[#allocation9 + $0x78] sm:$0xff]
        %v4646 = vld [vmem:[#allocation9 + $0x80] sm:$0xff]
        %v4647 = vld [vmem:[#allocation9 + $0x88] sm:$0xff]
        %v4648 = vld [vmem:[#allocation9 + $0x90] sm:$0xff]
        %v4649 = vld [vmem:[#allocation9 + $0x98] sm:$0xff]
        %v4650 = vld [vmem:[#allocation9 + $0xa0] sm:$0xff]
        %v4651 = vld [vmem:[#allocation9 + $0xa8] sm:$0xff]
        %v4652 = vld [vmem:[#allocation9 + $0xb0] sm:$0xff]
        %v4653 = vld [vmem:[#allocation9 + $0xb8] sm:$0xff]
        %v4654 = vld [vmem:[#allocation9 + $0xc0] sm:$0xff]
        %v4655 = vld [vmem:[#allocation9 + $0xc8] sm:$0xff]
        %v4656 = vld [vmem:[#allocation9 + $0xd0] sm:$0xff]
        %v4657 = vld [vmem:[#allocation9 + $0xd8] sm:$0xff]
        %v4658 = vld [vmem:[#allocation9 + $0xe0] sm:$0xff]
        %v4659 = vld [vmem:[#allocation9 + $0xe8] sm:$0xff]
        %v4660 = vld [vmem:[#allocation9 + $0xf0] sm:$0xff]
        %v4661 = vld [vmem:[#allocation9 + $0xf8] sm:$0xff]
        %v4662 = vld [vmem:[#allocation9 + $0x100] sm:$0xff]
        %v4663 = vld [vmem:[#allocation9 + $0x108] sm:$0xff]
        %v4664 = vld [vmem:[#allocation9 + $0x110] sm:$0xff]
        %v4665 = vld [vmem:[#allocation9 + $0x118] sm:$0xff]
        %v4666 = vld [vmem:[#allocation9 + $0x120] sm:$0xff]
        %v4667 = vld [vmem:[#allocation9 + $0x128] sm:$0xff]
        %v4668 = vld [vmem:[#allocation9 + $0x130] sm:$0xff]
        %v4669 = vld [vmem:[#allocation9 + $0x138] sm:$0xff]
        %v4670 = vld [vmem:[#allocation9 + $0x140] sm:$0xff]
        %v4671 = vld [vmem:[#allocation9 + $0x148] sm:$0xff]
        %v4672 = vld [vmem:[#allocation9 + $0x150] sm:$0xff]
        %v4673 = vld [vmem:[#allocation9 + $0x158] sm:$0xff]
        %v4674 = vld [vmem:[#allocation9 + $0x160] sm:$0xff]
        %v4675 = vld [vmem:[#allocation9 + $0x168] sm:$0xff]
        %v4676 = vld [vmem:[#allocation9 + $0x170] sm:$0xff]
        %v4677 = vld [vmem:[#allocation9 + $0x178] sm:$0xff]
        %v4678 = vld [vmem:[#allocation9 + $0x180] sm:$0xff]
        %v4679 = vld [vmem:[#allocation9 + $0x188] sm:$0xff]
        %v4680 = vld [vmem:[#allocation9 + $0x190] sm:$0xff]
        %v4681 = vld [vmem:[#allocation9 + $0x198] sm:$0xff]
        %v4682 = vld [vmem:[#allocation9 + $0x1a0] sm:$0xff]
        %v4683 = vld [vmem:[#allocation9 + $0x1a8] sm:$0xff]
        %v4684 = vld [vmem:[#allocation9 + $0x1b0] sm:$0xff]
        %v4685 = vld [vmem:[#allocation9 + $0x1b8] sm:$0xff]
        %v4686 = vld [vmem:[#allocation9 + $0x1c0] sm:$0xff]
        %v4687 = vld [vmem:[#allocation9 + $0x1c8] sm:$0xff]
        %v4688 = vld [vmem:[#allocation9 + $0x1d0] sm:$0xff]
        %v4689 = vld [vmem:[#allocation9 + $0x1d8] sm:$0xff]
        %v4690 = vld [vmem:[#allocation9 + $0x1e0] sm:$0xff]
        %v4691 = vld [vmem:[#allocation9 + $0x1e8] sm:$0xff]
        %v4692 = vld [vmem:[#allocation9 + $0x1f0] sm:$0xff]
        %v4693 = vld [vmem:[#allocation9 + $0x1f8] sm:$0xff]
        %v4694 = vld [vmem:[#allocation11] sm:$0x1]
        %v4696 = vlaneseq
        %v4697 = vshrl.u32 %v4696, 7
        %v4698 = vsub.s32 0, %v4697
        %v4699 = vrot.slane %v4694, %v4698
        %4701 = vmatprep.subr.mxu0 0.0
        %4702 = vmatpush1.msra.mxu0 %v4630
        %4703 = vmatprep.subr.mxu0 0.0
        %4704 = vmatpush1.msra.mxu0 %v4631
        %4705 = vmatprep.subr.mxu0 0.0
        %4706 = vmatpush1.msra.mxu0 %v4632
        %4707 = vmatprep.subr.mxu0 0.0
        %4708 = vmatpush1.msra.mxu0 %v4633
        %4709 = vmatprep.subr.mxu0 0.0
        %4710 = vmatpush1.msra.mxu0 %v4634
        %4711 = vmatprep.subr.mxu0 0.0
        %4712 = vmatpush1.msra.mxu0 %v4635
        %4713 = vmatprep.subr.mxu0 0.0
        %4714 = vmatpush1.msra.mxu0 %v4636
        %4715 = vmatprep.subr.mxu0 0.0
        %4716 = vmatpush1.msra.mxu0 %v4637
        %4717 = vmatprep.subr.mxu0 0.0
        %4718 = vmatpush1.msra.mxu0 %v4638
        %4719 = vmatprep.subr.mxu0 0.0
        %4720 = vmatpush1.msra.mxu0 %v4639
        %4721 = vmatprep.subr.mxu0 0.0
        %4722 = vmatpush1.msra.mxu0 %v4640
        %4723 = vmatprep.subr.mxu0 0.0
        %4724 = vmatpush1.msra.mxu0 %v4641
        %4725 = vmatprep.subr.mxu0 0.0
        %4726 = vmatpush1.msra.mxu0 %v4642
        %4727 = vmatprep.subr.mxu0 0.0
        %4728 = vmatpush1.msra.mxu0 %v4643
        %4729 = vmatprep.subr.mxu0 0.0
        %4730 = vmatpush1.msra.mxu0 %v4644
        %4731 = vmatprep.subr.mxu0 0.0
        %4732 = vmatpush1.msra.mxu0 %v4645
        %4733 = vmatprep.subr.mxu0 0.0
        %4734 = vmatpush1.msra.mxu0 %v4646
        %4735 = vmatprep.subr.mxu0 0.0
        %4736 = vmatpush1.msra.mxu0 %v4647
        %4737 = vmatprep.subr.mxu0 0.0
        %4738 = vmatpush1.msra.mxu0 %v4648
        %4739 = vmatprep.subr.mxu0 0.0
        %4740 = vmatpush1.msra.mxu0 %v4649
        %4741 = vmatprep.subr.mxu0 0.0
        %4742 = vmatpush1.msra.mxu0 %v4650
        %4743 = vmatprep.subr.mxu0 0.0
        %4744 = vmatpush1.msra.mxu0 %v4651
        %4745 = vmatprep.subr.mxu0 0.0
        %4746 = vmatpush1.msra.mxu0 %v4652
        %4747 = vmatprep.subr.mxu0 0.0
        %4748 = vmatpush1.msra.mxu0 %v4653
        %4749 = vmatprep.subr.mxu0 0.0
        %4750 = vmatpush1.msra.mxu0 %v4654
        %4751 = vmatprep.subr.mxu0 0.0
        %4752 = vmatpush1.msra.mxu0 %v4655
        %4753 = vmatprep.subr.mxu0 0.0
        %4754 = vmatpush1.msra.mxu0 %v4656
        %4755 = vmatprep.subr.mxu0 0.0
        %4756 = vmatpush1.msra.mxu0 %v4657
        %4757 = vmatprep.subr.mxu0 0.0
        %4758 = vmatpush1.msra.mxu0 %v4658
        %4759 = vmatprep.subr.mxu0 0.0
        %4760 = vmatpush1.msra.mxu0 %v4659
        %4761 = vmatprep.subr.mxu0 0.0
        %4762 = vmatpush1.msra.mxu0 %v4660
        %4763 = vmatprep.subr.mxu0 0.0
        %4764 = vmatpush1.msra.mxu0 %v4661
        %4765 = vmatprep.mubr.f32.mxu0 %v4623
        %4766 = vmatmul.mubr.f32.gmra.mrb[0].mxu0 %v4622
        %v4767 = vpop.f32.mrb[0].mxu0
        %v4768 = vadd.f32 %v4699, %v4767
        %v4769 = vpop.f32.mrb[0].mxu0
        %4770 = vmatprep.mubr.f32.mxu0 %v4627
        %4771 = vmatmul.mubr.f32.gmra.mrb[0].mxu0 %v4626
        %v4772 = vpop.f32.mrb[0].mxu0
        %v4773 = vadd.f32 %v4699, %v4772
        %v4774 = vpop.f32.mrb[0].mxu0
        %4775 = vdwg.mxu0
        %4776 = vmatprep.subr.mxu0 0.0
        %4777 = vmatpush1.msra.mxu0 %v4662
        %4778 = vmatprep.subr.mxu0 0.0
        %4779 = vmatpush1.msra.mxu0 %v4663
        %4780 = vmatprep.subr.mxu0 0.0
        %4781 = vmatpush1.msra.mxu0 %v4664
        %4782 = vmatprep.subr.mxu0 0.0
        %4783 = vmatpush1.msra.mxu0 %v4665
        %4784 = vmatprep.subr.mxu0 0.0
        %4785 = vmatpush1.msra.mxu0 %v4666
        %4786 = vmatprep.subr.mxu0 0.0
        %4787 = vmatpush1.msra.mxu0 %v4667
        %4788 = vmatprep.subr.mxu0 0.0
        %4789 = vmatpush1.msra.mxu0 %v4668
        %4790 = vmatprep.subr.mxu0 0.0
        %4791 = vmatpush1.msra.mxu0 %v4669
        %4792 = vmatprep.subr.mxu0 0.0
        %4793 = vmatpush1.msra.mxu0 %v4670
        %4794 = vmatprep.subr.mxu0 0.0
        %4795 = vmatpush1.msra.mxu0 %v4671
        %4796 = vmatprep.subr.mxu0 0.0
        %4797 = vmatpush1.msra.mxu0 %v4672
        %4798 = vmatprep.subr.mxu0 0.0
        %4799 = vmatpush1.msra.mxu0 %v4673
        %4800 = vmatprep.subr.mxu0 0.0
        %4801 = vmatpush1.msra.mxu0 %v4674
        %4802 = vmatprep.subr.mxu0 0.0
        %4803 = vmatpush1.msra.mxu0 %v4675
        %4804 = vmatprep.subr.mxu0 0.0
        %4805 = vmatpush1.msra.mxu0 %v4676
        %4806 = vmatprep.subr.mxu0 0.0
        %4807 = vmatpush1.msra.mxu0 %v4677
        %4808 = vmatprep.subr.mxu0 0.0
        %4809 = vmatpush1.msra.mxu0 %v4678
        %4810 = vmatprep.subr.mxu0 0.0
        %4811 = vmatpush1.msra.mxu0 %v4679
        %4812 = vmatprep.subr.mxu0 0.0
        %4813 = vmatpush1.msra.mxu0 %v4680
        %4814 = vmatprep.subr.mxu0 0.0
        %4815 = vmatpush1.msra.mxu0 %v4681
        %4816 = vmatprep.subr.mxu0 0.0
        %4817 = vmatpush1.msra.mxu0 %v4682
        %4818 = vmatprep.subr.mxu0 0.0
        %4819 = vmatpush1.msra.mxu0 %v4683
        %4820 = vmatprep.subr.mxu0 0.0
        %4821 = vmatpush1.msra.mxu0 %v4684
        %4822 = vmatprep.subr.mxu0 0.0
        %4823 = vmatpush1.msra.mxu0 %v4685
        %4824 = vmatprep.subr.mxu0 0.0
        %4825 = vmatpush1.msra.mxu0 %v4686
        %4826 = vmatprep.subr.mxu0 0.0
        %4827 = vmatpush1.msra.mxu0 %v4687
        %4828 = vmatprep.subr.mxu0 0.0
        %4829 = vmatpush1.msra.mxu0 %v4688
        %4830 = vmatprep.subr.mxu0 0.0
        %4831 = vmatpush1.msra.mxu0 %v4689
        %4832 = vmatprep.subr.mxu0 0.0
        %4833 = vmatpush1.msra.mxu0 %v4690
        %4834 = vmatprep.subr.mxu0 0.0
        %4835 = vmatpush1.msra.mxu0 %v4691
        %4836 = vmatprep.subr.mxu0 0.0
        %4837 = vmatpush1.msra.mxu0 %v4692
        %4838 = vmatprep.subr.mxu0 0.0
        %4839 = vmatpush1.msra.mxu0 %v4693
        %4840 = vmatprep.mubr.f32.mxu0 %v4625
        %4841 = vmatmul.mubr.f32.gmra.mrb[0].mxu0 %v4624
        %v4842 = vpop.f32.mrb[0].mxu0
        %v4843 = vadd.f32 %v4768, %v4842
        %v4844 = vpop.f32.mrb[0].mxu0
        %4845 = vmatprep.mubr.f32.mxu0 %v4629
        %4846 = vmatmul.mubr.f32.gmra.mrb[0].mxu0 %v4628
        %v4847 = vpop.f32.mrb[0].mxu0
        %v4848 = vadd.f32 %v4773, %v4847
        %v4849 = vpop.f32.mrb[0].mxu0
        %4850 = vdwg.mxu0
        %4851 = vmax.xlane.f32.xlu0 %v4843
        %v4852 = vpop.xlane.xlu0 %4851
        %4853 = vmax.xlane.f32.xlu0 %v4848
        %v4854 = vpop.xlane.xlu0 %4853
        %v4855 = vsub.f32 %v4843, %v4852
        %v4856 = vsub.f32 %v4848, %v4854
        %v4857 = vmul.f32 %v4855, 1.442695
        %v4858 = vpow.pop %v4857
        %v4859 = vmul.f32 %v4856, 1.442695
        %v4860 = vpow.pop %v4859
        %4861 = vadd.xlane.f32.xlu0 %v4858
        %v4862 = vpop.xlane.xlu0 %4861
        %4863 = vadd.xlane.f32.xlu0 %v4860
        %v4864 = vpop.xlane.xlu0 %4863
        %v4865 = vlog2.pop %v4862
        %v4866 = vmul.f32 %v4865, 0.6931472
        %v4867 = vlog2.pop %v4864
        %v4868 = vmul.f32 %v4867, 0.6931472
        %v4869 = vsub.f32 %v4855, %v4866
        %v4870 = vsub.f32 %v4856, %v4868
        %4871 = vst [vmem:[%s297] sm:$0xff] %v4869
        %4872 = vst [vmem:[%s297 + $0x8] sm:$0xff] %v4870
        %s4873 = sand.u32 %s142, 1
        %s4874 = scalar_lea.sflag [#allocation5], %s4873
        %s4875 = sand.u32 %s142, 1
        %s4876 = smul.addr %s4875, 16
        %s4877 = scalar_lea.vmem [#allocation12], %s4876
        // Predicated region
        $region61: #{tpu_custom_call.1} parent=39 // pred_check
          %p4878 = pneg %p152
        $region62: #{tpu_custom_call.1} parent=39 // pred_check_branch
          %4880 = sbr.rel (%p4878) target = $region64
        $region63: #{tpu_custom_call.1} parent=39 // pred_region
          %s4881 = smul.u32 2, %s24
          %s4883 = ssub.s32 256, 256
          %4884 = vsyncadd %s4874, %s4883
          %s4885 = smul.addr %s4881, 128
          %s4886 = scalar_lea.hbm %s5, %s4885
          %s4887 = sshll.u32 %s4877, 4
          %s4888 = int_to_ptr.vmem [resolvable:$true] %s4887
          %4893 = dma.vmem_to_hbm [thread:$0]  %s4888, 256, %s4886, %s4874, 128, 128, 8
        $region64: #{tpu_custom_call.1} parent=39 // pred_fallthru
          _
      $region40: #{tpu_custom_call.1} parent=5 // pred_fallthru
        _
      %p4894 = scmp.le.s32.totalorder 2, %s19
      // Predicated region
      $region65: #{tpu_custom_call.1} parent=5 // pred_check
        %p4895 = pneg %p4894
      $region66: #{tpu_custom_call.1} parent=5 // pred_check_branch
        %4897 = sbr.rel (%p4895) target = $region68
      $region67: #{tpu_custom_call.1} parent=5 // pred_region
        %s4898 = ssub.s32 %s19, 2
        // Predicated region
        $region69: #{tpu_custom_call.1} parent=67 // pred_check
          %p4899 = pneg %p158
        $region70: #{tpu_custom_call.1} parent=67 // pred_check_branch
          %4901 = sbr.rel (%p4899) target = $region72
        $region71: #{tpu_custom_call.1} parent=67 // pred_region
          %s4902 = sand.u32 %s143, 1
          %s4903 = scalar_lea.sflag [#allocation5], %s4902
          %s4904 = sand.u32 %s143, 1
          %s4905 = smul.addr %s4904, 16
          %s4906 = scalar_lea.vmem [#allocation12], %s4905
          %4907 = dma.done %s4903, 256
        $region72: #{tpu_custom_call.1} parent=67 // pred_fallthru
          _
      $region68: #{tpu_custom_call.1} parent=5 // pred_fallthru
        _
    $region6: #{tpu_custom_call.1} parent=1 // loop_footer
      %s23 = sadd.s32 1, %s19
    $region7: #{tpu_custom_call.1} parent=1 // loop_footer_branch
      %18 = sbr.rel target = $region3
    $region8: #{tpu_custom_call.1} parent=1 // loop_exit
      _
    %4908 = vsyncpa [#allocation4], 1
    %s4909 = scalar_lea.sflag [#allocation4], 1
    %4910 = vsyncpa %s4909, 1
    %4911 = vsyncpa [#allocation7], 1
    %4912 = vsyncpa [#allocation10], 1
    %4913 = vsyncpa [#allocation5], 1
    %s4914 = scalar_lea.sflag [#allocation5], 1
    %4915 = vsyncpa %s4914, 1

</llo_original>
